<compile_context>
chip_gen: v7x
topology: tpu7x:2x2x1
jax: 0.10.0
libtpu: 0.0.40
codegen_flags: <defaults>
</compile_context>

<pallas_src>
import functools

import jax
import jax.numpy as jnp
from jax import lax
from jax.experimental import pallas as pl
from jax.experimental.pallas import tpu as pltpu

HIDDEN = 8            # conv1 output channels (nn.Conv2d(1, 8, 3, 1, 1))
BN_EPS = 1e-5
GATE_BATCH = 4        # batches stacked into one (GATE_BATCH*C, F) plane for the gate convs
# k = (di+1)*3 + (dj+1) matches the row-major flattening of a 3x3 kernel.
_TAPS = tuple((di, dj) for di in (-1, 0, 1) for dj in (-1, 0, 1))


def _c2dse_kernel(w1_ref, b1_ref, w2_ref, b2_ref, x_ref, out_ref, *, hidden, gb):
    # x_ref block: (bb, C, T, F) -- bb batch elements per grid step.
    bb, C, T, F = x_ref.shape
    n_chunks = bb // gb
    R = gb * C                                   # stacked rows (gb batches x C channels)
    inv_t = 1.0 / T
    use_roll = (R % 8 == 0) and (F % 128 == 0)

    # ---- boundary masks, hoisted: computed once per grid step, shared by all shifts.
    # Row masks use the batch-local row index (r % C) so sublane shifts never leak
    # across the gb batches stacked along the row axis.
    rl = lax.broadcasted_iota(jnp.int32, (R, F), 0) % C
    ci = lax.broadcasted_iota(jnp.int32, (R, F), 1)
    up, down = rl > 0, rl < C - 1                # valid source rows for di = -1 / +1
    left, right = ci > 0, ci < F - 1             # valid source cols for dj = -1 / +1
    masks = {
        (-1, -1): up & left,   (-1, 0): up,    (-1, 1): up & right,
        (0, -1):  left,        (0, 0):  None,  (0, 1):  right,
        (1, -1):  down & left, (1, 0):  down,  (1, 1):  down & right,
    }

    def shift(a, di, dj):
        """shifted[i, j] = a[i+di, j+dj], zero outside each batch's (C, F) plane."""
        if di == 0 and dj == 0:
            return a
        if use_roll:
            out = a
            if di != 0:
                out = pltpu.roll(out, shift=(-di) % R, axis=0)   # sublane rotate (XLU)
            if dj != 0:
                out = pltpu.roll(out, shift=(-dj) % F, axis=1)   # lane rotate (XLU)
        else:
            # Fallback for non-(8,128)-aligned planes: slice + zero-pad.
            out = a
            if di == 1:
                out = jnp.concatenate([out[1:, :], jnp.zeros_like(out[:1, :])], axis=0)
            elif di == -1:
                out = jnp.concatenate([jnp.zeros_like(out[:1, :]), out[:-1, :]], axis=0)
            if dj == 1:
                out = jnp.concatenate([out[:, 1:], jnp.zeros_like(out[:, :1])], axis=1)
            elif dj == -1:
                out = jnp.concatenate([jnp.zeros_like(out[:, :1]), out[:, :-1]], axis=1)
        # Mask also zeroes rows/cols that leaked across batch boundaries in the stack.
        return jnp.where(masks[(di, dj)], out, 0.0)

    def chunk(g):
        start = g * gb
        if not isinstance(start, int):
            start = pl.multiple_of(start, gb)

        # ---- squeeze: biased std over T, two-pass (centered) over the VMEM block ----
        xs = x_ref[pl.ds(start, gb)].reshape(R, T, F)
        mean = jnp.sum(xs, axis=1) * inv_t                       # (R, F)
        d = xs - mean[:, None, :]
        sq = jnp.sqrt(jnp.sum(d * d, axis=1) * inv_t)            # (R, F)

        # ---- conv1 (3x3, same pad, BN folded on host) + ReLU; hidden planes stay
        # as local values (vregs / compiler-managed) -- no VMEM scratch round-trips ---
        h = [None] * hidden
        for k, (di, dj) in enumerate(_TAPS):
            s = shift(sq, di, dj)                                # 9 shifts, shared by all o
            for o in range(hidden):
                t = w1_ref[o * 9 + k] * s
                h[o] = t if h[o] is None else h[o] + t
        h = [jnp.maximum(h[o] + b1_ref[o], 0.0) for o in range(hidden)]

        # ---- conv2 (3x3, same pad): linearity-hoisted -> combine channels per tap,
        # then a single shift per tap (9 shifts instead of 72) ------------------------
        gate = None
        for k, (di, dj) in enumerate(_TAPS):
            m = h[0] * w2_ref[0 * 9 + k]
            for o in range(1, hidden):
                m = m + h[o] * w2_ref[o * 9 + k]
            sm = shift(m, di, dj)
            gate = sm if gate is None else gate + sm

        # Exact sigmoid (approx reciprocal would cost ~1e-3 rel error on the gate).
        gate = 1.0 / (1.0 + jnp.exp(-(gate + b2_ref[0])))        # (R, F), EUP exp

        # ---- excite: fresh read of x from the VMEM block (keeps the block out of the
        # conv live-set) and broadcast the gate over T; lane-dense store ---------------
        xv = x_ref[pl.ds(start, gb)].reshape(R, T, F)
        out_ref[pl.ds(start, gb)] = (xv * gate[:, None, :]).reshape(gb, C, T, F)

    if n_chunks == 1:
        chunk(0)
    else:
        # fori_loop (not a static Python unroll) bounds per-chunk live ranges.
        def body(g, carry):
            chunk(g)
            return carry
        lax.fori_loop(0, n_chunks, body, 0)


def _pick_batch_block(B, per_elem_bytes, target_bytes):
    divisors = [d for d in range(1, B + 1) if B % d == 0]
    fitting = [d for d in divisors if d * per_elem_bytes <= target_bytes] or [1]
    # Prefer >=2 (ideally even) grid steps so the "parallel" batch axis can split
    # across v7x's two TensorCores; otherwise take the largest fitting block.
    even = [d for d in fitting if (B // d) >= 2 and (B // d) % 2 == 0]
    if even:
        return max(even)
    two = [d for d in fitting if (B // d) >= 2]
    if two:
        return max(two)
    return max(fitting)


def c2dse_forward(x, w1, b1, gamma, beta, rmean, rvar, w2, b2, *, batch_block=None):
    """x: (B, C, T, F) float32.  Parameters match the PyTorch module shapes."""
    B, C, T, F = x.shape
    x = x.astype(jnp.float32)

    # Fold eval-mode BatchNorm into conv1 on the host (free; removes all BN work
    # from the kernel VALU path).
    bn_scale = (gamma / jnp.sqrt(rvar + BN_EPS)).astype(jnp.float32)        # (8,)
    bn_shift = (beta - rmean * bn_scale).astype(jnp.float32)                # (8,)
    w1_flat = (w1.reshape(HIDDEN, 9).astype(jnp.float32) * bn_scale[:, None]).reshape(-1)
    b1_fold = b1.astype(jnp.float32) * bn_scale + bn_shift
    w2_flat = w2.reshape(-1).astype(jnp.float32)                            # (72,)
    b2_flat = b2.astype(jnp.float32)                                        # (1,)

    # Generation-aware VMEM budget: ~75% of physical (v7x 64 MiB -> ~48 MiB,
    # v5e/v6e 128 MiB -> ~96 MiB); conservative 64 MiB assumption if the query fails.
    try:
        phys_vmem = int(pltpu.get_tpu_info().vmem_capacity_bytes)
    except Exception:
        phys_vmem = 64 * 1024 * 1024
    vmem_budget = (phys_vmem * 3) // 4

    # Batch block: multi-MiB blocks amortize per-grid-step overhead; in+out double
    # buffering (4x block) plus compute temporaries must stay inside the budget.
    per_elem_bytes = C * T * F * 4
    target_block_bytes = max(per_elem_bytes, vmem_budget // 6)
    bb = _pick_batch_block(B, per_elem_bytes, target_block_bytes) \
        if batch_block is None else batch_block
    assert B % bb == 0, "batch_block must divide the batch size"

    # Gate-conv chunk: stack gb batches into one (gb*C, F) plane so each vector op
    # carries several vregs (fills the 4 VALU slots) without blowing up live ranges.
    gb = max(d for d in range(1, min(bb, GATE_BATCH) + 1) if bb % d == 0)

    grid_spec = pltpu.PrefetchScalarGridSpec(
        num_scalar_prefetch=4,                      # folded weights & biases live in SMEM
        grid=(B // bb,),
        in_specs=[pl.BlockSpec((bb, C, T, F), lambda i, *_: (i, 0, 0, 0))],
        out_specs=pl.BlockSpec((bb, C, T, F), lambda i, *_: (i, 0, 0, 0)),
    )

    return pl.pallas_call(
        functools.partial(_c2dse_kernel, hidden=HIDDEN, gb=gb),
        out_shape=jax.ShapeDtypeStruct((B, C, T, F), jnp.float32),
        grid_spec=grid_spec,
        compiler_params=pltpu.CompilerParams(
            dimension_semantics=("parallel",),      # batch blocks are independent
            vmem_limit_bytes=int(vmem_budget),
        ),
    )(w1_flat, b1_fold, w2_flat, b2_flat, x)


def c2dse_reference(x, w1, b1, gamma, beta, rmean, rvar, w2, b2):
    """Pure-JAX reference mirroring the PyTorch forward (eval-mode BN)."""
    B, C, T, F = x.shape
    mean = jnp.mean(x, axis=2, keepdims=True)
    var = jnp.sum((x - mean) ** 2, axis=2) / T              # (B, C, F) -- biased, as in the module
    sq = jnp.sqrt(var)[:, None, :, :]                       # (B, 1, C, F)
    dn = ("NCHW", "OIHW", "NCHW")
    h = lax.conv_general_dilated(sq, w1, (1, 1), "SAME", dimension_numbers=dn)
    h = h + b1[None, :, None, None]
    h = (h - rmean[None, :, None, None]) / jnp.sqrt(rvar[None, :, None, None] + BN_EPS)
    h = h * gamma[None, :, None, None] + beta[None, :, None, None]
    h = jnp.maximum(h, 0.0)
    g = lax.conv_general_dilated(h, w2, (1, 1), "SAME", dimension_numbers=dn)
    g = jax.nn.sigmoid(g + b2[None, :, None, None])         # (B, 1, C, F)
    return x * jnp.transpose(g, (0, 2, 1, 3))               # gate broadcast over T


if __name__ == "__main__":
    key = jax.random.PRNGKey(0)
    k = jax.random.split(key, 9)

    # Lane-dense (F = 128) and sublane-dense (C = 8) demo shape; exercises the grid
    # (2 steps), the in-kernel chunk loop (gb = 4), and the centered variance (DC offset).
    B, C, T, F = 16, 8, 16, 128
    x = jax.random.normal(k[0], (B, C, T, F), jnp.float32)
    x = x + jnp.arange(C, dtype=jnp.float32)[None, :, None, None]   # per-channel DC offset

    # conv1: Conv2d(1, 8, 3, 1, 1)
    bound1 = 1.0 / jnp.sqrt(1.0 * 3 * 3)
    w1 = jax.random.uniform(k[1], (HIDDEN, 1, 3, 3), jnp.float32, -bound1, bound1)
    b1 = jax.random.uniform(k[2], (HIDDEN,), jnp.float32, -bound1, bound1)

    # conv2: Conv2d(8, 1, 3, 1, 1)
    bound2 = 1.0 / jnp.sqrt(HIDDEN * 3.0 * 3.0)
    w2 = jax.random.uniform(k[3], (1, HIDDEN, 3, 3), jnp.float32, -bound2, bound2)
    b2 = jax.random.uniform(k[4], (1,), jnp.float32, -bound2, bound2)

    # BatchNorm2d(8) -- eval-mode running stats and affine parameters.
    gamma = jax.random.uniform(k[5], (HIDDEN,), jnp.float32, 0.5, 1.5)
    beta = 0.1 * jax.random.normal(k[6], (HIDDEN,), jnp.float32)
    rmean = 0.1 * jax.random.normal(k[7], (HIDDEN,), jnp.float32)
    rvar = jax.random.uniform(k[8], (HIDDEN,), jnp.float32, 0.5, 1.5)

    out = jax.block_until_ready(
        c2dse_forward(x, w1, b1, gamma, beta, rmean, rvar, w2, b2))
    ref = jax.block_until_ready(
        c2dse_reference(x, w1, b1, gamma, beta, rmean, rvar, w2, b2))

    assert out.shape == (B, C, T, F) and out.dtype == jnp.float32
    err = float(jnp.max(jnp.abs(out - ref)))
    assert jnp.allclose(out, ref, rtol=1e-4, atol=1e-4), f"max abs err {err}"

    print("KERNEL_OK")
</pallas_src>

<mosaic_0001>
module attributes {stable_mosaic.version = 11 : i64} {
  func.func @_c2dse_kernel(%arg0: i32, %arg1: memref<72xf32, #tpu.memory_space<smem>>, %arg2: memref<8xf32, #tpu.memory_space<smem>>, %arg3: memref<72xf32, #tpu.memory_space<smem>>, %arg4: memref<1xf32, #tpu.memory_space<smem>>, %arg5: memref<8x8x16x128xf32, #tpu.memory_space<vmem>>, %arg6: memref<8x8x16x128xf32, #tpu.memory_space<vmem>>) attributes {dimension_semantics = [#tpu.dimension_semantics<parallel>], iteration_bounds = array<i64: 2>, scalar_prefetch = 4 : i64, scratch_operands = 0 : i64, tpu.core_type = #tpu.core_type<tc>, window_params = [{transform_indices = @transform_0, window_bounds = array<i64: 8, 8, 16, 128>}, {transform_indices = @transform_1, window_bounds = array<i64: 8, 8, 16, 128>}]} {
    %0 = tpu.iota {dimensions = array<i32: 0>} : vector<32x128xi32>
    %c8_i32 = arith.constant 8 : i32
    %c0_i32 = arith.constant 0 : i32
    %1 = arith.cmpi eq, %c8_i32, %c0_i32 : i32
    %c1_i32 = arith.constant 1 : i32
    %2 = arith.select %1, %c1_i32, %c8_i32 : i32
    %3 = vector.broadcast %2 : i32 to vector<32x128xi32>
    %4 = arith.remsi %0, %3 : vector<32x128xi32>
    %c0_i32_0 = arith.constant 0 : i32
    %5 = vector.broadcast %c0_i32_0 : i32 to vector<32x128xi32>
    %6 = arith.cmpi ne, %4, %5 : vector<32x128xi32>
    %c0_i32_1 = arith.constant 0 : i32
    %7 = vector.broadcast %c0_i32_1 : i32 to vector<32x128xi32>
    %8 = arith.cmpi slt, %4, %7 : vector<32x128xi32>
    %c0_i32_2 = arith.constant 0 : i32
    %9 = arith.cmpi slt, %2, %c0_i32_2 : i32
    %10 = vector.broadcast %9 : i1 to vector<32x128xi1>
    %11 = vector.broadcast %10 : vector<32x128xi1> to vector<32x128xi1>
    %12 = arith.xori %8, %11 : vector<32x128xi1>
    %13 = arith.andi %12, %6 : vector<32x128xi1>
    %14 = vector.broadcast %2 : i32 to vector<32x128xi32>
    %15 = arith.addi %4, %14 : vector<32x128xi32>
    %16 = arith.select %13, %15, %4 : vector<32x128xi1>, vector<32x128xi32>
    %17 = tpu.iota {dimensions = array<i32: 1>} : vector<32x128xi32>
    %c0_i32_3 = arith.constant 0 : i32
    %18 = vector.broadcast %c0_i32_3 : i32 to vector<32x128xi32>
    %19 = arith.cmpi sgt, %16, %18 : vector<32x128xi32>
    %c7_i32 = arith.constant 7 : i32
    %20 = vector.broadcast %c7_i32 : i32 to vector<32x128xi32>
    %21 = arith.cmpi slt, %16, %20 : vector<32x128xi32>
    %c0_i32_4 = arith.constant 0 : i32
    %22 = vector.broadcast %c0_i32_4 : i32 to vector<32x128xi32>
    %23 = arith.cmpi sgt, %17, %22 : vector<32x128xi32>
    %c127_i32 = arith.constant 127 : i32
    %24 = vector.broadcast %c127_i32 : i32 to vector<32x128xi32>
    %25 = arith.cmpi slt, %17, %24 : vector<32x128xi32>
    %26 = arith.andi %19, %23 : vector<32x128xi1>
    %27 = arith.andi %19, %25 : vector<32x128xi1>
    %28 = arith.andi %21, %23 : vector<32x128xi1>
    %29 = arith.andi %21, %25 : vector<32x128xi1>
    %c0_i32_5 = arith.constant 0 : i32
    %c2_i32 = arith.constant 2 : i32
    %30 = arith.addi %c0_i32_5, %c2_i32 : i32
    %c1_i32_6 = arith.constant 1 : i32
    scf.for %arg7 = %c0_i32_5 to %30 step %c1_i32_6  : i32 {
      %c4_i32 = arith.constant 4 : i32
      %31 = arith.muli %arg7, %c4_i32 : i32
      %32 = tpu.assume_multiple %31, 4 : i32
      %33 = arith.index_cast %32 : i32 to index
      %c0 = arith.constant 0 : index
      %c0_8 = arith.constant 0 : index
      %c0_9 = arith.constant 0 : index
      %34 = vector.load %arg5[%33, %c0, %c0_8, %c0_9] : memref<8x8x16x128xf32, #tpu.memory_space<vmem>>, vector<4x8x16x128xf32>
      %35 = vector.shape_cast %34 : vector<4x8x16x128xf32> to vector<32x16x128xf32>
      %cst = arith.constant dense<0.000000e+00> : vector<32x128xf32>
      %36 = vector.multi_reduction <add>, %35, %cst [1] : vector<32x16x128xf32> to vector<32x128xf32>
      %cst_10 = arith.constant 6.250000e-02 : f32
      %37 = vector.broadcast %cst_10 : f32 to vector<32x128xf32>
      %38 = arith.mulf %36, %37 : vector<32x128xf32>
      %39 = vector.shape_cast %38 : vector<32x128xf32> to vector<32x1x128xf32>
      %40 = vector.broadcast %39 : vector<32x1x128xf32> to vector<32x16x128xf32>
      %41 = arith.subf %35, %40 : vector<32x16x128xf32>
      %42 = arith.mulf %41, %41 : vector<32x16x128xf32>
      %cst_11 = arith.constant dense<0.000000e+00> : vector<32x128xf32>
      %43 = vector.multi_reduction <add>, %42, %cst_11 [1] : vector<32x16x128xf32> to vector<32x128xf32>
      %cst_12 = arith.constant 6.250000e-02 : f32
      %44 = vector.broadcast %cst_12 : f32 to vector<32x128xf32>
      %45 = arith.mulf %43, %44 : vector<32x128xf32>
      %46 = math.sqrt %45 : vector<32x128xf32>
      %c1_i32_13 = arith.constant 1 : i32
      %47 = tpu.dynamic_rotate %46 by %c1_i32_13 dim 0 : vector<32x128xf32>, i32 -> vector<32x128xf32>
      %c1_i32_14 = arith.constant 1 : i32
      %48 = tpu.dynamic_rotate %47 by %c1_i32_14 dim 1 : vector<32x128xf32>, i32 -> vector<32x128xf32>
      %cst_15 = arith.constant 0.000000e+00 : f32
      %49 = vector.broadcast %cst_15 : f32 to vector<32x128xf32>
      %50 = arith.select %26, %48, %49 : vector<32x128xi1>, vector<32x128xf32>
      %c0_16 = arith.constant 0 : index
      %51 = memref.load %arg1[%c0_16] : memref<72xf32, #tpu.memory_space<smem>>
      %52 = vector.broadcast %51 : f32 to vector<32x128xf32>
      %53 = arith.mulf %52, %50 : vector<32x128xf32>
      %c9 = arith.constant 9 : index
      %54 = memref.load %arg1[%c9] : memref<72xf32, #tpu.memory_space<smem>>
      %55 = vector.broadcast %54 : f32 to vector<32x128xf32>
      %56 = arith.mulf %55, %50 : vector<32x128xf32>
      %c18 = arith.constant 18 : index
      %57 = memref.load %arg1[%c18] : memref<72xf32, #tpu.memory_space<smem>>
      %58 = vector.broadcast %57 : f32 to vector<32x128xf32>
      %59 = arith.mulf %58, %50 : vector<32x128xf32>
      %c27 = arith.constant 27 : index
      %60 = memref.load %arg1[%c27] : memref<72xf32, #tpu.memory_space<smem>>
      %61 = vector.broadcast %60 : f32 to vector<32x128xf32>
      %62 = arith.mulf %61, %50 : vector<32x128xf32>
      %c36 = arith.constant 36 : index
      %63 = memref.load %arg1[%c36] : memref<72xf32, #tpu.memory_space<smem>>
      %64 = vector.broadcast %63 : f32 to vector<32x128xf32>
      %65 = arith.mulf %64, %50 : vector<32x128xf32>
      %c45 = arith.constant 45 : index
      %66 = memref.load %arg1[%c45] : memref<72xf32, #tpu.memory_space<smem>>
      %67 = vector.broadcast %66 : f32 to vector<32x128xf32>
      %68 = arith.mulf %67, %50 : vector<32x128xf32>
      %c54 = arith.constant 54 : index
      %69 = memref.load %arg1[%c54] : memref<72xf32, #tpu.memory_space<smem>>
      %70 = vector.broadcast %69 : f32 to vector<32x128xf32>
      %71 = arith.mulf %70, %50 : vector<32x128xf32>
      %c63 = arith.constant 63 : index
      %72 = memref.load %arg1[%c63] : memref<72xf32, #tpu.memory_space<smem>>
      %73 = vector.broadcast %72 : f32 to vector<32x128xf32>
      %74 = arith.mulf %73, %50 : vector<32x128xf32>
      %c1_i32_17 = arith.constant 1 : i32
      %75 = tpu.dynamic_rotate %46 by %c1_i32_17 dim 0 : vector<32x128xf32>, i32 -> vector<32x128xf32>
      %cst_18 = arith.constant 0.000000e+00 : f32
      %76 = vector.broadcast %cst_18 : f32 to vector<32x128xf32>
      %77 = arith.select %19, %75, %76 : vector<32x128xi1>, vector<32x128xf32>
      %c1 = arith.constant 1 : index
      %78 = memref.load %arg1[%c1] : memref<72xf32, #tpu.memory_space<smem>>
      %79 = vector.broadcast %78 : f32 to vector<32x128xf32>
      %80 = arith.mulf %79, %77 : vector<32x128xf32>
      %81 = arith.addf %53, %80 : vector<32x128xf32>
      %c10 = arith.constant 10 : index
      %82 = memref.load %arg1[%c10] : memref<72xf32, #tpu.memory_space<smem>>
      %83 = vector.broadcast %82 : f32 to vector<32x128xf32>
      %84 = arith.mulf %83, %77 : vector<32x128xf32>
      %85 = arith.addf %56, %84 : vector<32x128xf32>
      %c19 = arith.constant 19 : index
      %86 = memref.load %arg1[%c19] : memref<72xf32, #tpu.memory_space<smem>>
      %87 = vector.broadcast %86 : f32 to vector<32x128xf32>
      %88 = arith.mulf %87, %77 : vector<32x128xf32>
      %89 = arith.addf %59, %88 : vector<32x128xf32>
      %c28 = arith.constant 28 : index
      %90 = memref.load %arg1[%c28] : memref<72xf32, #tpu.memory_space<smem>>
      %91 = vector.broadcast %90 : f32 to vector<32x128xf32>
      %92 = arith.mulf %91, %77 : vector<32x128xf32>
      %93 = arith.addf %62, %92 : vector<32x128xf32>
      %c37 = arith.constant 37 : index
      %94 = memref.load %arg1[%c37] : memref<72xf32, #tpu.memory_space<smem>>
      %95 = vector.broadcast %94 : f32 to vector<32x128xf32>
      %96 = arith.mulf %95, %77 : vector<32x128xf32>
      %97 = arith.addf %65, %96 : vector<32x128xf32>
      %c46 = arith.constant 46 : index
      %98 = memref.load %arg1[%c46] : memref<72xf32, #tpu.memory_space<smem>>
      %99 = vector.broadcast %98 : f32 to vector<32x128xf32>
      %100 = arith.mulf %99, %77 : vector<32x128xf32>
      %101 = arith.addf %68, %100 : vector<32x128xf32>
      %c55 = arith.constant 55 : index
      %102 = memref.load %arg1[%c55] : memref<72xf32, #tpu.memory_space<smem>>
      %103 = vector.broadcast %102 : f32 to vector<32x128xf32>
      %104 = arith.mulf %103, %77 : vector<32x128xf32>
      %105 = arith.addf %71, %104 : vector<32x128xf32>
      %c64 = arith.constant 64 : index
      %106 = memref.load %arg1[%c64] : memref<72xf32, #tpu.memory_space<smem>>
      %107 = vector.broadcast %106 : f32 to vector<32x128xf32>
      %108 = arith.mulf %107, %77 : vector<32x128xf32>
      %109 = arith.addf %74, %108 : vector<32x128xf32>
      %c1_i32_19 = arith.constant 1 : i32
      %110 = tpu.dynamic_rotate %46 by %c1_i32_19 dim 0 : vector<32x128xf32>, i32 -> vector<32x128xf32>
      %c127_i32_20 = arith.constant 127 : i32
      %111 = tpu.dynamic_rotate %110 by %c127_i32_20 dim 1 : vector<32x128xf32>, i32 -> vector<32x128xf32>
      %cst_21 = arith.constant 0.000000e+00 : f32
      %112 = vector.broadcast %cst_21 : f32 to vector<32x128xf32>
      %113 = arith.select %27, %111, %112 : vector<32x128xi1>, vector<32x128xf32>
      %c2 = arith.constant 2 : index
      %114 = memref.load %arg1[%c2] : memref<72xf32, #tpu.memory_space<smem>>
      %115 = vector.broadcast %114 : f32 to vector<32x128xf32>
      %116 = arith.mulf %115, %113 : vector<32x128xf32>
      %117 = arith.addf %81, %116 : vector<32x128xf32>
      %c11 = arith.constant 11 : index
      %118 = memref.load %arg1[%c11] : memref<72xf32, #tpu.memory_space<smem>>
      %119 = vector.broadcast %118 : f32 to vector<32x128xf32>
      %120 = arith.mulf %119, %113 : vector<32x128xf32>
      %121 = arith.addf %85, %120 : vector<32x128xf32>
      %c20 = arith.constant 20 : index
      %122 = memref.load %arg1[%c20] : memref<72xf32, #tpu.memory_space<smem>>
      %123 = vector.broadcast %122 : f32 to vector<32x128xf32>
      %124 = arith.mulf %123, %113 : vector<32x128xf32>
      %125 = arith.addf %89, %124 : vector<32x128xf32>
      %c29 = arith.constant 29 : index
      %126 = memref.load %arg1[%c29] : memref<72xf32, #tpu.memory_space<smem>>
      %127 = vector.broadcast %126 : f32 to vector<32x128xf32>
      %128 = arith.mulf %127, %113 : vector<32x128xf32>
      %129 = arith.addf %93, %128 : vector<32x128xf32>
      %c38 = arith.constant 38 : index
      %130 = memref.load %arg1[%c38] : memref<72xf32, #tpu.memory_space<smem>>
      %131 = vector.broadcast %130 : f32 to vector<32x128xf32>
      %132 = arith.mulf %131, %113 : vector<32x128xf32>
      %133 = arith.addf %97, %132 : vector<32x128xf32>
      %c47 = arith.constant 47 : index
      %134 = memref.load %arg1[%c47] : memref<72xf32, #tpu.memory_space<smem>>
      %135 = vector.broadcast %134 : f32 to vector<32x128xf32>
      %136 = arith.mulf %135, %113 : vector<32x128xf32>
      %137 = arith.addf %101, %136 : vector<32x128xf32>
      %c56 = arith.constant 56 : index
      %138 = memref.load %arg1[%c56] : memref<72xf32, #tpu.memory_space<smem>>
      %139 = vector.broadcast %138 : f32 to vector<32x128xf32>
      %140 = arith.mulf %139, %113 : vector<32x128xf32>
      %141 = arith.addf %105, %140 : vector<32x128xf32>
      %c65 = arith.constant 65 : index
      %142 = memref.load %arg1[%c65] : memref<72xf32, #tpu.memory_space<smem>>
      %143 = vector.broadcast %142 : f32 to vector<32x128xf32>
      %144 = arith.mulf %143, %113 : vector<32x128xf32>
      %145 = arith.addf %109, %144 : vector<32x128xf32>
      %c1_i32_22 = arith.constant 1 : i32
      %146 = tpu.dynamic_rotate %46 by %c1_i32_22 dim 1 : vector<32x128xf32>, i32 -> vector<32x128xf32>
      %cst_23 = arith.constant 0.000000e+00 : f32
      %147 = vector.broadcast %cst_23 : f32 to vector<32x128xf32>
      %148 = arith.select %23, %146, %147 : vector<32x128xi1>, vector<32x128xf32>
      %c3 = arith.constant 3 : index
      %149 = memref.load %arg1[%c3] : memref<72xf32, #tpu.memory_space<smem>>
      %150 = vector.broadcast %149 : f32 to vector<32x128xf32>
      %151 = arith.mulf %150, %148 : vector<32x128xf32>
      %152 = arith.addf %117, %151 : vector<32x128xf32>
      %c12 = arith.constant 12 : index
      %153 = memref.load %arg1[%c12] : memref<72xf32, #tpu.memory_space<smem>>
      %154 = vector.broadcast %153 : f32 to vector<32x128xf32>
      %155 = arith.mulf %154, %148 : vector<32x128xf32>
      %156 = arith.addf %121, %155 : vector<32x128xf32>
      %c21 = arith.constant 21 : index
      %157 = memref.load %arg1[%c21] : memref<72xf32, #tpu.memory_space<smem>>
      %158 = vector.broadcast %157 : f32 to vector<32x128xf32>
      %159 = arith.mulf %158, %148 : vector<32x128xf32>
      %160 = arith.addf %125, %159 : vector<32x128xf32>
      %c30 = arith.constant 30 : index
      %161 = memref.load %arg1[%c30] : memref<72xf32, #tpu.memory_space<smem>>
      %162 = vector.broadcast %161 : f32 to vector<32x128xf32>
      %163 = arith.mulf %162, %148 : vector<32x128xf32>
      %164 = arith.addf %129, %163 : vector<32x128xf32>
      %c39 = arith.constant 39 : index
      %165 = memref.load %arg1[%c39] : memref<72xf32, #tpu.memory_space<smem>>
      %166 = vector.broadcast %165 : f32 to vector<32x128xf32>
      %167 = arith.mulf %166, %148 : vector<32x128xf32>
      %168 = arith.addf %133, %167 : vector<32x128xf32>
      %c48 = arith.constant 48 : index
      %169 = memref.load %arg1[%c48] : memref<72xf32, #tpu.memory_space<smem>>
      %170 = vector.broadcast %169 : f32 to vector<32x128xf32>
      %171 = arith.mulf %170, %148 : vector<32x128xf32>
      %172 = arith.addf %137, %171 : vector<32x128xf32>
      %c57 = arith.constant 57 : index
      %173 = memref.load %arg1[%c57] : memref<72xf32, #tpu.memory_space<smem>>
      %174 = vector.broadcast %173 : f32 to vector<32x128xf32>
      %175 = arith.mulf %174, %148 : vector<32x128xf32>
      %176 = arith.addf %141, %175 : vector<32x128xf32>
      %c66 = arith.constant 66 : index
      %177 = memref.load %arg1[%c66] : memref<72xf32, #tpu.memory_space<smem>>
      %178 = vector.broadcast %177 : f32 to vector<32x128xf32>
      %179 = arith.mulf %178, %148 : vector<32x128xf32>
      %180 = arith.addf %145, %179 : vector<32x128xf32>
      %c4 = arith.constant 4 : index
      %181 = memref.load %arg1[%c4] : memref<72xf32, #tpu.memory_space<smem>>
      %182 = vector.broadcast %181 : f32 to vector<32x128xf32>
      %183 = arith.mulf %182, %46 : vector<32x128xf32>
      %184 = arith.addf %152, %183 : vector<32x128xf32>
      %c13 = arith.constant 13 : index
      %185 = memref.load %arg1[%c13] : memref<72xf32, #tpu.memory_space<smem>>
      %186 = vector.broadcast %185 : f32 to vector<32x128xf32>
      %187 = arith.mulf %186, %46 : vector<32x128xf32>
      %188 = arith.addf %156, %187 : vector<32x128xf32>
      %c22 = arith.constant 22 : index
      %189 = memref.load %arg1[%c22] : memref<72xf32, #tpu.memory_space<smem>>
      %190 = vector.broadcast %189 : f32 to vector<32x128xf32>
      %191 = arith.mulf %190, %46 : vector<32x128xf32>
      %192 = arith.addf %160, %191 : vector<32x128xf32>
      %c31 = arith.constant 31 : index
      %193 = memref.load %arg1[%c31] : memref<72xf32, #tpu.memory_space<smem>>
      %194 = vector.broadcast %193 : f32 to vector<32x128xf32>
      %195 = arith.mulf %194, %46 : vector<32x128xf32>
      %196 = arith.addf %164, %195 : vector<32x128xf32>
      %c40 = arith.constant 40 : index
      %197 = memref.load %arg1[%c40] : memref<72xf32, #tpu.memory_space<smem>>
      %198 = vector.broadcast %197 : f32 to vector<32x128xf32>
      %199 = arith.mulf %198, %46 : vector<32x128xf32>
      %200 = arith.addf %168, %199 : vector<32x128xf32>
      %c49 = arith.constant 49 : index
      %201 = memref.load %arg1[%c49] : memref<72xf32, #tpu.memory_space<smem>>
      %202 = vector.broadcast %201 : f32 to vector<32x128xf32>
      %203 = arith.mulf %202, %46 : vector<32x128xf32>
      %204 = arith.addf %172, %203 : vector<32x128xf32>
      %c58 = arith.constant 58 : index
      %205 = memref.load %arg1[%c58] : memref<72xf32, #tpu.memory_space<smem>>
      %206 = vector.broadcast %205 : f32 to vector<32x128xf32>
      %207 = arith.mulf %206, %46 : vector<32x128xf32>
      %208 = arith.addf %176, %207 : vector<32x128xf32>
      %c67 = arith.constant 67 : index
      %209 = memref.load %arg1[%c67] : memref<72xf32, #tpu.memory_space<smem>>
      %210 = vector.broadcast %209 : f32 to vector<32x128xf32>
      %211 = arith.mulf %210, %46 : vector<32x128xf32>
      %212 = arith.addf %180, %211 : vector<32x128xf32>
      %c127_i32_24 = arith.constant 127 : i32
      %213 = tpu.dynamic_rotate %46 by %c127_i32_24 dim 1 : vector<32x128xf32>, i32 -> vector<32x128xf32>
      %cst_25 = arith.constant 0.000000e+00 : f32
      %214 = vector.broadcast %cst_25 : f32 to vector<32x128xf32>
      %215 = arith.select %25, %213, %214 : vector<32x128xi1>, vector<32x128xf32>
      %c5 = arith.constant 5 : index
      %216 = memref.load %arg1[%c5] : memref<72xf32, #tpu.memory_space<smem>>
      %217 = vector.broadcast %216 : f32 to vector<32x128xf32>
      %218 = arith.mulf %217, %215 : vector<32x128xf32>
      %219 = arith.addf %184, %218 : vector<32x128xf32>
      %c14 = arith.constant 14 : index
      %220 = memref.load %arg1[%c14] : memref<72xf32, #tpu.memory_space<smem>>
      %221 = vector.broadcast %220 : f32 to vector<32x128xf32>
      %222 = arith.mulf %221, %215 : vector<32x128xf32>
      %223 = arith.addf %188, %222 : vector<32x128xf32>
      %c23 = arith.constant 23 : index
      %224 = memref.load %arg1[%c23] : memref<72xf32, #tpu.memory_space<smem>>
      %225 = vector.broadcast %224 : f32 to vector<32x128xf32>
      %226 = arith.mulf %225, %215 : vector<32x128xf32>
      %227 = arith.addf %192, %226 : vector<32x128xf32>
      %c32 = arith.constant 32 : index
      %228 = memref.load %arg1[%c32] : memref<72xf32, #tpu.memory_space<smem>>
      %229 = vector.broadcast %228 : f32 to vector<32x128xf32>
      %230 = arith.mulf %229, %215 : vector<32x128xf32>
      %231 = arith.addf %196, %230 : vector<32x128xf32>
      %c41 = arith.constant 41 : index
      %232 = memref.load %arg1[%c41] : memref<72xf32, #tpu.memory_space<smem>>
      %233 = vector.broadcast %232 : f32 to vector<32x128xf32>
      %234 = arith.mulf %233, %215 : vector<32x128xf32>
      %235 = arith.addf %200, %234 : vector<32x128xf32>
      %c50 = arith.constant 50 : index
      %236 = memref.load %arg1[%c50] : memref<72xf32, #tpu.memory_space<smem>>
      %237 = vector.broadcast %236 : f32 to vector<32x128xf32>
      %238 = arith.mulf %237, %215 : vector<32x128xf32>
      %239 = arith.addf %204, %238 : vector<32x128xf32>
      %c59 = arith.constant 59 : index
      %240 = memref.load %arg1[%c59] : memref<72xf32, #tpu.memory_space<smem>>
      %241 = vector.broadcast %240 : f32 to vector<32x128xf32>
      %242 = arith.mulf %241, %215 : vector<32x128xf32>
      %243 = arith.addf %208, %242 : vector<32x128xf32>
      %c68 = arith.constant 68 : index
      %244 = memref.load %arg1[%c68] : memref<72xf32, #tpu.memory_space<smem>>
      %245 = vector.broadcast %244 : f32 to vector<32x128xf32>
      %246 = arith.mulf %245, %215 : vector<32x128xf32>
      %247 = arith.addf %212, %246 : vector<32x128xf32>
      %c31_i32 = arith.constant 31 : i32
      %248 = tpu.dynamic_rotate %46 by %c31_i32 dim 0 : vector<32x128xf32>, i32 -> vector<32x128xf32>
      %c1_i32_26 = arith.constant 1 : i32
      %249 = tpu.dynamic_rotate %248 by %c1_i32_26 dim 1 : vector<32x128xf32>, i32 -> vector<32x128xf32>
      %cst_27 = arith.constant 0.000000e+00 : f32
      %250 = vector.broadcast %cst_27 : f32 to vector<32x128xf32>
      %251 = arith.select %28, %249, %250 : vector<32x128xi1>, vector<32x128xf32>
      %c6 = arith.constant 6 : index
      %252 = memref.load %arg1[%c6] : memref<72xf32, #tpu.memory_space<smem>>
      %253 = vector.broadcast %252 : f32 to vector<32x128xf32>
      %254 = arith.mulf %253, %251 : vector<32x128xf32>
      %255 = arith.addf %219, %254 : vector<32x128xf32>
      %c15 = arith.constant 15 : index
      %256 = memref.load %arg1[%c15] : memref<72xf32, #tpu.memory_space<smem>>
      %257 = vector.broadcast %256 : f32 to vector<32x128xf32>
      %258 = arith.mulf %257, %251 : vector<32x128xf32>
      %259 = arith.addf %223, %258 : vector<32x128xf32>
      %c24 = arith.constant 24 : index
      %260 = memref.load %arg1[%c24] : memref<72xf32, #tpu.memory_space<smem>>
      %261 = vector.broadcast %260 : f32 to vector<32x128xf32>
      %262 = arith.mulf %261, %251 : vector<32x128xf32>
      %263 = arith.addf %227, %262 : vector<32x128xf32>
      %c33 = arith.constant 33 : index
      %264 = memref.load %arg1[%c33] : memref<72xf32, #tpu.memory_space<smem>>
      %265 = vector.broadcast %264 : f32 to vector<32x128xf32>
      %266 = arith.mulf %265, %251 : vector<32x128xf32>
      %267 = arith.addf %231, %266 : vector<32x128xf32>
      %c42 = arith.constant 42 : index
      %268 = memref.load %arg1[%c42] : memref<72xf32, #tpu.memory_space<smem>>
      %269 = vector.broadcast %268 : f32 to vector<32x128xf32>
      %270 = arith.mulf %269, %251 : vector<32x128xf32>
      %271 = arith.addf %235, %270 : vector<32x128xf32>
      %c51 = arith.constant 51 : index
      %272 = memref.load %arg1[%c51] : memref<72xf32, #tpu.memory_space<smem>>
      %273 = vector.broadcast %272 : f32 to vector<32x128xf32>
      %274 = arith.mulf %273, %251 : vector<32x128xf32>
      %275 = arith.addf %239, %274 : vector<32x128xf32>
      %c60 = arith.constant 60 : index
      %276 = memref.load %arg1[%c60] : memref<72xf32, #tpu.memory_space<smem>>
      %277 = vector.broadcast %276 : f32 to vector<32x128xf32>
      %278 = arith.mulf %277, %251 : vector<32x128xf32>
      %279 = arith.addf %243, %278 : vector<32x128xf32>
      %c69 = arith.constant 69 : index
      %280 = memref.load %arg1[%c69] : memref<72xf32, #tpu.memory_space<smem>>
      %281 = vector.broadcast %280 : f32 to vector<32x128xf32>
      %282 = arith.mulf %281, %251 : vector<32x128xf32>
      %283 = arith.addf %247, %282 : vector<32x128xf32>
      %c31_i32_28 = arith.constant 31 : i32
      %284 = tpu.dynamic_rotate %46 by %c31_i32_28 dim 0 : vector<32x128xf32>, i32 -> vector<32x128xf32>
      %cst_29 = arith.constant 0.000000e+00 : f32
      %285 = vector.broadcast %cst_29 : f32 to vector<32x128xf32>
      %286 = arith.select %21, %284, %285 : vector<32x128xi1>, vector<32x128xf32>
      %c7 = arith.constant 7 : index
      %287 = memref.load %arg1[%c7] : memref<72xf32, #tpu.memory_space<smem>>
      %288 = vector.broadcast %287 : f32 to vector<32x128xf32>
      %289 = arith.mulf %288, %286 : vector<32x128xf32>
      %290 = arith.addf %255, %289 : vector<32x128xf32>
      %c16 = arith.constant 16 : index
      %291 = memref.load %arg1[%c16] : memref<72xf32, #tpu.memory_space<smem>>
      %292 = vector.broadcast %291 : f32 to vector<32x128xf32>
      %293 = arith.mulf %292, %286 : vector<32x128xf32>
      %294 = arith.addf %259, %293 : vector<32x128xf32>
      %c25 = arith.constant 25 : index
      %295 = memref.load %arg1[%c25] : memref<72xf32, #tpu.memory_space<smem>>
      %296 = vector.broadcast %295 : f32 to vector<32x128xf32>
      %297 = arith.mulf %296, %286 : vector<32x128xf32>
      %298 = arith.addf %263, %297 : vector<32x128xf32>
      %c34 = arith.constant 34 : index
      %299 = memref.load %arg1[%c34] : memref<72xf32, #tpu.memory_space<smem>>
      %300 = vector.broadcast %299 : f32 to vector<32x128xf32>
      %301 = arith.mulf %300, %286 : vector<32x128xf32>
      %302 = arith.addf %267, %301 : vector<32x128xf32>
      %c43 = arith.constant 43 : index
      %303 = memref.load %arg1[%c43] : memref<72xf32, #tpu.memory_space<smem>>
      %304 = vector.broadcast %303 : f32 to vector<32x128xf32>
      %305 = arith.mulf %304, %286 : vector<32x128xf32>
      %306 = arith.addf %271, %305 : vector<32x128xf32>
      %c52 = arith.constant 52 : index
      %307 = memref.load %arg1[%c52] : memref<72xf32, #tpu.memory_space<smem>>
      %308 = vector.broadcast %307 : f32 to vector<32x128xf32>
      %309 = arith.mulf %308, %286 : vector<32x128xf32>
      %310 = arith.addf %275, %309 : vector<32x128xf32>
      %c61 = arith.constant 61 : index
      %311 = memref.load %arg1[%c61] : memref<72xf32, #tpu.memory_space<smem>>
      %312 = vector.broadcast %311 : f32 to vector<32x128xf32>
      %313 = arith.mulf %312, %286 : vector<32x128xf32>
      %314 = arith.addf %279, %313 : vector<32x128xf32>
      %c70 = arith.constant 70 : index
      %315 = memref.load %arg1[%c70] : memref<72xf32, #tpu.memory_space<smem>>
      %316 = vector.broadcast %315 : f32 to vector<32x128xf32>
      %317 = arith.mulf %316, %286 : vector<32x128xf32>
      %318 = arith.addf %283, %317 : vector<32x128xf32>
      %c31_i32_30 = arith.constant 31 : i32
      %319 = tpu.dynamic_rotate %46 by %c31_i32_30 dim 0 : vector<32x128xf32>, i32 -> vector<32x128xf32>
      %c127_i32_31 = arith.constant 127 : i32
      %320 = tpu.dynamic_rotate %319 by %c127_i32_31 dim 1 : vector<32x128xf32>, i32 -> vector<32x128xf32>
      %cst_32 = arith.constant 0.000000e+00 : f32
      %321 = vector.broadcast %cst_32 : f32 to vector<32x128xf32>
      %322 = arith.select %29, %320, %321 : vector<32x128xi1>, vector<32x128xf32>
      %c8 = arith.constant 8 : index
      %323 = memref.load %arg1[%c8] : memref<72xf32, #tpu.memory_space<smem>>
      %324 = vector.broadcast %323 : f32 to vector<32x128xf32>
      %325 = arith.mulf %324, %322 : vector<32x128xf32>
      %326 = arith.addf %290, %325 : vector<32x128xf32>
      %c17 = arith.constant 17 : index
      %327 = memref.load %arg1[%c17] : memref<72xf32, #tpu.memory_space<smem>>
      %328 = vector.broadcast %327 : f32 to vector<32x128xf32>
      %329 = arith.mulf %328, %322 : vector<32x128xf32>
      %330 = arith.addf %294, %329 : vector<32x128xf32>
      %c26 = arith.constant 26 : index
      %331 = memref.load %arg1[%c26] : memref<72xf32, #tpu.memory_space<smem>>
      %332 = vector.broadcast %331 : f32 to vector<32x128xf32>
      %333 = arith.mulf %332, %322 : vector<32x128xf32>
      %334 = arith.addf %298, %333 : vector<32x128xf32>
      %c35 = arith.constant 35 : index
      %335 = memref.load %arg1[%c35] : memref<72xf32, #tpu.memory_space<smem>>
      %336 = vector.broadcast %335 : f32 to vector<32x128xf32>
      %337 = arith.mulf %336, %322 : vector<32x128xf32>
      %338 = arith.addf %302, %337 : vector<32x128xf32>
      %c44 = arith.constant 44 : index
      %339 = memref.load %arg1[%c44] : memref<72xf32, #tpu.memory_space<smem>>
      %340 = vector.broadcast %339 : f32 to vector<32x128xf32>
      %341 = arith.mulf %340, %322 : vector<32x128xf32>
      %342 = arith.addf %306, %341 : vector<32x128xf32>
      %c53 = arith.constant 53 : index
      %343 = memref.load %arg1[%c53] : memref<72xf32, #tpu.memory_space<smem>>
      %344 = vector.broadcast %343 : f32 to vector<32x128xf32>
      %345 = arith.mulf %344, %322 : vector<32x128xf32>
      %346 = arith.addf %310, %345 : vector<32x128xf32>
      %c62 = arith.constant 62 : index
      %347 = memref.load %arg1[%c62] : memref<72xf32, #tpu.memory_space<smem>>
      %348 = vector.broadcast %347 : f32 to vector<32x128xf32>
      %349 = arith.mulf %348, %322 : vector<32x128xf32>
      %350 = arith.addf %314, %349 : vector<32x128xf32>
      %c71 = arith.constant 71 : index
      %351 = memref.load %arg1[%c71] : memref<72xf32, #tpu.memory_space<smem>>
      %352 = vector.broadcast %351 : f32 to vector<32x128xf32>
      %353 = arith.mulf %352, %322 : vector<32x128xf32>
      %354 = arith.addf %318, %353 : vector<32x128xf32>
      %c0_33 = arith.constant 0 : index
      %355 = memref.load %arg2[%c0_33] : memref<8xf32, #tpu.memory_space<smem>>
      %356 = vector.broadcast %355 : f32 to vector<32x128xf32>
      %357 = arith.addf %326, %356 : vector<32x128xf32>
      %cst_34 = arith.constant 0.000000e+00 : f32
      %358 = vector.broadcast %cst_34 : f32 to vector<32x128xf32>
      %359 = arith.maximumf %357, %358 : vector<32x128xf32>
      %c1_35 = arith.constant 1 : index
      %360 = memref.load %arg2[%c1_35] : memref<8xf32, #tpu.memory_space<smem>>
      %361 = vector.broadcast %360 : f32 to vector<32x128xf32>
      %362 = arith.addf %330, %361 : vector<32x128xf32>
      %cst_36 = arith.constant 0.000000e+00 : f32
      %363 = vector.broadcast %cst_36 : f32 to vector<32x128xf32>
      %364 = arith.maximumf %362, %363 : vector<32x128xf32>
      %c2_37 = arith.constant 2 : index
      %365 = memref.load %arg2[%c2_37] : memref<8xf32, #tpu.memory_space<smem>>
      %366 = vector.broadcast %365 : f32 to vector<32x128xf32>
      %367 = arith.addf %334, %366 : vector<32x128xf32>
      %cst_38 = arith.constant 0.000000e+00 : f32
      %368 = vector.broadcast %cst_38 : f32 to vector<32x128xf32>
      %369 = arith.maximumf %367, %368 : vector<32x128xf32>
      %c3_39 = arith.constant 3 : index
      %370 = memref.load %arg2[%c3_39] : memref<8xf32, #tpu.memory_space<smem>>
      %371 = vector.broadcast %370 : f32 to vector<32x128xf32>
      %372 = arith.addf %338, %371 : vector<32x128xf32>
      %cst_40 = arith.constant 0.000000e+00 : f32
      %373 = vector.broadcast %cst_40 : f32 to vector<32x128xf32>
      %374 = arith.maximumf %372, %373 : vector<32x128xf32>
      %c4_41 = arith.constant 4 : index
      %375 = memref.load %arg2[%c4_41] : memref<8xf32, #tpu.memory_space<smem>>
      %376 = vector.broadcast %375 : f32 to vector<32x128xf32>
      %377 = arith.addf %342, %376 : vector<32x128xf32>
      %cst_42 = arith.constant 0.000000e+00 : f32
      %378 = vector.broadcast %cst_42 : f32 to vector<32x128xf32>
      %379 = arith.maximumf %377, %378 : vector<32x128xf32>
      %c5_43 = arith.constant 5 : index
      %380 = memref.load %arg2[%c5_43] : memref<8xf32, #tpu.memory_space<smem>>
      %381 = vector.broadcast %380 : f32 to vector<32x128xf32>
      %382 = arith.addf %346, %381 : vector<32x128xf32>
      %cst_44 = arith.constant 0.000000e+00 : f32
      %383 = vector.broadcast %cst_44 : f32 to vector<32x128xf32>
      %384 = arith.maximumf %382, %383 : vector<32x128xf32>
      %c6_45 = arith.constant 6 : index
      %385 = memref.load %arg2[%c6_45] : memref<8xf32, #tpu.memory_space<smem>>
      %386 = vector.broadcast %385 : f32 to vector<32x128xf32>
      %387 = arith.addf %350, %386 : vector<32x128xf32>
      %cst_46 = arith.constant 0.000000e+00 : f32
      %388 = vector.broadcast %cst_46 : f32 to vector<32x128xf32>
      %389 = arith.maximumf %387, %388 : vector<32x128xf32>
      %c7_47 = arith.constant 7 : index
      %390 = memref.load %arg2[%c7_47] : memref<8xf32, #tpu.memory_space<smem>>
      %391 = vector.broadcast %390 : f32 to vector<32x128xf32>
      %392 = arith.addf %354, %391 : vector<32x128xf32>
      %cst_48 = arith.constant 0.000000e+00 : f32
      %393 = vector.broadcast %cst_48 : f32 to vector<32x128xf32>
      %394 = arith.maximumf %392, %393 : vector<32x128xf32>
      %c0_49 = arith.constant 0 : index
      %395 = memref.load %arg3[%c0_49] : memref<72xf32, #tpu.memory_space<smem>>
      %396 = vector.broadcast %395 : f32 to vector<32x128xf32>
      %397 = arith.mulf %359, %396 : vector<32x128xf32>
      %c9_50 = arith.constant 9 : index
      %398 = memref.load %arg3[%c9_50] : memref<72xf32, #tpu.memory_space<smem>>
      %399 = vector.broadcast %398 : f32 to vector<32x128xf32>
      %400 = arith.mulf %364, %399 : vector<32x128xf32>
      %401 = arith.addf %397, %400 : vector<32x128xf32>
      %c18_51 = arith.constant 18 : index
      %402 = memref.load %arg3[%c18_51] : memref<72xf32, #tpu.memory_space<smem>>
      %403 = vector.broadcast %402 : f32 to vector<32x128xf32>
      %404 = arith.mulf %369, %403 : vector<32x128xf32>
      %405 = arith.addf %401, %404 : vector<32x128xf32>
      %c27_52 = arith.constant 27 : index
      %406 = memref.load %arg3[%c27_52] : memref<72xf32, #tpu.memory_space<smem>>
      %407 = vector.broadcast %406 : f32 to vector<32x128xf32>
      %408 = arith.mulf %374, %407 : vector<32x128xf32>
      %409 = arith.addf %405, %408 : vector<32x128xf32>
      %c36_53 = arith.constant 36 : index
      %410 = memref.load %arg3[%c36_53] : memref<72xf32, #tpu.memory_space<smem>>
      %411 = vector.broadcast %410 : f32 to vector<32x128xf32>
      %412 = arith.mulf %379, %411 : vector<32x128xf32>
      %413 = arith.addf %409, %412 : vector<32x128xf32>
      %c45_54 = arith.constant 45 : index
      %414 = memref.load %arg3[%c45_54] : memref<72xf32, #tpu.memory_space<smem>>
      %415 = vector.broadcast %414 : f32 to vector<32x128xf32>
      %416 = arith.mulf %384, %415 : vector<32x128xf32>
      %417 = arith.addf %413, %416 : vector<32x128xf32>
      %c54_55 = arith.constant 54 : index
      %418 = memref.load %arg3[%c54_55] : memref<72xf32, #tpu.memory_space<smem>>
      %419 = vector.broadcast %418 : f32 to vector<32x128xf32>
      %420 = arith.mulf %389, %419 : vector<32x128xf32>
      %421 = arith.addf %417, %420 : vector<32x128xf32>
      %c63_56 = arith.constant 63 : index
      %422 = memref.load %arg3[%c63_56] : memref<72xf32, #tpu.memory_space<smem>>
      %423 = vector.broadcast %422 : f32 to vector<32x128xf32>
      %424 = arith.mulf %394, %423 : vector<32x128xf32>
      %425 = arith.addf %421, %424 : vector<32x128xf32>
      %c1_i32_57 = arith.constant 1 : i32
      %426 = tpu.dynamic_rotate %425 by %c1_i32_57 dim 0 : vector<32x128xf32>, i32 -> vector<32x128xf32>
      %c1_i32_58 = arith.constant 1 : i32
      %427 = tpu.dynamic_rotate %426 by %c1_i32_58 dim 1 : vector<32x128xf32>, i32 -> vector<32x128xf32>
      %cst_59 = arith.constant 0.000000e+00 : f32
      %428 = vector.broadcast %cst_59 : f32 to vector<32x128xf32>
      %429 = arith.select %26, %427, %428 : vector<32x128xi1>, vector<32x128xf32>
      %c1_60 = arith.constant 1 : index
      %430 = memref.load %arg3[%c1_60] : memref<72xf32, #tpu.memory_space<smem>>
      %431 = vector.broadcast %430 : f32 to vector<32x128xf32>
      %432 = arith.mulf %359, %431 : vector<32x128xf32>
      %c10_61 = arith.constant 10 : index
      %433 = memref.load %arg3[%c10_61] : memref<72xf32, #tpu.memory_space<smem>>
      %434 = vector.broadcast %433 : f32 to vector<32x128xf32>
      %435 = arith.mulf %364, %434 : vector<32x128xf32>
      %436 = arith.addf %432, %435 : vector<32x128xf32>
      %c19_62 = arith.constant 19 : index
      %437 = memref.load %arg3[%c19_62] : memref<72xf32, #tpu.memory_space<smem>>
      %438 = vector.broadcast %437 : f32 to vector<32x128xf32>
      %439 = arith.mulf %369, %438 : vector<32x128xf32>
      %440 = arith.addf %436, %439 : vector<32x128xf32>
      %c28_63 = arith.constant 28 : index
      %441 = memref.load %arg3[%c28_63] : memref<72xf32, #tpu.memory_space<smem>>
      %442 = vector.broadcast %441 : f32 to vector<32x128xf32>
      %443 = arith.mulf %374, %442 : vector<32x128xf32>
      %444 = arith.addf %440, %443 : vector<32x128xf32>
      %c37_64 = arith.constant 37 : index
      %445 = memref.load %arg3[%c37_64] : memref<72xf32, #tpu.memory_space<smem>>
      %446 = vector.broadcast %445 : f32 to vector<32x128xf32>
      %447 = arith.mulf %379, %446 : vector<32x128xf32>
      %448 = arith.addf %444, %447 : vector<32x128xf32>
      %c46_65 = arith.constant 46 : index
      %449 = memref.load %arg3[%c46_65] : memref<72xf32, #tpu.memory_space<smem>>
      %450 = vector.broadcast %449 : f32 to vector<32x128xf32>
      %451 = arith.mulf %384, %450 : vector<32x128xf32>
      %452 = arith.addf %448, %451 : vector<32x128xf32>
      %c55_66 = arith.constant 55 : index
      %453 = memref.load %arg3[%c55_66] : memref<72xf32, #tpu.memory_space<smem>>
      %454 = vector.broadcast %453 : f32 to vector<32x128xf32>
      %455 = arith.mulf %389, %454 : vector<32x128xf32>
      %456 = arith.addf %452, %455 : vector<32x128xf32>
      %c64_67 = arith.constant 64 : index
      %457 = memref.load %arg3[%c64_67] : memref<72xf32, #tpu.memory_space<smem>>
      %458 = vector.broadcast %457 : f32 to vector<32x128xf32>
      %459 = arith.mulf %394, %458 : vector<32x128xf32>
      %460 = arith.addf %456, %459 : vector<32x128xf32>
      %c1_i32_68 = arith.constant 1 : i32
      %461 = tpu.dynamic_rotate %460 by %c1_i32_68 dim 0 : vector<32x128xf32>, i32 -> vector<32x128xf32>
      %cst_69 = arith.constant 0.000000e+00 : f32
      %462 = vector.broadcast %cst_69 : f32 to vector<32x128xf32>
      %463 = arith.select %19, %461, %462 : vector<32x128xi1>, vector<32x128xf32>
      %464 = arith.addf %429, %463 : vector<32x128xf32>
      %c2_70 = arith.constant 2 : index
      %465 = memref.load %arg3[%c2_70] : memref<72xf32, #tpu.memory_space<smem>>
      %466 = vector.broadcast %465 : f32 to vector<32x128xf32>
      %467 = arith.mulf %359, %466 : vector<32x128xf32>
      %c11_71 = arith.constant 11 : index
      %468 = memref.load %arg3[%c11_71] : memref<72xf32, #tpu.memory_space<smem>>
      %469 = vector.broadcast %468 : f32 to vector<32x128xf32>
      %470 = arith.mulf %364, %469 : vector<32x128xf32>
      %471 = arith.addf %467, %470 : vector<32x128xf32>
      %c20_72 = arith.constant 20 : index
      %472 = memref.load %arg3[%c20_72] : memref<72xf32, #tpu.memory_space<smem>>
      %473 = vector.broadcast %472 : f32 to vector<32x128xf32>
      %474 = arith.mulf %369, %473 : vector<32x128xf32>
      %475 = arith.addf %471, %474 : vector<32x128xf32>
      %c29_73 = arith.constant 29 : index
      %476 = memref.load %arg3[%c29_73] : memref<72xf32, #tpu.memory_space<smem>>
      %477 = vector.broadcast %476 : f32 to vector<32x128xf32>
      %478 = arith.mulf %374, %477 : vector<32x128xf32>
      %479 = arith.addf %475, %478 : vector<32x128xf32>
      %c38_74 = arith.constant 38 : index
      %480 = memref.load %arg3[%c38_74] : memref<72xf32, #tpu.memory_space<smem>>
      %481 = vector.broadcast %480 : f32 to vector<32x128xf32>
      %482 = arith.mulf %379, %481 : vector<32x128xf32>
      %483 = arith.addf %479, %482 : vector<32x128xf32>
      %c47_75 = arith.constant 47 : index
      %484 = memref.load %arg3[%c47_75] : memref<72xf32, #tpu.memory_space<smem>>
      %485 = vector.broadcast %484 : f32 to vector<32x128xf32>
      %486 = arith.mulf %384, %485 : vector<32x128xf32>
      %487 = arith.addf %483, %486 : vector<32x128xf32>
      %c56_76 = arith.constant 56 : index
      %488 = memref.load %arg3[%c56_76] : memref<72xf32, #tpu.memory_space<smem>>
      %489 = vector.broadcast %488 : f32 to vector<32x128xf32>
      %490 = arith.mulf %389, %489 : vector<32x128xf32>
      %491 = arith.addf %487, %490 : vector<32x128xf32>
      %c65_77 = arith.constant 65 : index
      %492 = memref.load %arg3[%c65_77] : memref<72xf32, #tpu.memory_space<smem>>
      %493 = vector.broadcast %492 : f32 to vector<32x128xf32>
      %494 = arith.mulf %394, %493 : vector<32x128xf32>
      %495 = arith.addf %491, %494 : vector<32x128xf32>
      %c1_i32_78 = arith.constant 1 : i32
      %496 = tpu.dynamic_rotate %495 by %c1_i32_78 dim 0 : vector<32x128xf32>, i32 -> vector<32x128xf32>
      %c127_i32_79 = arith.constant 127 : i32
      %497 = tpu.dynamic_rotate %496 by %c127_i32_79 dim 1 : vector<32x128xf32>, i32 -> vector<32x128xf32>
      %cst_80 = arith.constant 0.000000e+00 : f32
      %498 = vector.broadcast %cst_80 : f32 to vector<32x128xf32>
      %499 = arith.select %27, %497, %498 : vector<32x128xi1>, vector<32x128xf32>
      %500 = arith.addf %464, %499 : vector<32x128xf32>
      %c3_81 = arith.constant 3 : index
      %501 = memref.load %arg3[%c3_81] : memref<72xf32, #tpu.memory_space<smem>>
      %502 = vector.broadcast %501 : f32 to vector<32x128xf32>
      %503 = arith.mulf %359, %502 : vector<32x128xf32>
      %c12_82 = arith.constant 12 : index
      %504 = memref.load %arg3[%c12_82] : memref<72xf32, #tpu.memory_space<smem>>
      %505 = vector.broadcast %504 : f32 to vector<32x128xf32>
      %506 = arith.mulf %364, %505 : vector<32x128xf32>
      %507 = arith.addf %503, %506 : vector<32x128xf32>
      %c21_83 = arith.constant 21 : index
      %508 = memref.load %arg3[%c21_83] : memref<72xf32, #tpu.memory_space<smem>>
      %509 = vector.broadcast %508 : f32 to vector<32x128xf32>
      %510 = arith.mulf %369, %509 : vector<32x128xf32>
      %511 = arith.addf %507, %510 : vector<32x128xf32>
      %c30_84 = arith.constant 30 : index
      %512 = memref.load %arg3[%c30_84] : memref<72xf32, #tpu.memory_space<smem>>
      %513 = vector.broadcast %512 : f32 to vector<32x128xf32>
      %514 = arith.mulf %374, %513 : vector<32x128xf32>
      %515 = arith.addf %511, %514 : vector<32x128xf32>
      %c39_85 = arith.constant 39 : index
      %516 = memref.load %arg3[%c39_85] : memref<72xf32, #tpu.memory_space<smem>>
      %517 = vector.broadcast %516 : f32 to vector<32x128xf32>
      %518 = arith.mulf %379, %517 : vector<32x128xf32>
      %519 = arith.addf %515, %518 : vector<32x128xf32>
      %c48_86 = arith.constant 48 : index
      %520 = memref.load %arg3[%c48_86] : memref<72xf32, #tpu.memory_space<smem>>
      %521 = vector.broadcast %520 : f32 to vector<32x128xf32>
      %522 = arith.mulf %384, %521 : vector<32x128xf32>
      %523 = arith.addf %519, %522 : vector<32x128xf32>
      %c57_87 = arith.constant 57 : index
      %524 = memref.load %arg3[%c57_87] : memref<72xf32, #tpu.memory_space<smem>>
      %525 = vector.broadcast %524 : f32 to vector<32x128xf32>
      %526 = arith.mulf %389, %525 : vector<32x128xf32>
      %527 = arith.addf %523, %526 : vector<32x128xf32>
      %c66_88 = arith.constant 66 : index
      %528 = memref.load %arg3[%c66_88] : memref<72xf32, #tpu.memory_space<smem>>
      %529 = vector.broadcast %528 : f32 to vector<32x128xf32>
      %530 = arith.mulf %394, %529 : vector<32x128xf32>
      %531 = arith.addf %527, %530 : vector<32x128xf32>
      %c1_i32_89 = arith.constant 1 : i32
      %532 = tpu.dynamic_rotate %531 by %c1_i32_89 dim 1 : vector<32x128xf32>, i32 -> vector<32x128xf32>
      %cst_90 = arith.constant 0.000000e+00 : f32
      %533 = vector.broadcast %cst_90 : f32 to vector<32x128xf32>
      %534 = arith.select %23, %532, %533 : vector<32x128xi1>, vector<32x128xf32>
      %535 = arith.addf %500, %534 : vector<32x128xf32>
      %c4_91 = arith.constant 4 : index
      %536 = memref.load %arg3[%c4_91] : memref<72xf32, #tpu.memory_space<smem>>
      %537 = vector.broadcast %536 : f32 to vector<32x128xf32>
      %538 = arith.mulf %359, %537 : vector<32x128xf32>
      %c13_92 = arith.constant 13 : index
      %539 = memref.load %arg3[%c13_92] : memref<72xf32, #tpu.memory_space<smem>>
      %540 = vector.broadcast %539 : f32 to vector<32x128xf32>
      %541 = arith.mulf %364, %540 : vector<32x128xf32>
      %542 = arith.addf %538, %541 : vector<32x128xf32>
      %c22_93 = arith.constant 22 : index
      %543 = memref.load %arg3[%c22_93] : memref<72xf32, #tpu.memory_space<smem>>
      %544 = vector.broadcast %543 : f32 to vector<32x128xf32>
      %545 = arith.mulf %369, %544 : vector<32x128xf32>
      %546 = arith.addf %542, %545 : vector<32x128xf32>
      %c31_94 = arith.constant 31 : index
      %547 = memref.load %arg3[%c31_94] : memref<72xf32, #tpu.memory_space<smem>>
      %548 = vector.broadcast %547 : f32 to vector<32x128xf32>
      %549 = arith.mulf %374, %548 : vector<32x128xf32>
      %550 = arith.addf %546, %549 : vector<32x128xf32>
      %c40_95 = arith.constant 40 : index
      %551 = memref.load %arg3[%c40_95] : memref<72xf32, #tpu.memory_space<smem>>
      %552 = vector.broadcast %551 : f32 to vector<32x128xf32>
      %553 = arith.mulf %379, %552 : vector<32x128xf32>
      %554 = arith.addf %550, %553 : vector<32x128xf32>
      %c49_96 = arith.constant 49 : index
      %555 = memref.load %arg3[%c49_96] : memref<72xf32, #tpu.memory_space<smem>>
      %556 = vector.broadcast %555 : f32 to vector<32x128xf32>
      %557 = arith.mulf %384, %556 : vector<32x128xf32>
      %558 = arith.addf %554, %557 : vector<32x128xf32>
      %c58_97 = arith.constant 58 : index
      %559 = memref.load %arg3[%c58_97] : memref<72xf32, #tpu.memory_space<smem>>
      %560 = vector.broadcast %559 : f32 to vector<32x128xf32>
      %561 = arith.mulf %389, %560 : vector<32x128xf32>
      %562 = arith.addf %558, %561 : vector<32x128xf32>
      %c67_98 = arith.constant 67 : index
      %563 = memref.load %arg3[%c67_98] : memref<72xf32, #tpu.memory_space<smem>>
      %564 = vector.broadcast %563 : f32 to vector<32x128xf32>
      %565 = arith.mulf %394, %564 : vector<32x128xf32>
      %566 = arith.addf %562, %565 : vector<32x128xf32>
      %567 = arith.addf %535, %566 : vector<32x128xf32>
      %c5_99 = arith.constant 5 : index
      %568 = memref.load %arg3[%c5_99] : memref<72xf32, #tpu.memory_space<smem>>
      %569 = vector.broadcast %568 : f32 to vector<32x128xf32>
      %570 = arith.mulf %359, %569 : vector<32x128xf32>
      %c14_100 = arith.constant 14 : index
      %571 = memref.load %arg3[%c14_100] : memref<72xf32, #tpu.memory_space<smem>>
      %572 = vector.broadcast %571 : f32 to vector<32x128xf32>
      %573 = arith.mulf %364, %572 : vector<32x128xf32>
      %574 = arith.addf %570, %573 : vector<32x128xf32>
      %c23_101 = arith.constant 23 : index
      %575 = memref.load %arg3[%c23_101] : memref<72xf32, #tpu.memory_space<smem>>
      %576 = vector.broadcast %575 : f32 to vector<32x128xf32>
      %577 = arith.mulf %369, %576 : vector<32x128xf32>
      %578 = arith.addf %574, %577 : vector<32x128xf32>
      %c32_102 = arith.constant 32 : index
      %579 = memref.load %arg3[%c32_102] : memref<72xf32, #tpu.memory_space<smem>>
      %580 = vector.broadcast %579 : f32 to vector<32x128xf32>
      %581 = arith.mulf %374, %580 : vector<32x128xf32>
      %582 = arith.addf %578, %581 : vector<32x128xf32>
      %c41_103 = arith.constant 41 : index
      %583 = memref.load %arg3[%c41_103] : memref<72xf32, #tpu.memory_space<smem>>
      %584 = vector.broadcast %583 : f32 to vector<32x128xf32>
      %585 = arith.mulf %379, %584 : vector<32x128xf32>
      %586 = arith.addf %582, %585 : vector<32x128xf32>
      %c50_104 = arith.constant 50 : index
      %587 = memref.load %arg3[%c50_104] : memref<72xf32, #tpu.memory_space<smem>>
      %588 = vector.broadcast %587 : f32 to vector<32x128xf32>
      %589 = arith.mulf %384, %588 : vector<32x128xf32>
      %590 = arith.addf %586, %589 : vector<32x128xf32>
      %c59_105 = arith.constant 59 : index
      %591 = memref.load %arg3[%c59_105] : memref<72xf32, #tpu.memory_space<smem>>
      %592 = vector.broadcast %591 : f32 to vector<32x128xf32>
      %593 = arith.mulf %389, %592 : vector<32x128xf32>
      %594 = arith.addf %590, %593 : vector<32x128xf32>
      %c68_106 = arith.constant 68 : index
      %595 = memref.load %arg3[%c68_106] : memref<72xf32, #tpu.memory_space<smem>>
      %596 = vector.broadcast %595 : f32 to vector<32x128xf32>
      %597 = arith.mulf %394, %596 : vector<32x128xf32>
      %598 = arith.addf %594, %597 : vector<32x128xf32>
      %c127_i32_107 = arith.constant 127 : i32
      %599 = tpu.dynamic_rotate %598 by %c127_i32_107 dim 1 : vector<32x128xf32>, i32 -> vector<32x128xf32>
      %cst_108 = arith.constant 0.000000e+00 : f32
      %600 = vector.broadcast %cst_108 : f32 to vector<32x128xf32>
      %601 = arith.select %25, %599, %600 : vector<32x128xi1>, vector<32x128xf32>
      %602 = arith.addf %567, %601 : vector<32x128xf32>
      %c6_109 = arith.constant 6 : index
      %603 = memref.load %arg3[%c6_109] : memref<72xf32, #tpu.memory_space<smem>>
      %604 = vector.broadcast %603 : f32 to vector<32x128xf32>
      %605 = arith.mulf %359, %604 : vector<32x128xf32>
      %c15_110 = arith.constant 15 : index
      %606 = memref.load %arg3[%c15_110] : memref<72xf32, #tpu.memory_space<smem>>
      %607 = vector.broadcast %606 : f32 to vector<32x128xf32>
      %608 = arith.mulf %364, %607 : vector<32x128xf32>
      %609 = arith.addf %605, %608 : vector<32x128xf32>
      %c24_111 = arith.constant 24 : index
      %610 = memref.load %arg3[%c24_111] : memref<72xf32, #tpu.memory_space<smem>>
      %611 = vector.broadcast %610 : f32 to vector<32x128xf32>
      %612 = arith.mulf %369, %611 : vector<32x128xf32>
      %613 = arith.addf %609, %612 : vector<32x128xf32>
      %c33_112 = arith.constant 33 : index
      %614 = memref.load %arg3[%c33_112] : memref<72xf32, #tpu.memory_space<smem>>
      %615 = vector.broadcast %614 : f32 to vector<32x128xf32>
      %616 = arith.mulf %374, %615 : vector<32x128xf32>
      %617 = arith.addf %613, %616 : vector<32x128xf32>
      %c42_113 = arith.constant 42 : index
      %618 = memref.load %arg3[%c42_113] : memref<72xf32, #tpu.memory_space<smem>>
      %619 = vector.broadcast %618 : f32 to vector<32x128xf32>
      %620 = arith.mulf %379, %619 : vector<32x128xf32>
      %621 = arith.addf %617, %620 : vector<32x128xf32>
      %c51_114 = arith.constant 51 : index
      %622 = memref.load %arg3[%c51_114] : memref<72xf32, #tpu.memory_space<smem>>
      %623 = vector.broadcast %622 : f32 to vector<32x128xf32>
      %624 = arith.mulf %384, %623 : vector<32x128xf32>
      %625 = arith.addf %621, %624 : vector<32x128xf32>
      %c60_115 = arith.constant 60 : index
      %626 = memref.load %arg3[%c60_115] : memref<72xf32, #tpu.memory_space<smem>>
      %627 = vector.broadcast %626 : f32 to vector<32x128xf32>
      %628 = arith.mulf %389, %627 : vector<32x128xf32>
      %629 = arith.addf %625, %628 : vector<32x128xf32>
      %c69_116 = arith.constant 69 : index
      %630 = memref.load %arg3[%c69_116] : memref<72xf32, #tpu.memory_space<smem>>
      %631 = vector.broadcast %630 : f32 to vector<32x128xf32>
      %632 = arith.mulf %394, %631 : vector<32x128xf32>
      %633 = arith.addf %629, %632 : vector<32x128xf32>
      %c31_i32_117 = arith.constant 31 : i32
      %634 = tpu.dynamic_rotate %633 by %c31_i32_117 dim 0 : vector<32x128xf32>, i32 -> vector<32x128xf32>
      %c1_i32_118 = arith.constant 1 : i32
      %635 = tpu.dynamic_rotate %634 by %c1_i32_118 dim 1 : vector<32x128xf32>, i32 -> vector<32x128xf32>
      %cst_119 = arith.constant 0.000000e+00 : f32
      %636 = vector.broadcast %cst_119 : f32 to vector<32x128xf32>
      %637 = arith.select %28, %635, %636 : vector<32x128xi1>, vector<32x128xf32>
      %638 = arith.addf %602, %637 : vector<32x128xf32>
      %c7_120 = arith.constant 7 : index
      %639 = memref.load %arg3[%c7_120] : memref<72xf32, #tpu.memory_space<smem>>
      %640 = vector.broadcast %639 : f32 to vector<32x128xf32>
      %641 = arith.mulf %359, %640 : vector<32x128xf32>
      %c16_121 = arith.constant 16 : index
      %642 = memref.load %arg3[%c16_121] : memref<72xf32, #tpu.memory_space<smem>>
      %643 = vector.broadcast %642 : f32 to vector<32x128xf32>
      %644 = arith.mulf %364, %643 : vector<32x128xf32>
      %645 = arith.addf %641, %644 : vector<32x128xf32>
      %c25_122 = arith.constant 25 : index
      %646 = memref.load %arg3[%c25_122] : memref<72xf32, #tpu.memory_space<smem>>
      %647 = vector.broadcast %646 : f32 to vector<32x128xf32>
      %648 = arith.mulf %369, %647 : vector<32x128xf32>
      %649 = arith.addf %645, %648 : vector<32x128xf32>
      %c34_123 = arith.constant 34 : index
      %650 = memref.load %arg3[%c34_123] : memref<72xf32, #tpu.memory_space<smem>>
      %651 = vector.broadcast %650 : f32 to vector<32x128xf32>
      %652 = arith.mulf %374, %651 : vector<32x128xf32>
      %653 = arith.addf %649, %652 : vector<32x128xf32>
      %c43_124 = arith.constant 43 : index
      %654 = memref.load %arg3[%c43_124] : memref<72xf32, #tpu.memory_space<smem>>
      %655 = vector.broadcast %654 : f32 to vector<32x128xf32>
      %656 = arith.mulf %379, %655 : vector<32x128xf32>
      %657 = arith.addf %653, %656 : vector<32x128xf32>
      %c52_125 = arith.constant 52 : index
      %658 = memref.load %arg3[%c52_125] : memref<72xf32, #tpu.memory_space<smem>>
      %659 = vector.broadcast %658 : f32 to vector<32x128xf32>
      %660 = arith.mulf %384, %659 : vector<32x128xf32>
      %661 = arith.addf %657, %660 : vector<32x128xf32>
      %c61_126 = arith.constant 61 : index
      %662 = memref.load %arg3[%c61_126] : memref<72xf32, #tpu.memory_space<smem>>
      %663 = vector.broadcast %662 : f32 to vector<32x128xf32>
      %664 = arith.mulf %389, %663 : vector<32x128xf32>
      %665 = arith.addf %661, %664 : vector<32x128xf32>
      %c70_127 = arith.constant 70 : index
      %666 = memref.load %arg3[%c70_127] : memref<72xf32, #tpu.memory_space<smem>>
      %667 = vector.broadcast %666 : f32 to vector<32x128xf32>
      %668 = arith.mulf %394, %667 : vector<32x128xf32>
      %669 = arith.addf %665, %668 : vector<32x128xf32>
      %c31_i32_128 = arith.constant 31 : i32
      %670 = tpu.dynamic_rotate %669 by %c31_i32_128 dim 0 : vector<32x128xf32>, i32 -> vector<32x128xf32>
      %cst_129 = arith.constant 0.000000e+00 : f32
      %671 = vector.broadcast %cst_129 : f32 to vector<32x128xf32>
      %672 = arith.select %21, %670, %671 : vector<32x128xi1>, vector<32x128xf32>
      %673 = arith.addf %638, %672 : vector<32x128xf32>
      %c8_130 = arith.constant 8 : index
      %674 = memref.load %arg3[%c8_130] : memref<72xf32, #tpu.memory_space<smem>>
      %675 = vector.broadcast %674 : f32 to vector<32x128xf32>
      %676 = arith.mulf %359, %675 : vector<32x128xf32>
      %c17_131 = arith.constant 17 : index
      %677 = memref.load %arg3[%c17_131] : memref<72xf32, #tpu.memory_space<smem>>
      %678 = vector.broadcast %677 : f32 to vector<32x128xf32>
      %679 = arith.mulf %364, %678 : vector<32x128xf32>
      %680 = arith.addf %676, %679 : vector<32x128xf32>
      %c26_132 = arith.constant 26 : index
      %681 = memref.load %arg3[%c26_132] : memref<72xf32, #tpu.memory_space<smem>>
      %682 = vector.broadcast %681 : f32 to vector<32x128xf32>
      %683 = arith.mulf %369, %682 : vector<32x128xf32>
      %684 = arith.addf %680, %683 : vector<32x128xf32>
      %c35_133 = arith.constant 35 : index
      %685 = memref.load %arg3[%c35_133] : memref<72xf32, #tpu.memory_space<smem>>
      %686 = vector.broadcast %685 : f32 to vector<32x128xf32>
      %687 = arith.mulf %374, %686 : vector<32x128xf32>
      %688 = arith.addf %684, %687 : vector<32x128xf32>
      %c44_134 = arith.constant 44 : index
      %689 = memref.load %arg3[%c44_134] : memref<72xf32, #tpu.memory_space<smem>>
      %690 = vector.broadcast %689 : f32 to vector<32x128xf32>
      %691 = arith.mulf %379, %690 : vector<32x128xf32>
      %692 = arith.addf %688, %691 : vector<32x128xf32>
      %c53_135 = arith.constant 53 : index
      %693 = memref.load %arg3[%c53_135] : memref<72xf32, #tpu.memory_space<smem>>
      %694 = vector.broadcast %693 : f32 to vector<32x128xf32>
      %695 = arith.mulf %384, %694 : vector<32x128xf32>
      %696 = arith.addf %692, %695 : vector<32x128xf32>
      %c62_136 = arith.constant 62 : index
      %697 = memref.load %arg3[%c62_136] : memref<72xf32, #tpu.memory_space<smem>>
      %698 = vector.broadcast %697 : f32 to vector<32x128xf32>
      %699 = arith.mulf %389, %698 : vector<32x128xf32>
      %700 = arith.addf %696, %699 : vector<32x128xf32>
      %c71_137 = arith.constant 71 : index
      %701 = memref.load %arg3[%c71_137] : memref<72xf32, #tpu.memory_space<smem>>
      %702 = vector.broadcast %701 : f32 to vector<32x128xf32>
      %703 = arith.mulf %394, %702 : vector<32x128xf32>
      %704 = arith.addf %700, %703 : vector<32x128xf32>
      %c31_i32_138 = arith.constant 31 : i32
      %705 = tpu.dynamic_rotate %704 by %c31_i32_138 dim 0 : vector<32x128xf32>, i32 -> vector<32x128xf32>
      %c127_i32_139 = arith.constant 127 : i32
      %706 = tpu.dynamic_rotate %705 by %c127_i32_139 dim 1 : vector<32x128xf32>, i32 -> vector<32x128xf32>
      %cst_140 = arith.constant 0.000000e+00 : f32
      %707 = vector.broadcast %cst_140 : f32 to vector<32x128xf32>
      %708 = arith.select %29, %706, %707 : vector<32x128xi1>, vector<32x128xf32>
      %709 = arith.addf %673, %708 : vector<32x128xf32>
      %c0_141 = arith.constant 0 : index
      %710 = memref.load %arg4[%c0_141] : memref<1xf32, #tpu.memory_space<smem>>
      %711 = vector.broadcast %710 : f32 to vector<32x128xf32>
      %712 = arith.addf %709, %711 : vector<32x128xf32>
      %cst_142 = arith.constant 0.000000e+00 : f32
      %713 = vector.broadcast %cst_142 : f32 to vector<32x128xf32>
      %714 = arith.subf %713, %712 : vector<32x128xf32>
      %715 = math.exp %714 : vector<32x128xf32>
      %cst_143 = arith.constant 1.000000e+00 : f32
      %716 = vector.broadcast %cst_143 : f32 to vector<32x128xf32>
      %717 = arith.addf %716, %715 : vector<32x128xf32>
      %cst_144 = arith.constant 1.000000e+00 : f32
      %718 = vector.broadcast %cst_144 : f32 to vector<32x128xf32>
      %719 = arith.divf %718, %717 : vector<32x128xf32>
      %720 = arith.index_cast %32 : i32 to index
      %c0_145 = arith.constant 0 : index
      %c0_146 = arith.constant 0 : index
      %c0_147 = arith.constant 0 : index
      %721 = vector.load %arg5[%720, %c0_145, %c0_146, %c0_147] : memref<8x8x16x128xf32, #tpu.memory_space<vmem>>, vector<4x8x16x128xf32>
      %722 = vector.shape_cast %721 : vector<4x8x16x128xf32> to vector<32x16x128xf32>
      %723 = vector.shape_cast %719 : vector<32x128xf32> to vector<32x1x128xf32>
      %724 = vector.broadcast %723 : vector<32x1x128xf32> to vector<32x16x128xf32>
      %725 = arith.mulf %722, %724 : vector<32x16x128xf32>
      %726 = vector.shape_cast %725 : vector<32x16x128xf32> to vector<4x8x16x128xf32>
      %727 = arith.index_cast %32 : i32 to index
      %c0_148 = arith.constant 0 : index
      %c0_149 = arith.constant 0 : index
      %c0_150 = arith.constant 0 : index
      %728 = vector.load %arg6[%727, %c0_148, %c0_149, %c0_150] : memref<8x8x16x128xf32, #tpu.memory_space<vmem>>, vector<4x8x16x128xf32>
      tpu.vector_store %arg6[%727, %c0_148, %c0_149, %c0_150], %726 {strides = array<i32>} : memref<8x8x16x128xf32, #tpu.memory_space<vmem>>, vector<4x8x16x128xf32>,
    }
    %c2_i32_7 = arith.constant 2 : i32
    return
  }
  func.func @transform_0(%arg0: i32, %arg1: memref<72xf32, #tpu.memory_space<smem>>, %arg2: memref<8xf32, #tpu.memory_space<smem>>, %arg3: memref<72xf32, #tpu.memory_space<smem>>, %arg4: memref<1xf32, #tpu.memory_space<smem>>) -> (i32, i32, i32, i32) {
    %c0_i32 = arith.constant 0 : i32
    %c0_i32_0 = arith.constant 0 : i32
    %c0_i32_1 = arith.constant 0 : i32
    %c0_i32_2 = arith.constant 0 : i32
    return %arg0, %c0_i32, %c0_i32_0, %c0_i32_1 : i32, i32, i32, i32
  }
  func.func @transform_1(%arg0: i32, %arg1: memref<72xf32, #tpu.memory_space<smem>>, %arg2: memref<8xf32, #tpu.memory_space<smem>>, %arg3: memref<72xf32, #tpu.memory_space<smem>>, %arg4: memref<1xf32, #tpu.memory_space<smem>>) -> (i32, i32, i32, i32) {
    %c0_i32 = arith.constant 0 : i32
    %c0_i32_0 = arith.constant 0 : i32
    %c0_i32_1 = arith.constant 0 : i32
    %c0_i32_2 = arith.constant 0 : i32
    return %arg0, %c0_i32, %c0_i32_0, %c0_i32_1 : i32, i32, i32, i32
  }
}

</mosaic_0001>

<llo_original>
// kernel: tpu_custom_call.1
$region0: #{tpu_custom_call.1}
  #allocation0 [shape = 'u32[]', space=smem, size = 0x4, offset = 0x4, fixed_abs, tag = 'smem constant byte address 0x4 - core index']
  #allocation1 [shape = 'u32[144,128]{1,0:T(1,128)}', space=vmem, size = 0x12000, scoped, tag = 'internal scratch']
  #allocation2 [shape = 's32[1]{0}', space=sflag, size = 0x4, scoped, tag = 'scoped memory for tpu_custom_call.1']
  #allocation3 [shape = 'u8[512]{0}', space=smem, size = 0x200, scoped, tag = 'prefetched SMEM operand 0']
  #allocation4 [shape = 'u8[512]{0}', space=smem, size = 0x200, scoped, tag = 'prefetched SMEM operand 1']
  #allocation5 [shape = 'u8[512]{0}', space=smem, size = 0x200, scoped, tag = 'prefetched SMEM operand 2']
  #allocation6 [shape = 'f32[1]{0:T(128)S(6)}', space=smem, size = 0x200, scoped, tag = 'prefetched SMEM operand 3']
  %s0 = inlined_call_operand.vmem [shape: f32[72], index: 0, kind: input, shape index: {}]
  %s1 = inlined_call_operand.vmem [shape: f32[8], index: 1, kind: input, shape index: {}]
  %s2 = inlined_call_operand.vmem [shape: f32[72], index: 2, kind: input, shape index: {}]
  %s3 = inlined_call_operand.<no memory space> [shape: f32[1], index: 3, kind: input, shape index: {}]
  %s4 = inlined_call_operand.hbm [shape: f32[16,8,16,128], index: 4, kind: input, shape index: {}]
  %s5 = inlined_call_operand.hbm [shape: f32[16,8,16,128], index: 5, kind: output, shape index: {}]
  %s6 = sld [smem:[#allocation0]]
  $region48: #{tpu_custom_call.1} parent=0
    _
  %s8 = ssub.s32 1, %s6
  %s9 = scalar_select 0, %s8, %s6
  %s10 = sshll.u32 %s0, 4
  %s11 = int_to_ptr.vmem [resolvable:$true] %s10
  %13 = dma.vmem_to_smem %s11, 16, [#allocation3], [#allocation2]
  %s14 = sshll.u32 %s1, 4
  %s15 = int_to_ptr.vmem [resolvable:$true] %s14
  %17 = dma.vmem_to_smem %s15, 16, [#allocation4], [#allocation2]
  %s18 = sshll.u32 %s2, 4
  %s19 = int_to_ptr.vmem [resolvable:$true] %s18
  %21 = dma.vmem_to_smem %s19, 16, [#allocation5], [#allocation2]
  %22 = sst [smem:[#allocation6]] %s3
  %23 = dma.done [#allocation2], 48
  %24 = sfence
  $region1: #{tpu_custom_call.1} parent=0
    #allocation7 [shape = 'u8[1048576]{0}', space=vmem, size = 0x100000, scoped, tag = 'input window, operand 4']
    #allocation8 [shape = 's32[2]{0}', space=sflag, size = 0x8, scoped, tag = 'scoped memory for tpu_custom_call.1']
    #allocation9 [shape = 's32[2]{0}', space=sflag, size = 0x8, scoped, tag = 'scoped memory for tpu_custom_call.1']
    #allocation10 [shape = 'u8[1048576]{0}', space=vmem, size = 0x100000, scoped, tag = 'output window, operand 0']
    %25 = vsyncpa [#allocation8], 0
    %s26 = scalar_lea.sflag [#allocation8], 1
    %27 = vsyncpa %s26, 0
    %28 = vsyncpa [#allocation9], 0
    %s29 = scalar_lea.sflag [#allocation9], 1
    %30 = vsyncpa %s29, 0
    loop: start=0, step=1, limit=4
    $region2: #{tpu_custom_call.1} parent=1 // loop_pre_header
      _
    $region3: #{tpu_custom_call.1} parent=1 // loop_header
      %s32 = sphi 0, %s36
      %p33 = scmp.ge.s32.totalorder %s32, 4
      %s42 = sphi 0, %s44
      %s45 = sphi 0, %s42
      %s46 = sphi 0, %s45
      %s62 = sphi 0, %s46
      %s68 = sphi 0, %s70
      %s71 = sphi 0, %s68
      %s72 = sphi 0, %s71
      %s88 = sphi 0, %s72
    $region4: #{tpu_custom_call.1} parent=1 // loop_header_branch
      %35 = sbr.rel (%p33) target = $region8
    $region5: #{tpu_custom_call.1} parent=1 // loop_body
      %s37 = ssub.s32 %s32, 1
      %s38 = ssub.s32 %s32, 2
      %s39 = sadd.s32 %s32, 1
      %s40 = ssub.s32 %s32, %s39
      %p41 = scmp.eq.s32.totalorder %s40, 0
      %s43 = sadd.s32 %s42, 1
      %s44 = scalar_select %p41, %s42, %s43
      %p47 = pneg %p41
      %p48 = scmp.eq.s32.totalorder %s32, 1
      %p49 = por %p47, %p48
      %p50 = scmp.ne.s32.totalorder %s42, %s45
      %p51 = scmp.eq.s32.totalorder %s32, 0
      %p52 = por %p50, %p51
      %p53 = scmp.ne.s32.totalorder %s42, %s45
      %p54 = scmp.eq.s32.totalorder %s37, 1
      %p55 = por %p53, %p54
      %p56 = scmp.ne.s32.totalorder %s45, %s46
      %p57 = scmp.eq.s32.totalorder %s37, 0
      %p58 = por %p56, %p57
      %p59 = scmp.ne.s32.totalorder %s45, %s46
      %p60 = scmp.eq.s32.totalorder %s38, 1
      %p61 = por %p59, %p60
      %p63 = scmp.ne.s32.totalorder %s46, %s62
      %p64 = scmp.eq.s32.totalorder %s38, 0
      %p65 = por %p63, %p64
      %s66 = ssub.s32 %s32, %s39
      %p67 = scmp.eq.s32.totalorder %s66, 0
      %s69 = sadd.s32 %s68, 1
      %s70 = scalar_select %p67, %s68, %s69
      %p73 = pneg %p67
      %p74 = scmp.eq.s32.totalorder %s32, 1
      %p75 = por %p73, %p74
      %p76 = scmp.ne.s32.totalorder %s68, %s71
      %p77 = scmp.eq.s32.totalorder %s32, 0
      %p78 = por %p76, %p77
      %p79 = scmp.ne.s32.totalorder %s68, %s71
      %p80 = scmp.eq.s32.totalorder %s37, 1
      %p81 = por %p79, %p80
      %p82 = scmp.ne.s32.totalorder %s71, %s72
      %p83 = scmp.eq.s32.totalorder %s37, 0
      %p84 = por %p82, %p83
      %p85 = scmp.ne.s32.totalorder %s71, %s72
      %p86 = scmp.eq.s32.totalorder %s38, 1
      %p87 = por %p85, %p86
      %p89 = scmp.ne.s32.totalorder %s72, %s88
      %p90 = scmp.eq.s32.totalorder %s38, 0
      %p91 = por %p89, %p90
      %p92 = scmp.le.s32.totalorder 1, %s32
      %p93 = scmp.lt.s32.totalorder %s32, 3
      %p94 = pnand %p92, %p93
      %p95 = pneg %p94
      // Predicated region
      $region9: #{tpu_custom_call.1} parent=5 // pred_check
        _
      $region10: #{tpu_custom_call.1} parent=5 // pred_check_branch
        %97 = sbr.rel (%p94) target = $region12
      $region11: #{tpu_custom_call.1} parent=5 // pred_region
        %s98 = ssub.s32 %s32, 1
      $region12: #{tpu_custom_call.1} parent=5 // pred_fallthru
        _
      %p99 = scmp.lt.s32.totalorder %s32, 2
      // Predicated region
      $region13: #{tpu_custom_call.1} parent=5 // pred_check
        %p100 = pneg %p99
      $region14: #{tpu_custom_call.1} parent=5 // pred_check_branch
        %102 = sbr.rel (%p100) target = $region16
      $region15: #{tpu_custom_call.1} parent=5 // pred_region
        // Predicated region
        $region17: #{tpu_custom_call.1} parent=15 // pred_check
          %p103 = pneg %p52
        $region18: #{tpu_custom_call.1} parent=15 // pred_check_branch
          %105 = sbr.rel (%p103) target = $region20
        $region19: #{tpu_custom_call.1} parent=15 // pred_region
          %s106 = sand.u32 %s42, 1
          %s107 = scalar_lea.sflag [#allocation8], %s106
          %s108 = sand.u32 %s42, 1
          %s109 = smul.addr %s108, 1024
          %s110 = scalar_lea.vmem [#allocation7], %s109
          %s111 = smul.u32 8, %s32
          %s113 = ssub.s32 16384, 16384
          %114 = vsyncadd %s107, %s113
          %s115 = smul.addr %s111, 16
          %s116 = smul.addr %s115, 128
          %s117 = scalar_lea.hbm %s4, %s116
          %s118 = sshll.u32 %s110, 4
          %s119 = int_to_ptr.vmem [resolvable:$true] %s118
          %124 = dma.hbm_to_vmem [thread:$0]  %s117, 16384, %s119, %s107, 128, 128, 8
        $region20: #{tpu_custom_call.1} parent=15 // pred_fallthru
          _
      $region16: #{tpu_custom_call.1} parent=5 // pred_fallthru
        _
      %p125 = scmp.le.s32.totalorder 1, %s32
      %p126 = scmp.lt.s32.totalorder %s32, 3
      %p127 = pnand %p125, %p126
      %p128 = pneg %p127
      // Predicated region
      $region21: #{tpu_custom_call.1} parent=5 // pred_check
        _
      $region22: #{tpu_custom_call.1} parent=5 // pred_check_branch
        %130 = sbr.rel (%p127) target = $region24
      $region23: #{tpu_custom_call.1} parent=5 // pred_region
        %s131 = ssub.s32 %s32, 1
        %s132 = sand.u32 %s45, 1
        %s133 = scalar_lea.sflag [#allocation8], %s132
        %s134 = sand.u32 %s45, 1
        %s135 = smul.addr %s134, 1024
        %s136 = scalar_lea.vmem [#allocation7], %s135
        // Predicated region
        $region25: #{tpu_custom_call.1} parent=23 // pred_check
          %p137 = pneg %p58
        $region26: #{tpu_custom_call.1} parent=23 // pred_check_branch
          %139 = sbr.rel (%p137) target = $region28
        $region27: #{tpu_custom_call.1} parent=23 // pred_region
          %140 = dma.done %s133, 16384
        $region28: #{tpu_custom_call.1} parent=23 // pred_fallthru
          _
        %s141 = sand.u32 %s45, 1
        %s142 = scalar_lea.sflag [#allocation8], %s141
        %s143 = sand.u32 %s45, 1
        %s144 = smul.addr %s143, 1024
        %s145 = scalar_lea.vmem [#allocation7], %s144
        %p146 = pneg %p58
        %p147 = pneg %p55
        %p148 = pneg %p84
        %p149 = pneg %p81
        %s150 = sand.u32 %s71, 1
        %s151 = scalar_lea.sflag [#allocation9], %s150
        %s152 = sand.u32 %s71, 1
        %s153 = smul.addr %s152, 1024
        %s154 = scalar_lea.vmem [#allocation10], %s153
        %s155 = smul.u32 8, %s37
        %s156 = smul.u32 8, %s37
        %v157 = vlaneseq
        %v158 = vshrl.u32 %v157, 7
        %v159 = vadd.s32 %v158, 8
        %v160 = vadd.s32 %v158, 16
        %v161 = vadd.s32 %v158, 24
        %vm162 = vcmp.lt.s32.totalorder %v158, 0
        %v163 = vsub.s32 0, %v158
        %v164 = vsel %vm162, %v163, %v158
        %v165 = vshrl.u32 %v164, 3
        %v166 = vand.u32 %v164, 7
        %v167 = vsub.s32 0, %v166
        %v168 = vsel %vm162, %v167, %v166
        %vm169 = vcmp.lt.s32.totalorder %v159, 0
        %v170 = vsub.s32 0, %v159
        %v171 = vsel %vm169, %v170, %v159
        %v172 = vshrl.u32 %v171, 3
        %v173 = vand.u32 %v171, 7
        %v174 = vsub.s32 0, %v173
        %v175 = vsel %vm169, %v174, %v173
        %vm176 = vcmp.lt.s32.totalorder %v160, 0
        %v177 = vsub.s32 0, %v160
        %v178 = vsel %vm176, %v177, %v160
        %v179 = vshrl.u32 %v178, 3
        %v180 = vand.u32 %v178, 7
        %v181 = vsub.s32 0, %v180
        %v182 = vsel %vm176, %v181, %v180
        %vm183 = vcmp.lt.s32.totalorder %v161, 0
        %v184 = vsub.s32 0, %v161
        %v185 = vsel %vm183, %v184, %v161
        %v186 = vshrl.u32 %v185, 3
        %v187 = vand.u32 %v185, 7
        %v188 = vsub.s32 0, %v187
        %v189 = vsel %vm183, %v188, %v187
        %vm190 = vcmp.ne.s32.totalorder %v168, 0
        %vm191 = vcmp.ne.s32.totalorder %v175, 0
        %vm192 = vcmp.ne.s32.totalorder %v182, 0
        %vm193 = vcmp.ne.s32.totalorder %v189, 0
        %vm194 = vcmp.lt.s32.totalorder %v168, 0
        %vm195 = vcmp.lt.s32.totalorder %v175, 0
        %vm196 = vcmp.lt.s32.totalorder %v182, 0
        %vm197 = vcmp.lt.s32.totalorder %v189, 0
        %vm198 = vmand %vm194, %vm190
        %vm199 = vmand %vm195, %vm191
        %vm200 = vmand %vm196, %vm192
        %vm201 = vmand %vm197, %vm193
        %v202 = vadd.s32 %v168, 8
        %v203 = vadd.s32 %v175, 8
        %v204 = vadd.s32 %v182, 8
        %v205 = vadd.s32 %v189, 8
        %v206 = vsel %vm198, %v202, %v168
        %v207 = vsel %vm199, %v203, %v175
        %v208 = vsel %vm200, %v204, %v182
        %v209 = vsel %vm201, %v205, %v189
        %v210 = vlaneseq
        %v211 = vand.u32 %v210, 127
        %vm212 = vcmp.gt.s32.totalorder %v206, 0
        %vm213 = vcmp.gt.s32.totalorder %v207, 0
        %vm214 = vcmp.gt.s32.totalorder %v208, 0
        %vm215 = vcmp.gt.s32.totalorder %v209, 0
        %vm216 = vcmp.lt.s32.totalorder %v206, 7
        %vm217 = vcmp.lt.s32.totalorder %v207, 7
        %vm218 = vcmp.lt.s32.totalorder %v208, 7
        %vm219 = vcmp.lt.s32.totalorder %v209, 7
        %vm220 = vcmp.gt.s32.totalorder %v211, 0
        %vm221 = vcmp.lt.s32.totalorder %v211, 127
        %vm222 = vmand %vm212, %vm220
        %vm223 = vmand %vm213, %vm220
        %vm224 = vmand %vm214, %vm220
        %vm225 = vmand %vm215, %vm220
        %vm226 = vmand %vm212, %vm221
        %vm227 = vmand %vm213, %vm221
        %vm228 = vmand %vm214, %vm221
        %vm229 = vmand %vm215, %vm221
        %vm230 = vmand %vm216, %vm220
        %vm231 = vmand %vm217, %vm220
        %vm232 = vmand %vm218, %vm220
        %vm233 = vmand %vm219, %vm220
        %vm234 = vmand %vm216, %vm221
        %vm235 = vmand %vm217, %vm221
        %vm236 = vmand %vm218, %vm221
        %vm237 = vmand %vm219, %vm221
        loop: start=0, step=1, limit=2
        $region29: #{tpu_custom_call.1} parent=23 // loop_pre_header
          _
        $region30: #{tpu_custom_call.1} parent=23 // loop_header
          %s239 = sphi 0, %s243
          %p240 = scmp.ge.s32.totalorder %s239, 2
        $region31: #{tpu_custom_call.1} parent=23 // loop_header_branch
          %242 = sbr.rel (%p240) target = $region35
        $region32: #{tpu_custom_call.1} parent=23 // loop_body
          %s244 = smul.u32 %s239, 4
          %s245 = smul.u32 %s244, 128
          %s246 = scalar_lea.vmem %s136, %s245 [#allocation7]
          %v247 = vld [vmem:[%s246] sm:$0xff]
          %v248 = vld [vmem:[%s246 + $0x8] sm:$0xff]
          %v249 = vld [vmem:[%s246 + $0x10] sm:$0xff]
          %v250 = vld [vmem:[%s246 + $0x18] sm:$0xff]
          %v251 = vld [vmem:[%s246 + $0x20] sm:$0xff]
          %v252 = vld [vmem:[%s246 + $0x28] sm:$0xff]
          %v253 = vld [vmem:[%s246 + $0x30] sm:$0xff]
          %v254 = vld [vmem:[%s246 + $0x38] sm:$0xff]
          %v255 = vld [vmem:[%s246 + $0x40] sm:$0xff]
          %v256 = vld [vmem:[%s246 + $0x48] sm:$0xff]
          %v257 = vld [vmem:[%s246 + $0x50] sm:$0xff]
          %v258 = vld [vmem:[%s246 + $0x58] sm:$0xff]
          %v259 = vld [vmem:[%s246 + $0x60] sm:$0xff]
          %v260 = vld [vmem:[%s246 + $0x68] sm:$0xff]
          %v261 = vld [vmem:[%s246 + $0x70] sm:$0xff]
          %v262 = vld [vmem:[%s246 + $0x78] sm:$0xff]
          %v263 = vld [vmem:[%s246 + $0x80] sm:$0xff]
          %v264 = vld [vmem:[%s246 + $0x88] sm:$0xff]
          %v265 = vld [vmem:[%s246 + $0x90] sm:$0xff]
          %v266 = vld [vmem:[%s246 + $0x98] sm:$0xff]
          %v267 = vld [vmem:[%s246 + $0xa0] sm:$0xff]
          %v268 = vld [vmem:[%s246 + $0xa8] sm:$0xff]
          %v269 = vld [vmem:[%s246 + $0xb0] sm:$0xff]
          %v270 = vld [vmem:[%s246 + $0xb8] sm:$0xff]
          %v271 = vld [vmem:[%s246 + $0xc0] sm:$0xff]
          %v272 = vld [vmem:[%s246 + $0xc8] sm:$0xff]
          %v273 = vld [vmem:[%s246 + $0xd0] sm:$0xff]
          %v274 = vld [vmem:[%s246 + $0xd8] sm:$0xff]
          %v275 = vld [vmem:[%s246 + $0xe0] sm:$0xff]
          %v276 = vld [vmem:[%s246 + $0xe8] sm:$0xff]
          %v277 = vld [vmem:[%s246 + $0xf0] sm:$0xff]
          %v278 = vld [vmem:[%s246 + $0xf8] sm:$0xff]
          %v279 = vld [vmem:[%s246 + $0x100] sm:$0xff]
          %v280 = vld [vmem:[%s246 + $0x108] sm:$0xff]
          %v281 = vld [vmem:[%s246 + $0x110] sm:$0xff]
          %v282 = vld [vmem:[%s246 + $0x118] sm:$0xff]
          %v283 = vld [vmem:[%s246 + $0x120] sm:$0xff]
          %v284 = vld [vmem:[%s246 + $0x128] sm:$0xff]
          %v285 = vld [vmem:[%s246 + $0x130] sm:$0xff]
          %v286 = vld [vmem:[%s246 + $0x138] sm:$0xff]
          %v287 = vld [vmem:[%s246 + $0x140] sm:$0xff]
          %v288 = vld [vmem:[%s246 + $0x148] sm:$0xff]
          %v289 = vld [vmem:[%s246 + $0x150] sm:$0xff]
          %v290 = vld [vmem:[%s246 + $0x158] sm:$0xff]
          %v291 = vld [vmem:[%s246 + $0x160] sm:$0xff]
          %v292 = vld [vmem:[%s246 + $0x168] sm:$0xff]
          %v293 = vld [vmem:[%s246 + $0x170] sm:$0xff]
          %v294 = vld [vmem:[%s246 + $0x178] sm:$0xff]
          %v295 = vld [vmem:[%s246 + $0x180] sm:$0xff]
          %v296 = vld [vmem:[%s246 + $0x188] sm:$0xff]
          %v297 = vld [vmem:[%s246 + $0x190] sm:$0xff]
          %v298 = vld [vmem:[%s246 + $0x198] sm:$0xff]
          %v299 = vld [vmem:[%s246 + $0x1a0] sm:$0xff]
          %v300 = vld [vmem:[%s246 + $0x1a8] sm:$0xff]
          %v301 = vld [vmem:[%s246 + $0x1b0] sm:$0xff]
          %v302 = vld [vmem:[%s246 + $0x1b8] sm:$0xff]
          %v303 = vld [vmem:[%s246 + $0x1c0] sm:$0xff]
          %v304 = vld [vmem:[%s246 + $0x1c8] sm:$0xff]
          %v305 = vld [vmem:[%s246 + $0x1d0] sm:$0xff]
          %v306 = vld [vmem:[%s246 + $0x1d8] sm:$0xff]
          %v307 = vld [vmem:[%s246 + $0x1e0] sm:$0xff]
          %v308 = vld [vmem:[%s246 + $0x1e8] sm:$0xff]
          %v309 = vld [vmem:[%s246 + $0x1f0] sm:$0xff]
          %v310 = vld [vmem:[%s246 + $0x1f8] sm:$0xff]
          %v311 = vadd.f32 %v247, %v248
          %v312 = vrot.slane %v311, 4
          %v313 = vadd.f32 %v311, %v312
          %v314 = vrot.slane %v313, 2
          %v315 = vadd.f32 %v313, %v314
          %v316 = vrot.slane %v315, 1
          %v317 = vadd.f32 %v315, %v316
          %v318 = vadd.f32 %v249, %v250
          %v319 = vrot.slane %v318, 4
          %v320 = vadd.f32 %v318, %v319
          %v321 = vrot.slane %v320, 2
          %v322 = vadd.f32 %v320, %v321
          %v323 = vrot.slane %v322, 1
          %v324 = vadd.f32 %v322, %v323
          %v325 = vadd.f32 %v251, %v252
          %v326 = vrot.slane %v325, 4
          %v327 = vadd.f32 %v325, %v326
          %v328 = vrot.slane %v327, 2
          %v329 = vadd.f32 %v327, %v328
          %v330 = vrot.slane %v329, 1
          %v331 = vadd.f32 %v329, %v330
          %v332 = vadd.f32 %v253, %v254
          %v333 = vrot.slane %v332, 4
          %v334 = vadd.f32 %v332, %v333
          %v335 = vrot.slane %v334, 2
          %v336 = vadd.f32 %v334, %v335
          %v337 = vrot.slane %v336, 1
          %v338 = vadd.f32 %v336, %v337
          %v339 = vadd.f32 %v255, %v256
          %v340 = vrot.slane %v339, 4
          %v341 = vadd.f32 %v339, %v340
          %v342 = vrot.slane %v341, 2
          %v343 = vadd.f32 %v341, %v342
          %v344 = vrot.slane %v343, 1
          %v345 = vadd.f32 %v343, %v344
          %v346 = vadd.f32 %v257, %v258
          %v347 = vrot.slane %v346, 4
          %v348 = vadd.f32 %v346, %v347
          %v349 = vrot.slane %v348, 2
          %v350 = vadd.f32 %v348, %v349
          %v351 = vrot.slane %v350, 1
          %v352 = vadd.f32 %v350, %v351
          %v353 = vadd.f32 %v259, %v260
          %v354 = vrot.slane %v353, 4
          %v355 = vadd.f32 %v353, %v354
          %v356 = vrot.slane %v355, 2
          %v357 = vadd.f32 %v355, %v356
          %v358 = vrot.slane %v357, 1
          %v359 = vadd.f32 %v357, %v358
          %v360 = vadd.f32 %v261, %v262
          %v361 = vrot.slane %v360, 4
          %v362 = vadd.f32 %v360, %v361
          %v363 = vrot.slane %v362, 2
          %v364 = vadd.f32 %v362, %v363
          %v365 = vrot.slane %v364, 1
          %v366 = vadd.f32 %v364, %v365
          %v367 = vadd.f32 %v263, %v264
          %v368 = vrot.slane %v367, 4
          %v369 = vadd.f32 %v367, %v368
          %v370 = vrot.slane %v369, 2
          %v371 = vadd.f32 %v369, %v370
          %v372 = vrot.slane %v371, 1
          %v373 = vadd.f32 %v371, %v372
          %v374 = vadd.f32 %v265, %v266
          %v375 = vrot.slane %v374, 4
          %v376 = vadd.f32 %v374, %v375
          %v377 = vrot.slane %v376, 2
          %v378 = vadd.f32 %v376, %v377
          %v379 = vrot.slane %v378, 1
          %v380 = vadd.f32 %v378, %v379
          %v381 = vadd.f32 %v267, %v268
          %v382 = vrot.slane %v381, 4
          %v383 = vadd.f32 %v381, %v382
          %v384 = vrot.slane %v383, 2
          %v385 = vadd.f32 %v383, %v384
          %v386 = vrot.slane %v385, 1
          %v387 = vadd.f32 %v385, %v386
          %v388 = vadd.f32 %v269, %v270
          %v389 = vrot.slane %v388, 4
          %v390 = vadd.f32 %v388, %v389
          %v391 = vrot.slane %v390, 2
          %v392 = vadd.f32 %v390, %v391
          %v393 = vrot.slane %v392, 1
          %v394 = vadd.f32 %v392, %v393
          %v395 = vadd.f32 %v271, %v272
          %v396 = vrot.slane %v395, 4
          %v397 = vadd.f32 %v395, %v396
          %v398 = vrot.slane %v397, 2
          %v399 = vadd.f32 %v397, %v398
          %v400 = vrot.slane %v399, 1
          %v401 = vadd.f32 %v399, %v400
          %v402 = vadd.f32 %v273, %v274
          %v403 = vrot.slane %v402, 4
          %v404 = vadd.f32 %v402, %v403
          %v405 = vrot.slane %v404, 2
          %v406 = vadd.f32 %v404, %v405
          %v407 = vrot.slane %v406, 1
          %v408 = vadd.f32 %v406, %v407
          %v409 = vadd.f32 %v275, %v276
          %v410 = vrot.slane %v409, 4
          %v411 = vadd.f32 %v409, %v410
          %v412 = vrot.slane %v411, 2
          %v413 = vadd.f32 %v411, %v412
          %v414 = vrot.slane %v413, 1
          %v415 = vadd.f32 %v413, %v414
          %v416 = vadd.f32 %v277, %v278
          %v417 = vrot.slane %v416, 4
          %v418 = vadd.f32 %v416, %v417
          %v419 = vrot.slane %v418, 2
          %v420 = vadd.f32 %v418, %v419
          %v421 = vrot.slane %v420, 1
          %v422 = vadd.f32 %v420, %v421
          %v423 = vadd.f32 %v279, %v280
          %v424 = vrot.slane %v423, 4
          %v425 = vadd.f32 %v423, %v424
          %v426 = vrot.slane %v425, 2
          %v427 = vadd.f32 %v425, %v426
          %v428 = vrot.slane %v427, 1
          %v429 = vadd.f32 %v427, %v428
          %v430 = vadd.f32 %v281, %v282
          %v431 = vrot.slane %v430, 4
          %v432 = vadd.f32 %v430, %v431
          %v433 = vrot.slane %v432, 2
          %v434 = vadd.f32 %v432, %v433
          %v435 = vrot.slane %v434, 1
          %v436 = vadd.f32 %v434, %v435
          %v437 = vadd.f32 %v283, %v284
          %v438 = vrot.slane %v437, 4
          %v439 = vadd.f32 %v437, %v438
          %v440 = vrot.slane %v439, 2
          %v441 = vadd.f32 %v439, %v440
          %v442 = vrot.slane %v441, 1
          %v443 = vadd.f32 %v441, %v442
          %v444 = vadd.f32 %v285, %v286
          %v445 = vrot.slane %v444, 4
          %v446 = vadd.f32 %v444, %v445
          %v447 = vrot.slane %v446, 2
          %v448 = vadd.f32 %v446, %v447
          %v449 = vrot.slane %v448, 1
          %v450 = vadd.f32 %v448, %v449
          %v451 = vadd.f32 %v287, %v288
          %v452 = vrot.slane %v451, 4
          %v453 = vadd.f32 %v451, %v452
          %v454 = vrot.slane %v453, 2
          %v455 = vadd.f32 %v453, %v454
          %v456 = vrot.slane %v455, 1
          %v457 = vadd.f32 %v455, %v456
          %v458 = vadd.f32 %v289, %v290
          %v459 = vrot.slane %v458, 4
          %v460 = vadd.f32 %v458, %v459
          %v461 = vrot.slane %v460, 2
          %v462 = vadd.f32 %v460, %v461
          %v463 = vrot.slane %v462, 1
          %v464 = vadd.f32 %v462, %v463
          %v465 = vadd.f32 %v291, %v292
          %v466 = vrot.slane %v465, 4
          %v467 = vadd.f32 %v465, %v466
          %v468 = vrot.slane %v467, 2
          %v469 = vadd.f32 %v467, %v468
          %v470 = vrot.slane %v469, 1
          %v471 = vadd.f32 %v469, %v470
          %v472 = vadd.f32 %v293, %v294
          %v473 = vrot.slane %v472, 4
          %v474 = vadd.f32 %v472, %v473
          %v475 = vrot.slane %v474, 2
          %v476 = vadd.f32 %v474, %v475
          %v477 = vrot.slane %v476, 1
          %v478 = vadd.f32 %v476, %v477
          %v479 = vadd.f32 %v295, %v296
          %v480 = vrot.slane %v479, 4
          %v481 = vadd.f32 %v479, %v480
          %v482 = vrot.slane %v481, 2
          %v483 = vadd.f32 %v481, %v482
          %v484 = vrot.slane %v483, 1
          %v485 = vadd.f32 %v483, %v484
          %v486 = vadd.f32 %v297, %v298
          %v487 = vrot.slane %v486, 4
          %v488 = vadd.f32 %v486, %v487
          %v489 = vrot.slane %v488, 2
          %v490 = vadd.f32 %v488, %v489
          %v491 = vrot.slane %v490, 1
          %v492 = vadd.f32 %v490, %v491
          %v493 = vadd.f32 %v299, %v300
          %v494 = vrot.slane %v493, 4
          %v495 = vadd.f32 %v493, %v494
          %v496 = vrot.slane %v495, 2
          %v497 = vadd.f32 %v495, %v496
          %v498 = vrot.slane %v497, 1
          %v499 = vadd.f32 %v497, %v498
          %v500 = vadd.f32 %v301, %v302
          %v501 = vrot.slane %v500, 4
          %v502 = vadd.f32 %v500, %v501
          %v503 = vrot.slane %v502, 2
          %v504 = vadd.f32 %v502, %v503
          %v505 = vrot.slane %v504, 1
          %v506 = vadd.f32 %v504, %v505
          %v507 = vadd.f32 %v303, %v304
          %v508 = vrot.slane %v507, 4
          %v509 = vadd.f32 %v507, %v508
          %v510 = vrot.slane %v509, 2
          %v511 = vadd.f32 %v509, %v510
          %v512 = vrot.slane %v511, 1
          %v513 = vadd.f32 %v511, %v512
          %v514 = vadd.f32 %v305, %v306
          %v515 = vrot.slane %v514, 4
          %v516 = vadd.f32 %v514, %v515
          %v517 = vrot.slane %v516, 2
          %v518 = vadd.f32 %v516, %v517
          %v519 = vrot.slane %v518, 1
          %v520 = vadd.f32 %v518, %v519
          %v521 = vadd.f32 %v307, %v308
          %v522 = vrot.slane %v521, 4
          %v523 = vadd.f32 %v521, %v522
          %v524 = vrot.slane %v523, 2
          %v525 = vadd.f32 %v523, %v524
          %v526 = vrot.slane %v525, 1
          %v527 = vadd.f32 %v525, %v526
          %v528 = vadd.f32 %v309, %v310
          %v529 = vrot.slane %v528, 4
          %v530 = vadd.f32 %v528, %v529
          %v531 = vrot.slane %v530, 2
          %v532 = vadd.f32 %v530, %v531
          %v533 = vrot.slane %v532, 1
          %v534 = vadd.f32 %v532, %v533
          %v535 = vmul.f32 %v317, 0.0625
          %v536 = vmul.f32 %v324, 0.0625
          %v537 = vmul.f32 %v331, 0.0625
          %v538 = vmul.f32 %v338, 0.0625
          %v539 = vmul.f32 %v345, 0.0625
          %v540 = vmul.f32 %v352, 0.0625
          %v541 = vmul.f32 %v359, 0.0625
          %v542 = vmul.f32 %v366, 0.0625
          %v543 = vmul.f32 %v373, 0.0625
          %v544 = vmul.f32 %v380, 0.0625
          %v545 = vmul.f32 %v387, 0.0625
          %v546 = vmul.f32 %v394, 0.0625
          %v547 = vmul.f32 %v401, 0.0625
          %v548 = vmul.f32 %v408, 0.0625
          %v549 = vmul.f32 %v415, 0.0625
          %v550 = vmul.f32 %v422, 0.0625
          %v551 = vmul.f32 %v429, 0.0625
          %v552 = vmul.f32 %v436, 0.0625
          %v553 = vmul.f32 %v443, 0.0625
          %v554 = vmul.f32 %v450, 0.0625
          %v555 = vmul.f32 %v457, 0.0625
          %v556 = vmul.f32 %v464, 0.0625
          %v557 = vmul.f32 %v471, 0.0625
          %v558 = vmul.f32 %v478, 0.0625
          %v559 = vmul.f32 %v485, 0.0625
          %v560 = vmul.f32 %v492, 0.0625
          %v561 = vmul.f32 %v499, 0.0625
          %v562 = vmul.f32 %v506, 0.0625
          %v563 = vmul.f32 %v513, 0.0625
          %v564 = vmul.f32 %v520, 0.0625
          %v565 = vmul.f32 %v527, 0.0625
          %v566 = vmul.f32 %v534, 0.0625
          %v567 = vsub.f32 %v247, %v535
          %v568 = vsub.f32 %v248, %v535
          %v569 = vsub.f32 %v249, %v536
          %v570 = vsub.f32 %v250, %v536
          %v571 = vsub.f32 %v251, %v537
          %v572 = vsub.f32 %v252, %v537
          %v573 = vsub.f32 %v253, %v538
          %v574 = vsub.f32 %v254, %v538
          %v575 = vsub.f32 %v255, %v539
          %v576 = vsub.f32 %v256, %v539
          %v577 = vsub.f32 %v257, %v540
          %v578 = vsub.f32 %v258, %v540
          %v579 = vsub.f32 %v259, %v541
          %v580 = vsub.f32 %v260, %v541
          %v581 = vsub.f32 %v261, %v542
          %v582 = vsub.f32 %v262, %v542
          %v583 = vsub.f32 %v263, %v543
          %v584 = vsub.f32 %v264, %v543
          %v585 = vsub.f32 %v265, %v544
          %v586 = vsub.f32 %v266, %v544
          %v587 = vsub.f32 %v267, %v545
          %v588 = vsub.f32 %v268, %v545
          %v589 = vsub.f32 %v269, %v546
          %v590 = vsub.f32 %v270, %v546
          %v591 = vsub.f32 %v271, %v547
          %v592 = vsub.f32 %v272, %v547
          %v593 = vsub.f32 %v273, %v548
          %v594 = vsub.f32 %v274, %v548
          %v595 = vsub.f32 %v275, %v549
          %v596 = vsub.f32 %v276, %v549
          %v597 = vsub.f32 %v277, %v550
          %v598 = vsub.f32 %v278, %v550
          %v599 = vsub.f32 %v279, %v551
          %v600 = vsub.f32 %v280, %v551
          %v601 = vsub.f32 %v281, %v552
          %v602 = vsub.f32 %v282, %v552
          %v603 = vsub.f32 %v283, %v553
          %v604 = vsub.f32 %v284, %v553
          %v605 = vsub.f32 %v285, %v554
          %v606 = vsub.f32 %v286, %v554
          %v607 = vsub.f32 %v287, %v555
          %v608 = vsub.f32 %v288, %v555
          %v609 = vsub.f32 %v289, %v556
          %v610 = vsub.f32 %v290, %v556
          %v611 = vsub.f32 %v291, %v557
          %v612 = vsub.f32 %v292, %v557
          %v613 = vsub.f32 %v293, %v558
          %v614 = vsub.f32 %v294, %v558
          %v615 = vsub.f32 %v295, %v559
          %v616 = vsub.f32 %v296, %v559
          %v617 = vsub.f32 %v297, %v560
          %v618 = vsub.f32 %v298, %v560
          %v619 = vsub.f32 %v299, %v561
          %v620 = vsub.f32 %v300, %v561
          %v621 = vsub.f32 %v301, %v562
          %v622 = vsub.f32 %v302, %v562
          %v623 = vsub.f32 %v303, %v563
          %v624 = vsub.f32 %v304, %v563
          %v625 = vsub.f32 %v305, %v564
          %v626 = vsub.f32 %v306, %v564
          %v627 = vsub.f32 %v307, %v565
          %v628 = vsub.f32 %v308, %v565
          %v629 = vsub.f32 %v309, %v566
          %v630 = vsub.f32 %v310, %v566
          %v631 = vmul.f32 %v567, %v567
          %v632 = vmul.f32 %v568, %v568
          %v633 = vmul.f32 %v569, %v569
          %v634 = vmul.f32 %v570, %v570
          %v635 = vmul.f32 %v571, %v571
          %v636 = vmul.f32 %v572, %v572
          %v637 = vmul.f32 %v573, %v573
          %v638 = vmul.f32 %v574, %v574
          %v639 = vmul.f32 %v575, %v575
          %v640 = vmul.f32 %v576, %v576
          %v641 = vmul.f32 %v577, %v577
          %v642 = vmul.f32 %v578, %v578
          %v643 = vmul.f32 %v579, %v579
          %v644 = vmul.f32 %v580, %v580
          %v645 = vmul.f32 %v581, %v581
          %v646 = vmul.f32 %v582, %v582
          %v647 = vmul.f32 %v583, %v583
          %v648 = vmul.f32 %v584, %v584
          %v649 = vmul.f32 %v585, %v585
          %v650 = vmul.f32 %v586, %v586
          %v651 = vmul.f32 %v587, %v587
          %v652 = vmul.f32 %v588, %v588
          %v653 = vmul.f32 %v589, %v589
          %v654 = vmul.f32 %v590, %v590
          %v655 = vmul.f32 %v591, %v591
          %v656 = vmul.f32 %v592, %v592
          %v657 = vmul.f32 %v593, %v593
          %v658 = vmul.f32 %v594, %v594
          %v659 = vmul.f32 %v595, %v595
          %v660 = vmul.f32 %v596, %v596
          %v661 = vmul.f32 %v597, %v597
          %v662 = vmul.f32 %v598, %v598
          %v663 = vmul.f32 %v599, %v599
          %v664 = vmul.f32 %v600, %v600
          %v665 = vmul.f32 %v601, %v601
          %v666 = vmul.f32 %v602, %v602
          %v667 = vmul.f32 %v603, %v603
          %v668 = vmul.f32 %v604, %v604
          %v669 = vmul.f32 %v605, %v605
          %v670 = vmul.f32 %v606, %v606
          %v671 = vmul.f32 %v607, %v607
          %v672 = vmul.f32 %v608, %v608
          %v673 = vmul.f32 %v609, %v609
          %v674 = vmul.f32 %v610, %v610
          %v675 = vmul.f32 %v611, %v611
          %v676 = vmul.f32 %v612, %v612
          %v677 = vmul.f32 %v613, %v613
          %v678 = vmul.f32 %v614, %v614
          %v679 = vmul.f32 %v615, %v615
          %v680 = vmul.f32 %v616, %v616
          %v681 = vmul.f32 %v617, %v617
          %v682 = vmul.f32 %v618, %v618
          %v683 = vmul.f32 %v619, %v619
          %v684 = vmul.f32 %v620, %v620
          %v685 = vmul.f32 %v621, %v621
          %v686 = vmul.f32 %v622, %v622
          %v687 = vmul.f32 %v623, %v623
          %v688 = vmul.f32 %v624, %v624
          %v689 = vmul.f32 %v625, %v625
          %v690 = vmul.f32 %v626, %v626
          %v691 = vmul.f32 %v627, %v627
          %v692 = vmul.f32 %v628, %v628
          %v693 = vmul.f32 %v629, %v629
          %v694 = vmul.f32 %v630, %v630
          %v695 = vadd.f32 %v631, %v632
          %v696 = vrot.slane %v695, 4
          %v697 = vadd.f32 %v695, %v696
          %v698 = vrot.slane %v697, 2
          %v699 = vadd.f32 %v697, %v698
          %v700 = vrot.slane %v699, 1
          %v701 = vadd.f32 %v699, %v700
          %v702 = vadd.f32 %v633, %v634
          %v703 = vrot.slane %v702, 4
          %v704 = vadd.f32 %v702, %v703
          %v705 = vrot.slane %v704, 2
          %v706 = vadd.f32 %v704, %v705
          %v707 = vrot.slane %v706, 1
          %v708 = vadd.f32 %v706, %v707
          %v709 = vadd.f32 %v635, %v636
          %v710 = vrot.slane %v709, 4
          %v711 = vadd.f32 %v709, %v710
          %v712 = vrot.slane %v711, 2
          %v713 = vadd.f32 %v711, %v712
          %v714 = vrot.slane %v713, 1
          %v715 = vadd.f32 %v713, %v714
          %v716 = vadd.f32 %v637, %v638
          %v717 = vrot.slane %v716, 4
          %v718 = vadd.f32 %v716, %v717
          %v719 = vrot.slane %v718, 2
          %v720 = vadd.f32 %v718, %v719
          %v721 = vrot.slane %v720, 1
          %v722 = vadd.f32 %v720, %v721
          %v723 = vadd.f32 %v639, %v640
          %v724 = vrot.slane %v723, 4
          %v725 = vadd.f32 %v723, %v724
          %v726 = vrot.slane %v725, 2
          %v727 = vadd.f32 %v725, %v726
          %v728 = vrot.slane %v727, 1
          %v729 = vadd.f32 %v727, %v728
          %v730 = vadd.f32 %v641, %v642
          %v731 = vrot.slane %v730, 4
          %v732 = vadd.f32 %v730, %v731
          %v733 = vrot.slane %v732, 2
          %v734 = vadd.f32 %v732, %v733
          %v735 = vrot.slane %v734, 1
          %v736 = vadd.f32 %v734, %v735
          %v737 = vadd.f32 %v643, %v644
          %v738 = vrot.slane %v737, 4
          %v739 = vadd.f32 %v737, %v738
          %v740 = vrot.slane %v739, 2
          %v741 = vadd.f32 %v739, %v740
          %v742 = vrot.slane %v741, 1
          %v743 = vadd.f32 %v741, %v742
          %v744 = vadd.f32 %v645, %v646
          %v745 = vrot.slane %v744, 4
          %v746 = vadd.f32 %v744, %v745
          %v747 = vrot.slane %v746, 2
          %v748 = vadd.f32 %v746, %v747
          %v749 = vrot.slane %v748, 1
          %v750 = vadd.f32 %v748, %v749
          %v751 = vadd.f32 %v647, %v648
          %v752 = vrot.slane %v751, 4
          %v753 = vadd.f32 %v751, %v752
          %v754 = vrot.slane %v753, 2
          %v755 = vadd.f32 %v753, %v754
          %v756 = vrot.slane %v755, 1
          %v757 = vadd.f32 %v755, %v756
          %v758 = vadd.f32 %v649, %v650
          %v759 = vrot.slane %v758, 4
          %v760 = vadd.f32 %v758, %v759
          %v761 = vrot.slane %v760, 2
          %v762 = vadd.f32 %v760, %v761
          %v763 = vrot.slane %v762, 1
          %v764 = vadd.f32 %v762, %v763
          %v765 = vadd.f32 %v651, %v652
          %v766 = vrot.slane %v765, 4
          %v767 = vadd.f32 %v765, %v766
          %v768 = vrot.slane %v767, 2
          %v769 = vadd.f32 %v767, %v768
          %v770 = vrot.slane %v769, 1
          %v771 = vadd.f32 %v769, %v770
          %v772 = vadd.f32 %v653, %v654
          %v773 = vrot.slane %v772, 4
          %v774 = vadd.f32 %v772, %v773
          %v775 = vrot.slane %v774, 2
          %v776 = vadd.f32 %v774, %v775
          %v777 = vrot.slane %v776, 1
          %v778 = vadd.f32 %v776, %v777
          %v779 = vadd.f32 %v655, %v656
          %v780 = vrot.slane %v779, 4
          %v781 = vadd.f32 %v779, %v780
          %v782 = vrot.slane %v781, 2
          %v783 = vadd.f32 %v781, %v782
          %v784 = vrot.slane %v783, 1
          %v785 = vadd.f32 %v783, %v784
          %v786 = vadd.f32 %v657, %v658
          %v787 = vrot.slane %v786, 4
          %v788 = vadd.f32 %v786, %v787
          %v789 = vrot.slane %v788, 2
          %v790 = vadd.f32 %v788, %v789
          %v791 = vrot.slane %v790, 1
          %v792 = vadd.f32 %v790, %v791
          %v793 = vadd.f32 %v659, %v660
          %v794 = vrot.slane %v793, 4
          %v795 = vadd.f32 %v793, %v794
          %v796 = vrot.slane %v795, 2
          %v797 = vadd.f32 %v795, %v796
          %v798 = vrot.slane %v797, 1
          %v799 = vadd.f32 %v797, %v798
          %v800 = vadd.f32 %v661, %v662
          %v801 = vrot.slane %v800, 4
          %v802 = vadd.f32 %v800, %v801
          %v803 = vrot.slane %v802, 2
          %v804 = vadd.f32 %v802, %v803
          %v805 = vrot.slane %v804, 1
          %v806 = vadd.f32 %v804, %v805
          %v807 = vadd.f32 %v663, %v664
          %v808 = vrot.slane %v807, 4
          %v809 = vadd.f32 %v807, %v808
          %v810 = vrot.slane %v809, 2
          %v811 = vadd.f32 %v809, %v810
          %v812 = vrot.slane %v811, 1
          %v813 = vadd.f32 %v811, %v812
          %v814 = vadd.f32 %v665, %v666
          %v815 = vrot.slane %v814, 4
          %v816 = vadd.f32 %v814, %v815
          %v817 = vrot.slane %v816, 2
          %v818 = vadd.f32 %v816, %v817
          %v819 = vrot.slane %v818, 1
          %v820 = vadd.f32 %v818, %v819
          %v821 = vadd.f32 %v667, %v668
          %v822 = vrot.slane %v821, 4
          %v823 = vadd.f32 %v821, %v822
          %v824 = vrot.slane %v823, 2
          %v825 = vadd.f32 %v823, %v824
          %v826 = vrot.slane %v825, 1
          %v827 = vadd.f32 %v825, %v826
          %v828 = vadd.f32 %v669, %v670
          %v829 = vrot.slane %v828, 4
          %v830 = vadd.f32 %v828, %v829
          %v831 = vrot.slane %v830, 2
          %v832 = vadd.f32 %v830, %v831
          %v833 = vrot.slane %v832, 1
          %v834 = vadd.f32 %v832, %v833
          %v835 = vadd.f32 %v671, %v672
          %v836 = vrot.slane %v835, 4
          %v837 = vadd.f32 %v835, %v836
          %v838 = vrot.slane %v837, 2
          %v839 = vadd.f32 %v837, %v838
          %v840 = vrot.slane %v839, 1
          %v841 = vadd.f32 %v839, %v840
          %v842 = vadd.f32 %v673, %v674
          %v843 = vrot.slane %v842, 4
          %v844 = vadd.f32 %v842, %v843
          %v845 = vrot.slane %v844, 2
          %v846 = vadd.f32 %v844, %v845
          %v847 = vrot.slane %v846, 1
          %v848 = vadd.f32 %v846, %v847
          %v849 = vadd.f32 %v675, %v676
          %v850 = vrot.slane %v849, 4
          %v851 = vadd.f32 %v849, %v850
          %v852 = vrot.slane %v851, 2
          %v853 = vadd.f32 %v851, %v852
          %v854 = vrot.slane %v853, 1
          %v855 = vadd.f32 %v853, %v854
          %v856 = vadd.f32 %v677, %v678
          %v857 = vrot.slane %v856, 4
          %v858 = vadd.f32 %v856, %v857
          %v859 = vrot.slane %v858, 2
          %v860 = vadd.f32 %v858, %v859
          %v861 = vrot.slane %v860, 1
          %v862 = vadd.f32 %v860, %v861
          %v863 = vadd.f32 %v679, %v680
          %v864 = vrot.slane %v863, 4
          %v865 = vadd.f32 %v863, %v864
          %v866 = vrot.slane %v865, 2
          %v867 = vadd.f32 %v865, %v866
          %v868 = vrot.slane %v867, 1
          %v869 = vadd.f32 %v867, %v868
          %v870 = vadd.f32 %v681, %v682
          %v871 = vrot.slane %v870, 4
          %v872 = vadd.f32 %v870, %v871
          %v873 = vrot.slane %v872, 2
          %v874 = vadd.f32 %v872, %v873
          %v875 = vrot.slane %v874, 1
          %v876 = vadd.f32 %v874, %v875
          %v877 = vadd.f32 %v683, %v684
          %v878 = vrot.slane %v877, 4
          %v879 = vadd.f32 %v877, %v878
          %v880 = vrot.slane %v879, 2
          %v881 = vadd.f32 %v879, %v880
          %v882 = vrot.slane %v881, 1
          %v883 = vadd.f32 %v881, %v882
          %v884 = vadd.f32 %v685, %v686
          %v885 = vrot.slane %v884, 4
          %v886 = vadd.f32 %v884, %v885
          %v887 = vrot.slane %v886, 2
          %v888 = vadd.f32 %v886, %v887
          %v889 = vrot.slane %v888, 1
          %v890 = vadd.f32 %v888, %v889
          %v891 = vadd.f32 %v687, %v688
          %v892 = vrot.slane %v891, 4
          %v893 = vadd.f32 %v891, %v892
          %v894 = vrot.slane %v893, 2
          %v895 = vadd.f32 %v893, %v894
          %v896 = vrot.slane %v895, 1
          %v897 = vadd.f32 %v895, %v896
          %v898 = vadd.f32 %v689, %v690
          %v899 = vrot.slane %v898, 4
          %v900 = vadd.f32 %v898, %v899
          %v901 = vrot.slane %v900, 2
          %v902 = vadd.f32 %v900, %v901
          %v903 = vrot.slane %v902, 1
          %v904 = vadd.f32 %v902, %v903
          %v905 = vadd.f32 %v691, %v692
          %v906 = vrot.slane %v905, 4
          %v907 = vadd.f32 %v905, %v906
          %v908 = vrot.slane %v907, 2
          %v909 = vadd.f32 %v907, %v908
          %v910 = vrot.slane %v909, 1
          %v911 = vadd.f32 %v909, %v910
          %v912 = vadd.f32 %v693, %v694
          %v913 = vrot.slane %v912, 4
          %v914 = vadd.f32 %v912, %v913
          %v915 = vrot.slane %v914, 2
          %v916 = vadd.f32 %v914, %v915
          %v917 = vrot.slane %v916, 1
          %v918 = vadd.f32 %v916, %v917
          %v919 = vmul.f32 %v701, 0.0625
          %v920 = vmul.f32 %v708, 0.0625
          %v921 = vmul.f32 %v715, 0.0625
          %v922 = vmul.f32 %v722, 0.0625
          %v923 = vmul.f32 %v729, 0.0625
          %v924 = vmul.f32 %v736, 0.0625
          %v925 = vmul.f32 %v743, 0.0625
          %v926 = vmul.f32 %v750, 0.0625
          %v927 = vmul.f32 %v757, 0.0625
          %v928 = vmul.f32 %v764, 0.0625
          %v929 = vmul.f32 %v771, 0.0625
          %v930 = vmul.f32 %v778, 0.0625
          %v931 = vmul.f32 %v785, 0.0625
          %v932 = vmul.f32 %v792, 0.0625
          %v933 = vmul.f32 %v799, 0.0625
          %v934 = vmul.f32 %v806, 0.0625
          %v935 = vmul.f32 %v813, 0.0625
          %v936 = vmul.f32 %v820, 0.0625
          %v937 = vmul.f32 %v827, 0.0625
          %v938 = vmul.f32 %v834, 0.0625
          %v939 = vmul.f32 %v841, 0.0625
          %v940 = vmul.f32 %v848, 0.0625
          %v941 = vmul.f32 %v855, 0.0625
          %v942 = vmul.f32 %v862, 0.0625
          %v943 = vmul.f32 %v869, 0.0625
          %v944 = vmul.f32 %v876, 0.0625
          %v945 = vmul.f32 %v883, 0.0625
          %v946 = vmul.f32 %v890, 0.0625
          %v947 = vmul.f32 %v897, 0.0625
          %v948 = vmul.f32 %v904, 0.0625
          %v949 = vmul.f32 %v911, 0.0625
          %v950 = vmul.f32 %v918, 0.0625
          %v951 = vrsqrt.pop %v919
          %v952 = vmul.f32 %v919, %v951
          %vm953 = vcmp.eq.f32.partialorder %v919, inf
          %v954 = vsel %vm953, %v919, %v952
          %vm955 = vcmp.eq.f32.partialorder %v919, 0.0
          %v956 = vand.u32 %v919, 2147483648
          %v957 = vsel %vm955, %v956, %v954
          %v958 = vrsqrt.pop %v920
          %v959 = vmul.f32 %v920, %v958
          %vm960 = vcmp.eq.f32.partialorder %v920, inf
          %v961 = vsel %vm960, %v920, %v959
          %vm962 = vcmp.eq.f32.partialorder %v920, 0.0
          %v963 = vand.u32 %v920, 2147483648
          %v964 = vsel %vm962, %v963, %v961
          %v965 = vrsqrt.pop %v921
          %v966 = vmul.f32 %v921, %v965
          %vm967 = vcmp.eq.f32.partialorder %v921, inf
          %v968 = vsel %vm967, %v921, %v966
          %vm969 = vcmp.eq.f32.partialorder %v921, 0.0
          %v970 = vand.u32 %v921, 2147483648
          %v971 = vsel %vm969, %v970, %v968
          %v972 = vrsqrt.pop %v922
          %v973 = vmul.f32 %v922, %v972
          %vm974 = vcmp.eq.f32.partialorder %v922, inf
          %v975 = vsel %vm974, %v922, %v973
          %vm976 = vcmp.eq.f32.partialorder %v922, 0.0
          %v977 = vand.u32 %v922, 2147483648
          %v978 = vsel %vm976, %v977, %v975
          %v979 = vrsqrt.pop %v923
          %v980 = vmul.f32 %v923, %v979
          %vm981 = vcmp.eq.f32.partialorder %v923, inf
          %v982 = vsel %vm981, %v923, %v980
          %vm983 = vcmp.eq.f32.partialorder %v923, 0.0
          %v984 = vand.u32 %v923, 2147483648
          %v985 = vsel %vm983, %v984, %v982
          %v986 = vrsqrt.pop %v924
          %v987 = vmul.f32 %v924, %v986
          %vm988 = vcmp.eq.f32.partialorder %v924, inf
          %v989 = vsel %vm988, %v924, %v987
          %vm990 = vcmp.eq.f32.partialorder %v924, 0.0
          %v991 = vand.u32 %v924, 2147483648
          %v992 = vsel %vm990, %v991, %v989
          %v993 = vrsqrt.pop %v925
          %v994 = vmul.f32 %v925, %v993
          %vm995 = vcmp.eq.f32.partialorder %v925, inf
          %v996 = vsel %vm995, %v925, %v994
          %vm997 = vcmp.eq.f32.partialorder %v925, 0.0
          %v998 = vand.u32 %v925, 2147483648
          %v999 = vsel %vm997, %v998, %v996
          %v1000 = vrsqrt.pop %v926
          %v1001 = vmul.f32 %v926, %v1000
          %vm1002 = vcmp.eq.f32.partialorder %v926, inf
          %v1003 = vsel %vm1002, %v926, %v1001
          %vm1004 = vcmp.eq.f32.partialorder %v926, 0.0
          %v1005 = vand.u32 %v926, 2147483648
          %v1006 = vsel %vm1004, %v1005, %v1003
          %v1007 = vrsqrt.pop %v927
          %v1008 = vmul.f32 %v927, %v1007
          %vm1009 = vcmp.eq.f32.partialorder %v927, inf
          %v1010 = vsel %vm1009, %v927, %v1008
          %vm1011 = vcmp.eq.f32.partialorder %v927, 0.0
          %v1012 = vand.u32 %v927, 2147483648
          %v1013 = vsel %vm1011, %v1012, %v1010
          %v1014 = vrsqrt.pop %v928
          %v1015 = vmul.f32 %v928, %v1014
          %vm1016 = vcmp.eq.f32.partialorder %v928, inf
          %v1017 = vsel %vm1016, %v928, %v1015
          %vm1018 = vcmp.eq.f32.partialorder %v928, 0.0
          %v1019 = vand.u32 %v928, 2147483648
          %v1020 = vsel %vm1018, %v1019, %v1017
          %v1021 = vrsqrt.pop %v929
          %v1022 = vmul.f32 %v929, %v1021
          %vm1023 = vcmp.eq.f32.partialorder %v929, inf
          %v1024 = vsel %vm1023, %v929, %v1022
          %vm1025 = vcmp.eq.f32.partialorder %v929, 0.0
          %v1026 = vand.u32 %v929, 2147483648
          %v1027 = vsel %vm1025, %v1026, %v1024
          %v1028 = vrsqrt.pop %v930
          %v1029 = vmul.f32 %v930, %v1028
          %vm1030 = vcmp.eq.f32.partialorder %v930, inf
          %v1031 = vsel %vm1030, %v930, %v1029
          %vm1032 = vcmp.eq.f32.partialorder %v930, 0.0
          %v1033 = vand.u32 %v930, 2147483648
          %v1034 = vsel %vm1032, %v1033, %v1031
          %v1035 = vrsqrt.pop %v931
          %v1036 = vmul.f32 %v931, %v1035
          %vm1037 = vcmp.eq.f32.partialorder %v931, inf
          %v1038 = vsel %vm1037, %v931, %v1036
          %vm1039 = vcmp.eq.f32.partialorder %v931, 0.0
          %v1040 = vand.u32 %v931, 2147483648
          %v1041 = vsel %vm1039, %v1040, %v1038
          %v1042 = vrsqrt.pop %v932
          %v1043 = vmul.f32 %v932, %v1042
          %vm1044 = vcmp.eq.f32.partialorder %v932, inf
          %v1045 = vsel %vm1044, %v932, %v1043
          %vm1046 = vcmp.eq.f32.partialorder %v932, 0.0
          %v1047 = vand.u32 %v932, 2147483648
          %v1048 = vsel %vm1046, %v1047, %v1045
          %v1049 = vrsqrt.pop %v933
          %v1050 = vmul.f32 %v933, %v1049
          %vm1051 = vcmp.eq.f32.partialorder %v933, inf
          %v1052 = vsel %vm1051, %v933, %v1050
          %vm1053 = vcmp.eq.f32.partialorder %v933, 0.0
          %v1054 = vand.u32 %v933, 2147483648
          %v1055 = vsel %vm1053, %v1054, %v1052
          %v1056 = vrsqrt.pop %v934
          %v1057 = vmul.f32 %v934, %v1056
          %vm1058 = vcmp.eq.f32.partialorder %v934, inf
          %v1059 = vsel %vm1058, %v934, %v1057
          %vm1060 = vcmp.eq.f32.partialorder %v934, 0.0
          %v1061 = vand.u32 %v934, 2147483648
          %v1062 = vsel %vm1060, %v1061, %v1059
          %v1063 = vrsqrt.pop %v935
          %v1064 = vmul.f32 %v935, %v1063
          %vm1065 = vcmp.eq.f32.partialorder %v935, inf
          %v1066 = vsel %vm1065, %v935, %v1064
          %vm1067 = vcmp.eq.f32.partialorder %v935, 0.0
          %v1068 = vand.u32 %v935, 2147483648
          %v1069 = vsel %vm1067, %v1068, %v1066
          %v1070 = vrsqrt.pop %v936
          %v1071 = vmul.f32 %v936, %v1070
          %vm1072 = vcmp.eq.f32.partialorder %v936, inf
          %v1073 = vsel %vm1072, %v936, %v1071
          %vm1074 = vcmp.eq.f32.partialorder %v936, 0.0
          %v1075 = vand.u32 %v936, 2147483648
          %v1076 = vsel %vm1074, %v1075, %v1073
          %v1077 = vrsqrt.pop %v937
          %v1078 = vmul.f32 %v937, %v1077
          %vm1079 = vcmp.eq.f32.partialorder %v937, inf
          %v1080 = vsel %vm1079, %v937, %v1078
          %vm1081 = vcmp.eq.f32.partialorder %v937, 0.0
          %v1082 = vand.u32 %v937, 2147483648
          %v1083 = vsel %vm1081, %v1082, %v1080
          %v1084 = vrsqrt.pop %v938
          %v1085 = vmul.f32 %v938, %v1084
          %vm1086 = vcmp.eq.f32.partialorder %v938, inf
          %v1087 = vsel %vm1086, %v938, %v1085
          %vm1088 = vcmp.eq.f32.partialorder %v938, 0.0
          %v1089 = vand.u32 %v938, 2147483648
          %v1090 = vsel %vm1088, %v1089, %v1087
          %v1091 = vrsqrt.pop %v939
          %v1092 = vmul.f32 %v939, %v1091
          %vm1093 = vcmp.eq.f32.partialorder %v939, inf
          %v1094 = vsel %vm1093, %v939, %v1092
          %vm1095 = vcmp.eq.f32.partialorder %v939, 0.0
          %v1096 = vand.u32 %v939, 2147483648
          %v1097 = vsel %vm1095, %v1096, %v1094
          %v1098 = vrsqrt.pop %v940
          %v1099 = vmul.f32 %v940, %v1098
          %vm1100 = vcmp.eq.f32.partialorder %v940, inf
          %v1101 = vsel %vm1100, %v940, %v1099
          %vm1102 = vcmp.eq.f32.partialorder %v940, 0.0
          %v1103 = vand.u32 %v940, 2147483648
          %v1104 = vsel %vm1102, %v1103, %v1101
          %v1105 = vrsqrt.pop %v941
          %v1106 = vmul.f32 %v941, %v1105
          %vm1107 = vcmp.eq.f32.partialorder %v941, inf
          %v1108 = vsel %vm1107, %v941, %v1106
          %vm1109 = vcmp.eq.f32.partialorder %v941, 0.0
          %v1110 = vand.u32 %v941, 2147483648
          %v1111 = vsel %vm1109, %v1110, %v1108
          %v1112 = vrsqrt.pop %v942
          %v1113 = vmul.f32 %v942, %v1112
          %vm1114 = vcmp.eq.f32.partialorder %v942, inf
          %v1115 = vsel %vm1114, %v942, %v1113
          %vm1116 = vcmp.eq.f32.partialorder %v942, 0.0
          %v1117 = vand.u32 %v942, 2147483648
          %v1118 = vsel %vm1116, %v1117, %v1115
          %v1119 = vrsqrt.pop %v943
          %v1120 = vmul.f32 %v943, %v1119
          %vm1121 = vcmp.eq.f32.partialorder %v943, inf
          %v1122 = vsel %vm1121, %v943, %v1120
          %vm1123 = vcmp.eq.f32.partialorder %v943, 0.0
          %v1124 = vand.u32 %v943, 2147483648
          %v1125 = vsel %vm1123, %v1124, %v1122
          %v1126 = vrsqrt.pop %v944
          %v1127 = vmul.f32 %v944, %v1126
          %vm1128 = vcmp.eq.f32.partialorder %v944, inf
          %v1129 = vsel %vm1128, %v944, %v1127
          %vm1130 = vcmp.eq.f32.partialorder %v944, 0.0
          %v1131 = vand.u32 %v944, 2147483648
          %v1132 = vsel %vm1130, %v1131, %v1129
          %v1133 = vrsqrt.pop %v945
          %v1134 = vmul.f32 %v945, %v1133
          %vm1135 = vcmp.eq.f32.partialorder %v945, inf
          %v1136 = vsel %vm1135, %v945, %v1134
          %vm1137 = vcmp.eq.f32.partialorder %v945, 0.0
          %v1138 = vand.u32 %v945, 2147483648
          %v1139 = vsel %vm1137, %v1138, %v1136
          %v1140 = vrsqrt.pop %v946
          %v1141 = vmul.f32 %v946, %v1140
          %vm1142 = vcmp.eq.f32.partialorder %v946, inf
          %v1143 = vsel %vm1142, %v946, %v1141
          %vm1144 = vcmp.eq.f32.partialorder %v946, 0.0
          %v1145 = vand.u32 %v946, 2147483648
          %v1146 = vsel %vm1144, %v1145, %v1143
          %v1147 = vrsqrt.pop %v947
          %v1148 = vmul.f32 %v947, %v1147
          %vm1149 = vcmp.eq.f32.partialorder %v947, inf
          %v1150 = vsel %vm1149, %v947, %v1148
          %vm1151 = vcmp.eq.f32.partialorder %v947, 0.0
          %v1152 = vand.u32 %v947, 2147483648
          %v1153 = vsel %vm1151, %v1152, %v1150
          %v1154 = vrsqrt.pop %v948
          %v1155 = vmul.f32 %v948, %v1154
          %vm1156 = vcmp.eq.f32.partialorder %v948, inf
          %v1157 = vsel %vm1156, %v948, %v1155
          %vm1158 = vcmp.eq.f32.partialorder %v948, 0.0
          %v1159 = vand.u32 %v948, 2147483648
          %v1160 = vsel %vm1158, %v1159, %v1157
          %v1161 = vrsqrt.pop %v949
          %v1162 = vmul.f32 %v949, %v1161
          %vm1163 = vcmp.eq.f32.partialorder %v949, inf
          %v1164 = vsel %vm1163, %v949, %v1162
          %vm1165 = vcmp.eq.f32.partialorder %v949, 0.0
          %v1166 = vand.u32 %v949, 2147483648
          %v1167 = vsel %vm1165, %v1166, %v1164
          %v1168 = vrsqrt.pop %v950
          %v1169 = vmul.f32 %v950, %v1168
          %vm1170 = vcmp.eq.f32.partialorder %v950, inf
          %v1171 = vsel %vm1170, %v950, %v1169
          %vm1172 = vcmp.eq.f32.partialorder %v950, 0.0
          %v1173 = vand.u32 %v950, 2147483648
          %v1174 = vsel %vm1172, %v1173, %v1171
          %vm1207 = vcmask 1041409
          %v1208 = vsel %vm1207, %v964, %v957
          %vm1209 = vcmask 1042434
          %v1210 = vsel %vm1209, %v971, %v1208
          %vm1211 = vcmask 1043459
          %v1212 = vsel %vm1211, %v978, %v1210
          %vm1213 = vcmask 1044484
          %v1214 = vsel %vm1213, %v985, %v1212
          %vm1215 = vcmask 1045509
          %v1216 = vsel %vm1215, %v992, %v1214
          %vm1217 = vcmask 1046534
          %v1218 = vsel %vm1217, %v999, %v1216
          %vm1219 = vcmask 1047559
          %v1220 = vsel %vm1219, %v1006, %v1218
          %v1221 = vsel %vm1207, %v1020, %v1013
          %v1222 = vsel %vm1209, %v1027, %v1221
          %v1223 = vsel %vm1211, %v1034, %v1222
          %v1224 = vsel %vm1213, %v1041, %v1223
          %v1225 = vsel %vm1215, %v1048, %v1224
          %v1226 = vsel %vm1217, %v1055, %v1225
          %v1227 = vsel %vm1219, %v1062, %v1226
          %v1228 = vsel %vm1207, %v1076, %v1069
          %v1229 = vsel %vm1209, %v1083, %v1228
          %v1230 = vsel %vm1211, %v1090, %v1229
          %v1231 = vsel %vm1213, %v1097, %v1230
          %v1232 = vsel %vm1215, %v1104, %v1231
          %v1233 = vsel %vm1217, %v1111, %v1232
          %v1234 = vsel %vm1219, %v1118, %v1233
          %v1235 = vsel %vm1207, %v1132, %v1125
          %v1236 = vsel %vm1209, %v1139, %v1235
          %v1237 = vsel %vm1211, %v1146, %v1236
          %v1238 = vsel %vm1213, %v1153, %v1237
          %v1239 = vsel %vm1215, %v1160, %v1238
          %v1240 = vsel %vm1217, %v1167, %v1239
          %v1241 = vsel %vm1219, %v1174, %v1240
          %v1246 = vrot.slane %v1220, 7
          %v1247 = vrot.slane %v1227, 7
          %v1248 = vrot.slane %v1234, 7
          %v1249 = vrot.slane %v1241, 7
          %vm1250 = vcmp.lt.s32.totalorder %v158, 1
          %v1251 = vsel %vm1250, %v1248, %v1249
          %v1252 = vsel %vm1250, %v1247, %v1248
          %v1253 = vsel %vm1250, %v1246, %v1247
          %v1254 = vsel %vm1250, %v1249, %v1246
          %1255 = vrot.lane.b32.xlu0 %v1254, 1
          %v1256 = vpop.permute.xlu0 %1255
          %1257 = vrot.lane.b32.xlu0 %v1253, 1
          %v1258 = vpop.permute.xlu0 %1257
          %1259 = vrot.lane.b32.xlu0 %v1252, 1
          %v1260 = vpop.permute.xlu0 %1259
          %1261 = vrot.lane.b32.xlu0 %v1251, 1
          %v1262 = vpop.permute.xlu0 %1261
          %v1263 = vsel %vm222, %v1256, 0.0
          %v1264 = vsel %vm223, %v1258, 0.0
          %v1265 = vsel %vm224, %v1260, 0.0
          %v1266 = vsel %vm225, %v1262, 0.0
          %s1267 = sld [smem:[#allocation3]]
          %v1268 = vstv %s1267
          %v1269 = vmul.f32 %v1268, %v1263
          %v1270 = vmul.f32 %v1268, %v1264
          %v1271 = vmul.f32 %v1268, %v1265
          %v1272 = vmul.f32 %v1268, %v1266
          %s1273 = sld [smem:[#allocation3 + $0x9]]
          %v1274 = vstv %s1273
          %v1275 = vmul.f32 %v1274, %v1263
          %v1276 = vmul.f32 %v1274, %v1264
          %v1277 = vmul.f32 %v1274, %v1265
          %v1278 = vmul.f32 %v1274, %v1266
          %s1279 = sld [smem:[#allocation3 + $0x12]]
          %v1280 = vstv %s1279
          %v1281 = vmul.f32 %v1280, %v1263
          %v1282 = vmul.f32 %v1280, %v1264
          %v1283 = vmul.f32 %v1280, %v1265
          %v1284 = vmul.f32 %v1280, %v1266
          %s1285 = sld [smem:[#allocation3 + $0x1b]]
          %v1286 = vstv %s1285
          %v1287 = vmul.f32 %v1286, %v1263
          %v1288 = vmul.f32 %v1286, %v1264
          %v1289 = vmul.f32 %v1286, %v1265
          %v1290 = vmul.f32 %v1286, %v1266
          %s1291 = sld [smem:[#allocation3 + $0x24]]
          %v1292 = vstv %s1291
          %v1293 = vmul.f32 %v1292, %v1263
          %v1294 = vmul.f32 %v1292, %v1264
          %v1295 = vmul.f32 %v1292, %v1265
          %v1296 = vmul.f32 %v1292, %v1266
          %s1297 = sld [smem:[#allocation3 + $0x2d]]
          %v1298 = vstv %s1297
          %v1299 = vmul.f32 %v1298, %v1263
          %v1300 = vmul.f32 %v1298, %v1264
          %v1301 = vmul.f32 %v1298, %v1265
          %v1302 = vmul.f32 %v1298, %v1266
          %s1303 = sld [smem:[#allocation3 + $0x36]]
          %v1304 = vstv %s1303
          %v1305 = vmul.f32 %v1304, %v1263
          %v1306 = vmul.f32 %v1304, %v1264
          %v1307 = vmul.f32 %v1304, %v1265
          %v1308 = vmul.f32 %v1304, %v1266
          %s1309 = sld [smem:[#allocation3 + $0x3f]]
          %v1310 = vstv %s1309
          %v1311 = vmul.f32 %v1310, %v1263
          %v1312 = vmul.f32 %v1310, %v1264
          %v1313 = vmul.f32 %v1310, %v1265
          %v1314 = vmul.f32 %v1310, %v1266
          %v1315 = vsel %vm212, %v1254, 0.0
          %v1316 = vsel %vm213, %v1253, 0.0
          %v1317 = vsel %vm214, %v1252, 0.0
          %v1318 = vsel %vm215, %v1251, 0.0
          %s1319 = sld [smem:[#allocation3 + $0x1]]
          %v1320 = vstv %s1319
          %v1321 = vmul.f32 %v1320, %v1315
          %v1322 = vmul.f32 %v1320, %v1316
          %v1323 = vmul.f32 %v1320, %v1317
          %v1324 = vmul.f32 %v1320, %v1318
          %v1325 = vadd.f32 %v1269, %v1321
          %v1326 = vadd.f32 %v1270, %v1322
          %v1327 = vadd.f32 %v1271, %v1323
          %v1328 = vadd.f32 %v1272, %v1324
          %s1329 = sld [smem:[#allocation3 + $0xa]]
          %v1330 = vstv %s1329
          %v1331 = vmul.f32 %v1330, %v1315
          %v1332 = vmul.f32 %v1330, %v1316
          %v1333 = vmul.f32 %v1330, %v1317
          %v1334 = vmul.f32 %v1330, %v1318
          %v1335 = vadd.f32 %v1275, %v1331
          %v1336 = vadd.f32 %v1276, %v1332
          %v1337 = vadd.f32 %v1277, %v1333
          %v1338 = vadd.f32 %v1278, %v1334
          %s1339 = sld [smem:[#allocation3 + $0x13]]
          %v1340 = vstv %s1339
          %v1341 = vmul.f32 %v1340, %v1315
          %v1342 = vmul.f32 %v1340, %v1316
          %v1343 = vmul.f32 %v1340, %v1317
          %v1344 = vmul.f32 %v1340, %v1318
          %v1345 = vadd.f32 %v1281, %v1341
          %v1346 = vadd.f32 %v1282, %v1342
          %v1347 = vadd.f32 %v1283, %v1343
          %v1348 = vadd.f32 %v1284, %v1344
          %s1349 = sld [smem:[#allocation3 + $0x1c]]
          %v1350 = vstv %s1349
          %v1351 = vmul.f32 %v1350, %v1315
          %v1352 = vmul.f32 %v1350, %v1316
          %v1353 = vmul.f32 %v1350, %v1317
          %v1354 = vmul.f32 %v1350, %v1318
          %v1355 = vadd.f32 %v1287, %v1351
          %v1356 = vadd.f32 %v1288, %v1352
          %v1357 = vadd.f32 %v1289, %v1353
          %v1358 = vadd.f32 %v1290, %v1354
          %s1359 = sld [smem:[#allocation3 + $0x25]]
          %v1360 = vstv %s1359
          %v1361 = vmul.f32 %v1360, %v1315
          %v1362 = vmul.f32 %v1360, %v1316
          %v1363 = vmul.f32 %v1360, %v1317
          %v1364 = vmul.f32 %v1360, %v1318
          %v1365 = vadd.f32 %v1293, %v1361
          %v1366 = vadd.f32 %v1294, %v1362
          %v1367 = vadd.f32 %v1295, %v1363
          %v1368 = vadd.f32 %v1296, %v1364
          %s1369 = sld [smem:[#allocation3 + $0x2e]]
          %v1370 = vstv %s1369
          %v1371 = vmul.f32 %v1370, %v1315
          %v1372 = vmul.f32 %v1370, %v1316
          %v1373 = vmul.f32 %v1370, %v1317
          %v1374 = vmul.f32 %v1370, %v1318
          %v1375 = vadd.f32 %v1299, %v1371
          %v1376 = vadd.f32 %v1300, %v1372
          %v1377 = vadd.f32 %v1301, %v1373
          %v1378 = vadd.f32 %v1302, %v1374
          %s1379 = sld [smem:[#allocation3 + $0x37]]
          %v1380 = vstv %s1379
          %v1381 = vmul.f32 %v1380, %v1315
          %v1382 = vmul.f32 %v1380, %v1316
          %v1383 = vmul.f32 %v1380, %v1317
          %v1384 = vmul.f32 %v1380, %v1318
          %v1385 = vadd.f32 %v1305, %v1381
          %v1386 = vadd.f32 %v1306, %v1382
          %v1387 = vadd.f32 %v1307, %v1383
          %v1388 = vadd.f32 %v1308, %v1384
          %s1389 = sld [smem:[#allocation3 + $0x40]]
          %v1390 = vstv %s1389
          %v1391 = vmul.f32 %v1390, %v1315
          %v1392 = vmul.f32 %v1390, %v1316
          %v1393 = vmul.f32 %v1390, %v1317
          %v1394 = vmul.f32 %v1390, %v1318
          %v1395 = vadd.f32 %v1311, %v1391
          %v1396 = vadd.f32 %v1312, %v1392
          %v1397 = vadd.f32 %v1313, %v1393
          %v1398 = vadd.f32 %v1314, %v1394
          %1399 = vrot.lane.b32.xlu0 %v1254, 127
          %v1400 = vpop.permute.xlu0 %1399
          %1401 = vrot.lane.b32.xlu0 %v1253, 127
          %v1402 = vpop.permute.xlu0 %1401
          %1403 = vrot.lane.b32.xlu0 %v1252, 127
          %v1404 = vpop.permute.xlu0 %1403
          %1405 = vrot.lane.b32.xlu0 %v1251, 127
          %v1406 = vpop.permute.xlu0 %1405
          %v1407 = vsel %vm226, %v1400, 0.0
          %v1408 = vsel %vm227, %v1402, 0.0
          %v1409 = vsel %vm228, %v1404, 0.0
          %v1410 = vsel %vm229, %v1406, 0.0
          %s1411 = sld [smem:[#allocation3 + $0x2]]
          %v1412 = vstv %s1411
          %v1413 = vmul.f32 %v1412, %v1407
          %v1414 = vmul.f32 %v1412, %v1408
          %v1415 = vmul.f32 %v1412, %v1409
          %v1416 = vmul.f32 %v1412, %v1410
          %v1417 = vadd.f32 %v1325, %v1413
          %v1418 = vadd.f32 %v1326, %v1414
          %v1419 = vadd.f32 %v1327, %v1415
          %v1420 = vadd.f32 %v1328, %v1416
          %s1421 = sld [smem:[#allocation3 + $0xb]]
          %v1422 = vstv %s1421
          %v1423 = vmul.f32 %v1422, %v1407
          %v1424 = vmul.f32 %v1422, %v1408
          %v1425 = vmul.f32 %v1422, %v1409
          %v1426 = vmul.f32 %v1422, %v1410
          %v1427 = vadd.f32 %v1335, %v1423
          %v1428 = vadd.f32 %v1336, %v1424
          %v1429 = vadd.f32 %v1337, %v1425
          %v1430 = vadd.f32 %v1338, %v1426
          %s1431 = sld [smem:[#allocation3 + $0x14]]
          %v1432 = vstv %s1431
          %v1433 = vmul.f32 %v1432, %v1407
          %v1434 = vmul.f32 %v1432, %v1408
          %v1435 = vmul.f32 %v1432, %v1409
          %v1436 = vmul.f32 %v1432, %v1410
          %v1437 = vadd.f32 %v1345, %v1433
          %v1438 = vadd.f32 %v1346, %v1434
          %v1439 = vadd.f32 %v1347, %v1435
          %v1440 = vadd.f32 %v1348, %v1436
          %s1441 = sld [smem:[#allocation3 + $0x1d]]
          %v1442 = vstv %s1441
          %v1443 = vmul.f32 %v1442, %v1407
          %v1444 = vmul.f32 %v1442, %v1408
          %v1445 = vmul.f32 %v1442, %v1409
          %v1446 = vmul.f32 %v1442, %v1410
          %v1447 = vadd.f32 %v1355, %v1443
          %v1448 = vadd.f32 %v1356, %v1444
          %v1449 = vadd.f32 %v1357, %v1445
          %v1450 = vadd.f32 %v1358, %v1446
          %s1451 = sld [smem:[#allocation3 + $0x26]]
          %v1452 = vstv %s1451
          %v1453 = vmul.f32 %v1452, %v1407
          %v1454 = vmul.f32 %v1452, %v1408
          %v1455 = vmul.f32 %v1452, %v1409
          %v1456 = vmul.f32 %v1452, %v1410
          %v1457 = vadd.f32 %v1365, %v1453
          %v1458 = vadd.f32 %v1366, %v1454
          %v1459 = vadd.f32 %v1367, %v1455
          %v1460 = vadd.f32 %v1368, %v1456
          %s1461 = sld [smem:[#allocation3 + $0x2f]]
          %v1462 = vstv %s1461
          %v1463 = vmul.f32 %v1462, %v1407
          %v1464 = vmul.f32 %v1462, %v1408
          %v1465 = vmul.f32 %v1462, %v1409
          %v1466 = vmul.f32 %v1462, %v1410
          %v1467 = vadd.f32 %v1375, %v1463
          %v1468 = vadd.f32 %v1376, %v1464
          %v1469 = vadd.f32 %v1377, %v1465
          %v1470 = vadd.f32 %v1378, %v1466
          %s1471 = sld [smem:[#allocation3 + $0x38]]
          %v1472 = vstv %s1471
          %v1473 = vmul.f32 %v1472, %v1407
          %v1474 = vmul.f32 %v1472, %v1408
          %v1475 = vmul.f32 %v1472, %v1409
          %v1476 = vmul.f32 %v1472, %v1410
          %v1477 = vadd.f32 %v1385, %v1473
          %v1478 = vadd.f32 %v1386, %v1474
          %v1479 = vadd.f32 %v1387, %v1475
          %v1480 = vadd.f32 %v1388, %v1476
          %s1481 = sld [smem:[#allocation3 + $0x41]]
          %v1482 = vstv %s1481
          %v1483 = vmul.f32 %v1482, %v1407
          %v1484 = vmul.f32 %v1482, %v1408
          %v1485 = vmul.f32 %v1482, %v1409
          %v1486 = vmul.f32 %v1482, %v1410
          %v1487 = vadd.f32 %v1395, %v1483
          %v1488 = vadd.f32 %v1396, %v1484
          %v1489 = vadd.f32 %v1397, %v1485
          %v1490 = vadd.f32 %v1398, %v1486
          %1491 = vrot.lane.b32.xlu0 %v1220, 1
          %v1492 = vpop.permute.xlu0 %1491
          %1493 = vrot.lane.b32.xlu0 %v1227, 1
          %v1494 = vpop.permute.xlu0 %1493
          %1495 = vrot.lane.b32.xlu0 %v1234, 1
          %v1496 = vpop.permute.xlu0 %1495
          %1497 = vrot.lane.b32.xlu0 %v1241, 1
          %v1498 = vpop.permute.xlu0 %1497
          %v1499 = vsel %vm220, %v1492, 0.0
          %v1500 = vsel %vm220, %v1494, 0.0
          %v1501 = vsel %vm220, %v1496, 0.0
          %v1502 = vsel %vm220, %v1498, 0.0
          %s1503 = sld [smem:[#allocation3 + $0x3]]
          %v1504 = vstv %s1503
          %v1505 = vmul.f32 %v1504, %v1499
          %v1506 = vmul.f32 %v1504, %v1500
          %v1507 = vmul.f32 %v1504, %v1501
          %v1508 = vmul.f32 %v1504, %v1502
          %v1509 = vadd.f32 %v1417, %v1505
          %v1510 = vadd.f32 %v1418, %v1506
          %v1511 = vadd.f32 %v1419, %v1507
          %v1512 = vadd.f32 %v1420, %v1508
          %s1513 = sld [smem:[#allocation3 + $0xc]]
          %v1514 = vstv %s1513
          %v1515 = vmul.f32 %v1514, %v1499
          %v1516 = vmul.f32 %v1514, %v1500
          %v1517 = vmul.f32 %v1514, %v1501
          %v1518 = vmul.f32 %v1514, %v1502
          %v1519 = vadd.f32 %v1427, %v1515
          %v1520 = vadd.f32 %v1428, %v1516
          %v1521 = vadd.f32 %v1429, %v1517
          %v1522 = vadd.f32 %v1430, %v1518
          %s1523 = sld [smem:[#allocation3 + $0x15]]
          %v1524 = vstv %s1523
          %v1525 = vmul.f32 %v1524, %v1499
          %v1526 = vmul.f32 %v1524, %v1500
          %v1527 = vmul.f32 %v1524, %v1501
          %v1528 = vmul.f32 %v1524, %v1502
          %v1529 = vadd.f32 %v1437, %v1525
          %v1530 = vadd.f32 %v1438, %v1526
          %v1531 = vadd.f32 %v1439, %v1527
          %v1532 = vadd.f32 %v1440, %v1528
          %s1533 = sld [smem:[#allocation3 + $0x1e]]
          %v1534 = vstv %s1533
          %v1535 = vmul.f32 %v1534, %v1499
          %v1536 = vmul.f32 %v1534, %v1500
          %v1537 = vmul.f32 %v1534, %v1501
          %v1538 = vmul.f32 %v1534, %v1502
          %v1539 = vadd.f32 %v1447, %v1535
          %v1540 = vadd.f32 %v1448, %v1536
          %v1541 = vadd.f32 %v1449, %v1537
          %v1542 = vadd.f32 %v1450, %v1538
          %s1543 = sld [smem:[#allocation3 + $0x27]]
          %v1544 = vstv %s1543
          %v1545 = vmul.f32 %v1544, %v1499
          %v1546 = vmul.f32 %v1544, %v1500
          %v1547 = vmul.f32 %v1544, %v1501
          %v1548 = vmul.f32 %v1544, %v1502
          %v1549 = vadd.f32 %v1457, %v1545
          %v1550 = vadd.f32 %v1458, %v1546
          %v1551 = vadd.f32 %v1459, %v1547
          %v1552 = vadd.f32 %v1460, %v1548
          %s1553 = sld [smem:[#allocation3 + $0x30]]
          %v1554 = vstv %s1553
          %v1555 = vmul.f32 %v1554, %v1499
          %v1556 = vmul.f32 %v1554, %v1500
          %v1557 = vmul.f32 %v1554, %v1501
          %v1558 = vmul.f32 %v1554, %v1502
          %v1559 = vadd.f32 %v1467, %v1555
          %v1560 = vadd.f32 %v1468, %v1556
          %v1561 = vadd.f32 %v1469, %v1557
          %v1562 = vadd.f32 %v1470, %v1558
          %s1563 = sld [smem:[#allocation3 + $0x39]]
          %v1564 = vstv %s1563
          %v1565 = vmul.f32 %v1564, %v1499
          %v1566 = vmul.f32 %v1564, %v1500
          %v1567 = vmul.f32 %v1564, %v1501
          %v1568 = vmul.f32 %v1564, %v1502
          %v1569 = vadd.f32 %v1477, %v1565
          %v1570 = vadd.f32 %v1478, %v1566
          %v1571 = vadd.f32 %v1479, %v1567
          %v1572 = vadd.f32 %v1480, %v1568
          %s1573 = sld [smem:[#allocation3 + $0x42]]
          %v1574 = vstv %s1573
          %v1575 = vmul.f32 %v1574, %v1499
          %v1576 = vmul.f32 %v1574, %v1500
          %v1577 = vmul.f32 %v1574, %v1501
          %v1578 = vmul.f32 %v1574, %v1502
          %v1579 = vadd.f32 %v1487, %v1575
          %v1580 = vadd.f32 %v1488, %v1576
          %v1581 = vadd.f32 %v1489, %v1577
          %v1582 = vadd.f32 %v1490, %v1578
          %s1583 = sld [smem:[#allocation3 + $0x4]]
          %v1584 = vstv %s1583
          %v1585 = vmul.f32 %v1584, %v957
          %v1586 = vmul.f32 %v1584, %v964
          %v1587 = vmul.f32 %v1584, %v971
          %v1588 = vmul.f32 %v1584, %v978
          %v1589 = vmul.f32 %v1584, %v985
          %v1590 = vmul.f32 %v1584, %v992
          %v1591 = vmul.f32 %v1584, %v999
          %v1592 = vmul.f32 %v1584, %v1006
          %v1593 = vmul.f32 %v1584, %v1013
          %v1594 = vmul.f32 %v1584, %v1020
          %v1595 = vmul.f32 %v1584, %v1027
          %v1596 = vmul.f32 %v1584, %v1034
          %v1597 = vmul.f32 %v1584, %v1041
          %v1598 = vmul.f32 %v1584, %v1048
          %v1599 = vmul.f32 %v1584, %v1055
          %v1600 = vmul.f32 %v1584, %v1062
          %v1601 = vmul.f32 %v1584, %v1069
          %v1602 = vmul.f32 %v1584, %v1076
          %v1603 = vmul.f32 %v1584, %v1083
          %v1604 = vmul.f32 %v1584, %v1090
          %v1605 = vmul.f32 %v1584, %v1097
          %v1606 = vmul.f32 %v1584, %v1104
          %v1607 = vmul.f32 %v1584, %v1111
          %v1608 = vmul.f32 %v1584, %v1118
          %v1609 = vmul.f32 %v1584, %v1125
          %v1610 = vmul.f32 %v1584, %v1132
          %v1611 = vmul.f32 %v1584, %v1139
          %v1612 = vmul.f32 %v1584, %v1146
          %v1613 = vmul.f32 %v1584, %v1153
          %v1614 = vmul.f32 %v1584, %v1160
          %v1615 = vmul.f32 %v1584, %v1167
          %v1616 = vmul.f32 %v1584, %v1174
          %v1649 = vsel %vm1207, %v1586, %v1585
          %v1650 = vsel %vm1209, %v1587, %v1649
          %v1651 = vsel %vm1211, %v1588, %v1650
          %v1652 = vsel %vm1213, %v1589, %v1651
          %v1653 = vsel %vm1215, %v1590, %v1652
          %v1654 = vsel %vm1217, %v1591, %v1653
          %v1655 = vsel %vm1219, %v1592, %v1654
          %v1656 = vsel %vm1207, %v1594, %v1593
          %v1657 = vsel %vm1209, %v1595, %v1656
          %v1658 = vsel %vm1211, %v1596, %v1657
          %v1659 = vsel %vm1213, %v1597, %v1658
          %v1660 = vsel %vm1215, %v1598, %v1659
          %v1661 = vsel %vm1217, %v1599, %v1660
          %v1662 = vsel %vm1219, %v1600, %v1661
          %v1663 = vsel %vm1207, %v1602, %v1601
          %v1664 = vsel %vm1209, %v1603, %v1663
          %v1665 = vsel %vm1211, %v1604, %v1664
          %v1666 = vsel %vm1213, %v1605, %v1665
          %v1667 = vsel %vm1215, %v1606, %v1666
          %v1668 = vsel %vm1217, %v1607, %v1667
          %v1669 = vsel %vm1219, %v1608, %v1668
          %v1670 = vsel %vm1207, %v1610, %v1609
          %v1671 = vsel %vm1209, %v1611, %v1670
          %v1672 = vsel %vm1211, %v1612, %v1671
          %v1673 = vsel %vm1213, %v1613, %v1672
          %v1674 = vsel %vm1215, %v1614, %v1673
          %v1675 = vsel %vm1217, %v1615, %v1674
          %v1676 = vsel %vm1219, %v1616, %v1675
          %v1681 = vadd.f32 %v1509, %v1655
          %v1682 = vadd.f32 %v1510, %v1662
          %v1683 = vadd.f32 %v1511, %v1669
          %v1684 = vadd.f32 %v1512, %v1676
          %s1685 = sld [smem:[#allocation3 + $0xd]]
          %v1686 = vstv %s1685
          %v1687 = vmul.f32 %v1686, %v957
          %v1688 = vmul.f32 %v1686, %v964
          %v1689 = vmul.f32 %v1686, %v971
          %v1690 = vmul.f32 %v1686, %v978
          %v1691 = vmul.f32 %v1686, %v985
          %v1692 = vmul.f32 %v1686, %v992
          %v1693 = vmul.f32 %v1686, %v999
          %v1694 = vmul.f32 %v1686, %v1006
          %v1695 = vmul.f32 %v1686, %v1013
          %v1696 = vmul.f32 %v1686, %v1020
          %v1697 = vmul.f32 %v1686, %v1027
          %v1698 = vmul.f32 %v1686, %v1034
          %v1699 = vmul.f32 %v1686, %v1041
          %v1700 = vmul.f32 %v1686, %v1048
          %v1701 = vmul.f32 %v1686, %v1055
          %v1702 = vmul.f32 %v1686, %v1062
          %v1703 = vmul.f32 %v1686, %v1069
          %v1704 = vmul.f32 %v1686, %v1076
          %v1705 = vmul.f32 %v1686, %v1083
          %v1706 = vmul.f32 %v1686, %v1090
          %v1707 = vmul.f32 %v1686, %v1097
          %v1708 = vmul.f32 %v1686, %v1104
          %v1709 = vmul.f32 %v1686, %v1111
          %v1710 = vmul.f32 %v1686, %v1118
          %v1711 = vmul.f32 %v1686, %v1125
          %v1712 = vmul.f32 %v1686, %v1132
          %v1713 = vmul.f32 %v1686, %v1139
          %v1714 = vmul.f32 %v1686, %v1146
          %v1715 = vmul.f32 %v1686, %v1153
          %v1716 = vmul.f32 %v1686, %v1160
          %v1717 = vmul.f32 %v1686, %v1167
          %v1718 = vmul.f32 %v1686, %v1174
          %v1751 = vsel %vm1207, %v1688, %v1687
          %v1752 = vsel %vm1209, %v1689, %v1751
          %v1753 = vsel %vm1211, %v1690, %v1752
          %v1754 = vsel %vm1213, %v1691, %v1753
          %v1755 = vsel %vm1215, %v1692, %v1754
          %v1756 = vsel %vm1217, %v1693, %v1755
          %v1757 = vsel %vm1219, %v1694, %v1756
          %v1758 = vsel %vm1207, %v1696, %v1695
          %v1759 = vsel %vm1209, %v1697, %v1758
          %v1760 = vsel %vm1211, %v1698, %v1759
          %v1761 = vsel %vm1213, %v1699, %v1760
          %v1762 = vsel %vm1215, %v1700, %v1761
          %v1763 = vsel %vm1217, %v1701, %v1762
          %v1764 = vsel %vm1219, %v1702, %v1763
          %v1765 = vsel %vm1207, %v1704, %v1703
          %v1766 = vsel %vm1209, %v1705, %v1765
          %v1767 = vsel %vm1211, %v1706, %v1766
          %v1768 = vsel %vm1213, %v1707, %v1767
          %v1769 = vsel %vm1215, %v1708, %v1768
          %v1770 = vsel %vm1217, %v1709, %v1769
          %v1771 = vsel %vm1219, %v1710, %v1770
          %v1772 = vsel %vm1207, %v1712, %v1711
          %v1773 = vsel %vm1209, %v1713, %v1772
          %v1774 = vsel %vm1211, %v1714, %v1773
          %v1775 = vsel %vm1213, %v1715, %v1774
          %v1776 = vsel %vm1215, %v1716, %v1775
          %v1777 = vsel %vm1217, %v1717, %v1776
          %v1778 = vsel %vm1219, %v1718, %v1777
          %v1783 = vadd.f32 %v1519, %v1757
          %v1784 = vadd.f32 %v1520, %v1764
          %v1785 = vadd.f32 %v1521, %v1771
          %v1786 = vadd.f32 %v1522, %v1778
          %s1787 = sld [smem:[#allocation3 + $0x16]]
          %v1788 = vstv %s1787
          %v1789 = vmul.f32 %v1788, %v957
          %v1790 = vmul.f32 %v1788, %v964
          %v1791 = vmul.f32 %v1788, %v971
          %v1792 = vmul.f32 %v1788, %v978
          %v1793 = vmul.f32 %v1788, %v985
          %v1794 = vmul.f32 %v1788, %v992
          %v1795 = vmul.f32 %v1788, %v999
          %v1796 = vmul.f32 %v1788, %v1006
          %v1797 = vmul.f32 %v1788, %v1013
          %v1798 = vmul.f32 %v1788, %v1020
          %v1799 = vmul.f32 %v1788, %v1027
          %v1800 = vmul.f32 %v1788, %v1034
          %v1801 = vmul.f32 %v1788, %v1041
          %v1802 = vmul.f32 %v1788, %v1048
          %v1803 = vmul.f32 %v1788, %v1055
          %v1804 = vmul.f32 %v1788, %v1062
          %v1805 = vmul.f32 %v1788, %v1069
          %v1806 = vmul.f32 %v1788, %v1076
          %v1807 = vmul.f32 %v1788, %v1083
          %v1808 = vmul.f32 %v1788, %v1090
          %v1809 = vmul.f32 %v1788, %v1097
          %v1810 = vmul.f32 %v1788, %v1104
          %v1811 = vmul.f32 %v1788, %v1111
          %v1812 = vmul.f32 %v1788, %v1118
          %v1813 = vmul.f32 %v1788, %v1125
          %v1814 = vmul.f32 %v1788, %v1132
          %v1815 = vmul.f32 %v1788, %v1139
          %v1816 = vmul.f32 %v1788, %v1146
          %v1817 = vmul.f32 %v1788, %v1153
          %v1818 = vmul.f32 %v1788, %v1160
          %v1819 = vmul.f32 %v1788, %v1167
          %v1820 = vmul.f32 %v1788, %v1174
          %v1853 = vsel %vm1207, %v1790, %v1789
          %v1854 = vsel %vm1209, %v1791, %v1853
          %v1855 = vsel %vm1211, %v1792, %v1854
          %v1856 = vsel %vm1213, %v1793, %v1855
          %v1857 = vsel %vm1215, %v1794, %v1856
          %v1858 = vsel %vm1217, %v1795, %v1857
          %v1859 = vsel %vm1219, %v1796, %v1858
          %v1860 = vsel %vm1207, %v1798, %v1797
          %v1861 = vsel %vm1209, %v1799, %v1860
          %v1862 = vsel %vm1211, %v1800, %v1861
          %v1863 = vsel %vm1213, %v1801, %v1862
          %v1864 = vsel %vm1215, %v1802, %v1863
          %v1865 = vsel %vm1217, %v1803, %v1864
          %v1866 = vsel %vm1219, %v1804, %v1865
          %v1867 = vsel %vm1207, %v1806, %v1805
          %v1868 = vsel %vm1209, %v1807, %v1867
          %v1869 = vsel %vm1211, %v1808, %v1868
          %v1870 = vsel %vm1213, %v1809, %v1869
          %v1871 = vsel %vm1215, %v1810, %v1870
          %v1872 = vsel %vm1217, %v1811, %v1871
          %v1873 = vsel %vm1219, %v1812, %v1872
          %v1874 = vsel %vm1207, %v1814, %v1813
          %v1875 = vsel %vm1209, %v1815, %v1874
          %v1876 = vsel %vm1211, %v1816, %v1875
          %v1877 = vsel %vm1213, %v1817, %v1876
          %v1878 = vsel %vm1215, %v1818, %v1877
          %v1879 = vsel %vm1217, %v1819, %v1878
          %v1880 = vsel %vm1219, %v1820, %v1879
          %v1885 = vadd.f32 %v1529, %v1859
          %v1886 = vadd.f32 %v1530, %v1866
          %v1887 = vadd.f32 %v1531, %v1873
          %v1888 = vadd.f32 %v1532, %v1880
          %s1889 = sld [smem:[#allocation3 + $0x1f]]
          %v1890 = vstv %s1889
          %v1891 = vmul.f32 %v1890, %v957
          %v1892 = vmul.f32 %v1890, %v964
          %v1893 = vmul.f32 %v1890, %v971
          %v1894 = vmul.f32 %v1890, %v978
          %v1895 = vmul.f32 %v1890, %v985
          %v1896 = vmul.f32 %v1890, %v992
          %v1897 = vmul.f32 %v1890, %v999
          %v1898 = vmul.f32 %v1890, %v1006
          %v1899 = vmul.f32 %v1890, %v1013
          %v1900 = vmul.f32 %v1890, %v1020
          %v1901 = vmul.f32 %v1890, %v1027
          %v1902 = vmul.f32 %v1890, %v1034
          %v1903 = vmul.f32 %v1890, %v1041
          %v1904 = vmul.f32 %v1890, %v1048
          %v1905 = vmul.f32 %v1890, %v1055
          %v1906 = vmul.f32 %v1890, %v1062
          %v1907 = vmul.f32 %v1890, %v1069
          %v1908 = vmul.f32 %v1890, %v1076
          %v1909 = vmul.f32 %v1890, %v1083
          %v1910 = vmul.f32 %v1890, %v1090
          %v1911 = vmul.f32 %v1890, %v1097
          %v1912 = vmul.f32 %v1890, %v1104
          %v1913 = vmul.f32 %v1890, %v1111
          %v1914 = vmul.f32 %v1890, %v1118
          %v1915 = vmul.f32 %v1890, %v1125
          %v1916 = vmul.f32 %v1890, %v1132
          %v1917 = vmul.f32 %v1890, %v1139
          %v1918 = vmul.f32 %v1890, %v1146
          %v1919 = vmul.f32 %v1890, %v1153
          %v1920 = vmul.f32 %v1890, %v1160
          %v1921 = vmul.f32 %v1890, %v1167
          %v1922 = vmul.f32 %v1890, %v1174
          %v1955 = vsel %vm1207, %v1892, %v1891
          %v1956 = vsel %vm1209, %v1893, %v1955
          %v1957 = vsel %vm1211, %v1894, %v1956
          %v1958 = vsel %vm1213, %v1895, %v1957
          %v1959 = vsel %vm1215, %v1896, %v1958
          %v1960 = vsel %vm1217, %v1897, %v1959
          %v1961 = vsel %vm1219, %v1898, %v1960
          %v1962 = vsel %vm1207, %v1900, %v1899
          %v1963 = vsel %vm1209, %v1901, %v1962
          %v1964 = vsel %vm1211, %v1902, %v1963
          %v1965 = vsel %vm1213, %v1903, %v1964
          %v1966 = vsel %vm1215, %v1904, %v1965
          %v1967 = vsel %vm1217, %v1905, %v1966
          %v1968 = vsel %vm1219, %v1906, %v1967
          %v1969 = vsel %vm1207, %v1908, %v1907
          %v1970 = vsel %vm1209, %v1909, %v1969
          %v1971 = vsel %vm1211, %v1910, %v1970
          %v1972 = vsel %vm1213, %v1911, %v1971
          %v1973 = vsel %vm1215, %v1912, %v1972
          %v1974 = vsel %vm1217, %v1913, %v1973
          %v1975 = vsel %vm1219, %v1914, %v1974
          %v1976 = vsel %vm1207, %v1916, %v1915
          %v1977 = vsel %vm1209, %v1917, %v1976
          %v1978 = vsel %vm1211, %v1918, %v1977
          %v1979 = vsel %vm1213, %v1919, %v1978
          %v1980 = vsel %vm1215, %v1920, %v1979
          %v1981 = vsel %vm1217, %v1921, %v1980
          %v1982 = vsel %vm1219, %v1922, %v1981
          %v1987 = vadd.f32 %v1539, %v1961
          %v1988 = vadd.f32 %v1540, %v1968
          %v1989 = vadd.f32 %v1541, %v1975
          %v1990 = vadd.f32 %v1542, %v1982
          %s1991 = sld [smem:[#allocation3 + $0x28]]
          %v1992 = vstv %s1991
          %v1993 = vmul.f32 %v1992, %v957
          %v1994 = vmul.f32 %v1992, %v964
          %v1995 = vmul.f32 %v1992, %v971
          %v1996 = vmul.f32 %v1992, %v978
          %v1997 = vmul.f32 %v1992, %v985
          %v1998 = vmul.f32 %v1992, %v992
          %v1999 = vmul.f32 %v1992, %v999
          %v2000 = vmul.f32 %v1992, %v1006
          %v2001 = vmul.f32 %v1992, %v1013
          %v2002 = vmul.f32 %v1992, %v1020
          %v2003 = vmul.f32 %v1992, %v1027
          %v2004 = vmul.f32 %v1992, %v1034
          %v2005 = vmul.f32 %v1992, %v1041
          %v2006 = vmul.f32 %v1992, %v1048
          %v2007 = vmul.f32 %v1992, %v1055
          %v2008 = vmul.f32 %v1992, %v1062
          %v2009 = vmul.f32 %v1992, %v1069
          %v2010 = vmul.f32 %v1992, %v1076
          %v2011 = vmul.f32 %v1992, %v1083
          %v2012 = vmul.f32 %v1992, %v1090
          %v2013 = vmul.f32 %v1992, %v1097
          %v2014 = vmul.f32 %v1992, %v1104
          %v2015 = vmul.f32 %v1992, %v1111
          %v2016 = vmul.f32 %v1992, %v1118
          %v2017 = vmul.f32 %v1992, %v1125
          %v2018 = vmul.f32 %v1992, %v1132
          %v2019 = vmul.f32 %v1992, %v1139
          %v2020 = vmul.f32 %v1992, %v1146
          %v2021 = vmul.f32 %v1992, %v1153
          %v2022 = vmul.f32 %v1992, %v1160
          %v2023 = vmul.f32 %v1992, %v1167
          %v2024 = vmul.f32 %v1992, %v1174
          %v2057 = vsel %vm1207, %v1994, %v1993
          %v2058 = vsel %vm1209, %v1995, %v2057
          %v2059 = vsel %vm1211, %v1996, %v2058
          %v2060 = vsel %vm1213, %v1997, %v2059
          %v2061 = vsel %vm1215, %v1998, %v2060
          %v2062 = vsel %vm1217, %v1999, %v2061
          %v2063 = vsel %vm1219, %v2000, %v2062
          %v2064 = vsel %vm1207, %v2002, %v2001
          %v2065 = vsel %vm1209, %v2003, %v2064
          %v2066 = vsel %vm1211, %v2004, %v2065
          %v2067 = vsel %vm1213, %v2005, %v2066
          %v2068 = vsel %vm1215, %v2006, %v2067
          %v2069 = vsel %vm1217, %v2007, %v2068
          %v2070 = vsel %vm1219, %v2008, %v2069
          %v2071 = vsel %vm1207, %v2010, %v2009
          %v2072 = vsel %vm1209, %v2011, %v2071
          %v2073 = vsel %vm1211, %v2012, %v2072
          %v2074 = vsel %vm1213, %v2013, %v2073
          %v2075 = vsel %vm1215, %v2014, %v2074
          %v2076 = vsel %vm1217, %v2015, %v2075
          %v2077 = vsel %vm1219, %v2016, %v2076
          %v2078 = vsel %vm1207, %v2018, %v2017
          %v2079 = vsel %vm1209, %v2019, %v2078
          %v2080 = vsel %vm1211, %v2020, %v2079
          %v2081 = vsel %vm1213, %v2021, %v2080
          %v2082 = vsel %vm1215, %v2022, %v2081
          %v2083 = vsel %vm1217, %v2023, %v2082
          %v2084 = vsel %vm1219, %v2024, %v2083
          %v2089 = vadd.f32 %v1549, %v2063
          %v2090 = vadd.f32 %v1550, %v2070
          %v2091 = vadd.f32 %v1551, %v2077
          %v2092 = vadd.f32 %v1552, %v2084
          %s2093 = sld [smem:[#allocation3 + $0x31]]
          %v2094 = vstv %s2093
          %v2095 = vmul.f32 %v2094, %v957
          %v2096 = vmul.f32 %v2094, %v964
          %v2097 = vmul.f32 %v2094, %v971
          %v2098 = vmul.f32 %v2094, %v978
          %v2099 = vmul.f32 %v2094, %v985
          %v2100 = vmul.f32 %v2094, %v992
          %v2101 = vmul.f32 %v2094, %v999
          %v2102 = vmul.f32 %v2094, %v1006
          %v2103 = vmul.f32 %v2094, %v1013
          %v2104 = vmul.f32 %v2094, %v1020
          %v2105 = vmul.f32 %v2094, %v1027
          %v2106 = vmul.f32 %v2094, %v1034
          %v2107 = vmul.f32 %v2094, %v1041
          %v2108 = vmul.f32 %v2094, %v1048
          %v2109 = vmul.f32 %v2094, %v1055
          %v2110 = vmul.f32 %v2094, %v1062
          %v2111 = vmul.f32 %v2094, %v1069
          %v2112 = vmul.f32 %v2094, %v1076
          %v2113 = vmul.f32 %v2094, %v1083
          %v2114 = vmul.f32 %v2094, %v1090
          %v2115 = vmul.f32 %v2094, %v1097
          %v2116 = vmul.f32 %v2094, %v1104
          %v2117 = vmul.f32 %v2094, %v1111
          %v2118 = vmul.f32 %v2094, %v1118
          %v2119 = vmul.f32 %v2094, %v1125
          %v2120 = vmul.f32 %v2094, %v1132
          %v2121 = vmul.f32 %v2094, %v1139
          %v2122 = vmul.f32 %v2094, %v1146
          %v2123 = vmul.f32 %v2094, %v1153
          %v2124 = vmul.f32 %v2094, %v1160
          %v2125 = vmul.f32 %v2094, %v1167
          %v2126 = vmul.f32 %v2094, %v1174
          %v2159 = vsel %vm1207, %v2096, %v2095
          %v2160 = vsel %vm1209, %v2097, %v2159
          %v2161 = vsel %vm1211, %v2098, %v2160
          %v2162 = vsel %vm1213, %v2099, %v2161
          %v2163 = vsel %vm1215, %v2100, %v2162
          %v2164 = vsel %vm1217, %v2101, %v2163
          %v2165 = vsel %vm1219, %v2102, %v2164
          %v2166 = vsel %vm1207, %v2104, %v2103
          %v2167 = vsel %vm1209, %v2105, %v2166
          %v2168 = vsel %vm1211, %v2106, %v2167
          %v2169 = vsel %vm1213, %v2107, %v2168
          %v2170 = vsel %vm1215, %v2108, %v2169
          %v2171 = vsel %vm1217, %v2109, %v2170
          %v2172 = vsel %vm1219, %v2110, %v2171
          %v2173 = vsel %vm1207, %v2112, %v2111
          %v2174 = vsel %vm1209, %v2113, %v2173
          %v2175 = vsel %vm1211, %v2114, %v2174
          %v2176 = vsel %vm1213, %v2115, %v2175
          %v2177 = vsel %vm1215, %v2116, %v2176
          %v2178 = vsel %vm1217, %v2117, %v2177
          %v2179 = vsel %vm1219, %v2118, %v2178
          %v2180 = vsel %vm1207, %v2120, %v2119
          %v2181 = vsel %vm1209, %v2121, %v2180
          %v2182 = vsel %vm1211, %v2122, %v2181
          %v2183 = vsel %vm1213, %v2123, %v2182
          %v2184 = vsel %vm1215, %v2124, %v2183
          %v2185 = vsel %vm1217, %v2125, %v2184
          %v2186 = vsel %vm1219, %v2126, %v2185
          %v2191 = vadd.f32 %v1559, %v2165
          %v2192 = vadd.f32 %v1560, %v2172
          %v2193 = vadd.f32 %v1561, %v2179
          %v2194 = vadd.f32 %v1562, %v2186
          %s2195 = sld [smem:[#allocation3 + $0x3a]]
          %v2196 = vstv %s2195
          %v2197 = vmul.f32 %v2196, %v957
          %v2198 = vmul.f32 %v2196, %v964
          %v2199 = vmul.f32 %v2196, %v971
          %v2200 = vmul.f32 %v2196, %v978
          %v2201 = vmul.f32 %v2196, %v985
          %v2202 = vmul.f32 %v2196, %v992
          %v2203 = vmul.f32 %v2196, %v999
          %v2204 = vmul.f32 %v2196, %v1006
          %v2205 = vmul.f32 %v2196, %v1013
          %v2206 = vmul.f32 %v2196, %v1020
          %v2207 = vmul.f32 %v2196, %v1027
          %v2208 = vmul.f32 %v2196, %v1034
          %v2209 = vmul.f32 %v2196, %v1041
          %v2210 = vmul.f32 %v2196, %v1048
          %v2211 = vmul.f32 %v2196, %v1055
          %v2212 = vmul.f32 %v2196, %v1062
          %v2213 = vmul.f32 %v2196, %v1069
          %v2214 = vmul.f32 %v2196, %v1076
          %v2215 = vmul.f32 %v2196, %v1083
          %v2216 = vmul.f32 %v2196, %v1090
          %v2217 = vmul.f32 %v2196, %v1097
          %v2218 = vmul.f32 %v2196, %v1104
          %v2219 = vmul.f32 %v2196, %v1111
          %v2220 = vmul.f32 %v2196, %v1118
          %v2221 = vmul.f32 %v2196, %v1125
          %v2222 = vmul.f32 %v2196, %v1132
          %v2223 = vmul.f32 %v2196, %v1139
          %v2224 = vmul.f32 %v2196, %v1146
          %v2225 = vmul.f32 %v2196, %v1153
          %v2226 = vmul.f32 %v2196, %v1160
          %v2227 = vmul.f32 %v2196, %v1167
          %v2228 = vmul.f32 %v2196, %v1174
          %v2261 = vsel %vm1207, %v2198, %v2197
          %v2262 = vsel %vm1209, %v2199, %v2261
          %v2263 = vsel %vm1211, %v2200, %v2262
          %v2264 = vsel %vm1213, %v2201, %v2263
          %v2265 = vsel %vm1215, %v2202, %v2264
          %v2266 = vsel %vm1217, %v2203, %v2265
          %v2267 = vsel %vm1219, %v2204, %v2266
          %v2268 = vsel %vm1207, %v2206, %v2205
          %v2269 = vsel %vm1209, %v2207, %v2268
          %v2270 = vsel %vm1211, %v2208, %v2269
          %v2271 = vsel %vm1213, %v2209, %v2270
          %v2272 = vsel %vm1215, %v2210, %v2271
          %v2273 = vsel %vm1217, %v2211, %v2272
          %v2274 = vsel %vm1219, %v2212, %v2273
          %v2275 = vsel %vm1207, %v2214, %v2213
          %v2276 = vsel %vm1209, %v2215, %v2275
          %v2277 = vsel %vm1211, %v2216, %v2276
          %v2278 = vsel %vm1213, %v2217, %v2277
          %v2279 = vsel %vm1215, %v2218, %v2278
          %v2280 = vsel %vm1217, %v2219, %v2279
          %v2281 = vsel %vm1219, %v2220, %v2280
          %v2282 = vsel %vm1207, %v2222, %v2221
          %v2283 = vsel %vm1209, %v2223, %v2282
          %v2284 = vsel %vm1211, %v2224, %v2283
          %v2285 = vsel %vm1213, %v2225, %v2284
          %v2286 = vsel %vm1215, %v2226, %v2285
          %v2287 = vsel %vm1217, %v2227, %v2286
          %v2288 = vsel %vm1219, %v2228, %v2287
          %v2293 = vadd.f32 %v1569, %v2267
          %v2294 = vadd.f32 %v1570, %v2274
          %v2295 = vadd.f32 %v1571, %v2281
          %v2296 = vadd.f32 %v1572, %v2288
          %s2297 = sld [smem:[#allocation3 + $0x43]]
          %v2298 = vstv %s2297
          %v2299 = vmul.f32 %v2298, %v957
          %v2300 = vmul.f32 %v2298, %v964
          %v2301 = vmul.f32 %v2298, %v971
          %v2302 = vmul.f32 %v2298, %v978
          %v2303 = vmul.f32 %v2298, %v985
          %v2304 = vmul.f32 %v2298, %v992
          %v2305 = vmul.f32 %v2298, %v999
          %v2306 = vmul.f32 %v2298, %v1006
          %v2307 = vmul.f32 %v2298, %v1013
          %v2308 = vmul.f32 %v2298, %v1020
          %v2309 = vmul.f32 %v2298, %v1027
          %v2310 = vmul.f32 %v2298, %v1034
          %v2311 = vmul.f32 %v2298, %v1041
          %v2312 = vmul.f32 %v2298, %v1048
          %v2313 = vmul.f32 %v2298, %v1055
          %v2314 = vmul.f32 %v2298, %v1062
          %v2315 = vmul.f32 %v2298, %v1069
          %v2316 = vmul.f32 %v2298, %v1076
          %v2317 = vmul.f32 %v2298, %v1083
          %v2318 = vmul.f32 %v2298, %v1090
          %v2319 = vmul.f32 %v2298, %v1097
          %v2320 = vmul.f32 %v2298, %v1104
          %v2321 = vmul.f32 %v2298, %v1111
          %v2322 = vmul.f32 %v2298, %v1118
          %v2323 = vmul.f32 %v2298, %v1125
          %v2324 = vmul.f32 %v2298, %v1132
          %v2325 = vmul.f32 %v2298, %v1139
          %v2326 = vmul.f32 %v2298, %v1146
          %v2327 = vmul.f32 %v2298, %v1153
          %v2328 = vmul.f32 %v2298, %v1160
          %v2329 = vmul.f32 %v2298, %v1167
          %v2330 = vmul.f32 %v2298, %v1174
          %v2363 = vsel %vm1207, %v2300, %v2299
          %v2364 = vsel %vm1209, %v2301, %v2363
          %v2365 = vsel %vm1211, %v2302, %v2364
          %v2366 = vsel %vm1213, %v2303, %v2365
          %v2367 = vsel %vm1215, %v2304, %v2366
          %v2368 = vsel %vm1217, %v2305, %v2367
          %v2369 = vsel %vm1219, %v2306, %v2368
          %v2370 = vsel %vm1207, %v2308, %v2307
          %v2371 = vsel %vm1209, %v2309, %v2370
          %v2372 = vsel %vm1211, %v2310, %v2371
          %v2373 = vsel %vm1213, %v2311, %v2372
          %v2374 = vsel %vm1215, %v2312, %v2373
          %v2375 = vsel %vm1217, %v2313, %v2374
          %v2376 = vsel %vm1219, %v2314, %v2375
          %v2377 = vsel %vm1207, %v2316, %v2315
          %v2378 = vsel %vm1209, %v2317, %v2377
          %v2379 = vsel %vm1211, %v2318, %v2378
          %v2380 = vsel %vm1213, %v2319, %v2379
          %v2381 = vsel %vm1215, %v2320, %v2380
          %v2382 = vsel %vm1217, %v2321, %v2381
          %v2383 = vsel %vm1219, %v2322, %v2382
          %v2384 = vsel %vm1207, %v2324, %v2323
          %v2385 = vsel %vm1209, %v2325, %v2384
          %v2386 = vsel %vm1211, %v2326, %v2385
          %v2387 = vsel %vm1213, %v2327, %v2386
          %v2388 = vsel %vm1215, %v2328, %v2387
          %v2389 = vsel %vm1217, %v2329, %v2388
          %v2390 = vsel %vm1219, %v2330, %v2389
          %v2395 = vadd.f32 %v1579, %v2369
          %v2396 = vadd.f32 %v1580, %v2376
          %v2397 = vadd.f32 %v1581, %v2383
          %v2398 = vadd.f32 %v1582, %v2390
          %2399 = vrot.lane.b32.xlu0 %v1220, 127
          %v2400 = vpop.permute.xlu0 %2399
          %2401 = vrot.lane.b32.xlu0 %v1227, 127
          %v2402 = vpop.permute.xlu0 %2401
          %2403 = vrot.lane.b32.xlu0 %v1234, 127
          %v2404 = vpop.permute.xlu0 %2403
          %2405 = vrot.lane.b32.xlu0 %v1241, 127
          %v2406 = vpop.permute.xlu0 %2405
          %v2407 = vsel %vm221, %v2400, 0.0
          %v2408 = vsel %vm221, %v2402, 0.0
          %v2409 = vsel %vm221, %v2404, 0.0
          %v2410 = vsel %vm221, %v2406, 0.0
          %s2411 = sld [smem:[#allocation3 + $0x5]]
          %v2412 = vstv %s2411
          %v2413 = vmul.f32 %v2412, %v2407
          %v2414 = vmul.f32 %v2412, %v2408
          %v2415 = vmul.f32 %v2412, %v2409
          %v2416 = vmul.f32 %v2412, %v2410
          %v2417 = vadd.f32 %v1681, %v2413
          %v2418 = vadd.f32 %v1682, %v2414
          %v2419 = vadd.f32 %v1683, %v2415
          %v2420 = vadd.f32 %v1684, %v2416
          %s2421 = sld [smem:[#allocation3 + $0xe]]
          %v2422 = vstv %s2421
          %v2423 = vmul.f32 %v2422, %v2407
          %v2424 = vmul.f32 %v2422, %v2408
          %v2425 = vmul.f32 %v2422, %v2409
          %v2426 = vmul.f32 %v2422, %v2410
          %v2427 = vadd.f32 %v1783, %v2423
          %v2428 = vadd.f32 %v1784, %v2424
          %v2429 = vadd.f32 %v1785, %v2425
          %v2430 = vadd.f32 %v1786, %v2426
          %s2431 = sld [smem:[#allocation3 + $0x17]]
          %v2432 = vstv %s2431
          %v2433 = vmul.f32 %v2432, %v2407
          %v2434 = vmul.f32 %v2432, %v2408
          %v2435 = vmul.f32 %v2432, %v2409
          %v2436 = vmul.f32 %v2432, %v2410
          %v2437 = vadd.f32 %v1885, %v2433
          %v2438 = vadd.f32 %v1886, %v2434
          %v2439 = vadd.f32 %v1887, %v2435
          %v2440 = vadd.f32 %v1888, %v2436
          %s2441 = sld [smem:[#allocation3 + $0x20]]
          %v2442 = vstv %s2441
          %v2443 = vmul.f32 %v2442, %v2407
          %v2444 = vmul.f32 %v2442, %v2408
          %v2445 = vmul.f32 %v2442, %v2409
          %v2446 = vmul.f32 %v2442, %v2410
          %v2447 = vadd.f32 %v1987, %v2443
          %v2448 = vadd.f32 %v1988, %v2444
          %v2449 = vadd.f32 %v1989, %v2445
          %v2450 = vadd.f32 %v1990, %v2446
          %s2451 = sld [smem:[#allocation3 + $0x29]]
          %v2452 = vstv %s2451
          %v2453 = vmul.f32 %v2452, %v2407
          %v2454 = vmul.f32 %v2452, %v2408
          %v2455 = vmul.f32 %v2452, %v2409
          %v2456 = vmul.f32 %v2452, %v2410
          %v2457 = vadd.f32 %v2089, %v2453
          %v2458 = vadd.f32 %v2090, %v2454
          %v2459 = vadd.f32 %v2091, %v2455
          %v2460 = vadd.f32 %v2092, %v2456
          %s2461 = sld [smem:[#allocation3 + $0x32]]
          %v2462 = vstv %s2461
          %v2463 = vmul.f32 %v2462, %v2407
          %v2464 = vmul.f32 %v2462, %v2408
          %v2465 = vmul.f32 %v2462, %v2409
          %v2466 = vmul.f32 %v2462, %v2410
          %v2467 = vadd.f32 %v2191, %v2463
          %v2468 = vadd.f32 %v2192, %v2464
          %v2469 = vadd.f32 %v2193, %v2465
          %v2470 = vadd.f32 %v2194, %v2466
          %s2471 = sld [smem:[#allocation3 + $0x3b]]
          %v2472 = vstv %s2471
          %v2473 = vmul.f32 %v2472, %v2407
          %v2474 = vmul.f32 %v2472, %v2408
          %v2475 = vmul.f32 %v2472, %v2409
          %v2476 = vmul.f32 %v2472, %v2410
          %v2477 = vadd.f32 %v2293, %v2473
          %v2478 = vadd.f32 %v2294, %v2474
          %v2479 = vadd.f32 %v2295, %v2475
          %v2480 = vadd.f32 %v2296, %v2476
          %s2481 = sld [smem:[#allocation3 + $0x44]]
          %v2482 = vstv %s2481
          %v2483 = vmul.f32 %v2482, %v2407
          %v2484 = vmul.f32 %v2482, %v2408
          %v2485 = vmul.f32 %v2482, %v2409
          %v2486 = vmul.f32 %v2482, %v2410
          %v2487 = vadd.f32 %v2395, %v2483
          %v2488 = vadd.f32 %v2396, %v2484
          %v2489 = vadd.f32 %v2397, %v2485
          %v2490 = vadd.f32 %v2398, %v2486
          %v2491 = vrot.slane %v1220, 1
          %v2492 = vrot.slane %v1227, 1
          %v2493 = vrot.slane %v1234, 1
          %v2494 = vrot.slane %v1241, 1
          %vm2495 = vcmp.lt.s32.totalorder %v158, 7
          %v2496 = vsel %vm2495, %v2493, %v2494
          %v2497 = vsel %vm2495, %v2492, %v2493
          %v2498 = vsel %vm2495, %v2491, %v2492
          %v2499 = vsel %vm2495, %v2494, %v2491
          %2500 = vrot.lane.b32.xlu0 %v2498, 1
          %v2501 = vpop.permute.xlu0 %2500
          %2502 = vrot.lane.b32.xlu0 %v2497, 1
          %v2503 = vpop.permute.xlu0 %2502
          %2504 = vrot.lane.b32.xlu0 %v2496, 1
          %v2505 = vpop.permute.xlu0 %2504
          %2506 = vrot.lane.b32.xlu0 %v2499, 1
          %v2507 = vpop.permute.xlu0 %2506
          %v2508 = vsel %vm230, %v2501, 0.0
          %v2509 = vsel %vm231, %v2503, 0.0
          %v2510 = vsel %vm232, %v2505, 0.0
          %v2511 = vsel %vm233, %v2507, 0.0
          %s2512 = sld [smem:[#allocation3 + $0x6]]
          %v2513 = vstv %s2512
          %v2514 = vmul.f32 %v2513, %v2508
          %v2515 = vmul.f32 %v2513, %v2509
          %v2516 = vmul.f32 %v2513, %v2510
          %v2517 = vmul.f32 %v2513, %v2511
          %v2518 = vadd.f32 %v2417, %v2514
          %v2519 = vadd.f32 %v2418, %v2515
          %v2520 = vadd.f32 %v2419, %v2516
          %v2521 = vadd.f32 %v2420, %v2517
          %s2522 = sld [smem:[#allocation3 + $0xf]]
          %v2523 = vstv %s2522
          %v2524 = vmul.f32 %v2523, %v2508
          %v2525 = vmul.f32 %v2523, %v2509
          %v2526 = vmul.f32 %v2523, %v2510
          %v2527 = vmul.f32 %v2523, %v2511
          %v2528 = vadd.f32 %v2427, %v2524
          %v2529 = vadd.f32 %v2428, %v2525
          %v2530 = vadd.f32 %v2429, %v2526
          %v2531 = vadd.f32 %v2430, %v2527
          %s2532 = sld [smem:[#allocation3 + $0x18]]
          %v2533 = vstv %s2532
          %v2534 = vmul.f32 %v2533, %v2508
          %v2535 = vmul.f32 %v2533, %v2509
          %v2536 = vmul.f32 %v2533, %v2510
          %v2537 = vmul.f32 %v2533, %v2511
          %v2538 = vadd.f32 %v2437, %v2534
          %v2539 = vadd.f32 %v2438, %v2535
          %v2540 = vadd.f32 %v2439, %v2536
          %v2541 = vadd.f32 %v2440, %v2537
          %s2542 = sld [smem:[#allocation3 + $0x21]]
          %v2543 = vstv %s2542
          %v2544 = vmul.f32 %v2543, %v2508
          %v2545 = vmul.f32 %v2543, %v2509
          %v2546 = vmul.f32 %v2543, %v2510
          %v2547 = vmul.f32 %v2543, %v2511
          %v2548 = vadd.f32 %v2447, %v2544
          %v2549 = vadd.f32 %v2448, %v2545
          %v2550 = vadd.f32 %v2449, %v2546
          %v2551 = vadd.f32 %v2450, %v2547
          %s2552 = sld [smem:[#allocation3 + $0x2a]]
          %v2553 = vstv %s2552
          %v2554 = vmul.f32 %v2553, %v2508
          %v2555 = vmul.f32 %v2553, %v2509
          %v2556 = vmul.f32 %v2553, %v2510
          %v2557 = vmul.f32 %v2553, %v2511
          %v2558 = vadd.f32 %v2457, %v2554
          %v2559 = vadd.f32 %v2458, %v2555
          %v2560 = vadd.f32 %v2459, %v2556
          %v2561 = vadd.f32 %v2460, %v2557
          %s2562 = sld [smem:[#allocation3 + $0x33]]
          %v2563 = vstv %s2562
          %v2564 = vmul.f32 %v2563, %v2508
          %v2565 = vmul.f32 %v2563, %v2509
          %v2566 = vmul.f32 %v2563, %v2510
          %v2567 = vmul.f32 %v2563, %v2511
          %v2568 = vadd.f32 %v2467, %v2564
          %v2569 = vadd.f32 %v2468, %v2565
          %v2570 = vadd.f32 %v2469, %v2566
          %v2571 = vadd.f32 %v2470, %v2567
          %s2572 = sld [smem:[#allocation3 + $0x3c]]
          %v2573 = vstv %s2572
          %v2574 = vmul.f32 %v2573, %v2508
          %v2575 = vmul.f32 %v2573, %v2509
          %v2576 = vmul.f32 %v2573, %v2510
          %v2577 = vmul.f32 %v2573, %v2511
          %v2578 = vadd.f32 %v2477, %v2574
          %v2579 = vadd.f32 %v2478, %v2575
          %v2580 = vadd.f32 %v2479, %v2576
          %v2581 = vadd.f32 %v2480, %v2577
          %s2582 = sld [smem:[#allocation3 + $0x45]]
          %v2583 = vstv %s2582
          %v2584 = vmul.f32 %v2583, %v2508
          %v2585 = vmul.f32 %v2583, %v2509
          %v2586 = vmul.f32 %v2583, %v2510
          %v2587 = vmul.f32 %v2583, %v2511
          %v2588 = vadd.f32 %v2487, %v2584
          %v2589 = vadd.f32 %v2488, %v2585
          %v2590 = vadd.f32 %v2489, %v2586
          %v2591 = vadd.f32 %v2490, %v2587
          %v2592 = vsel %vm216, %v2498, 0.0
          %v2593 = vsel %vm217, %v2497, 0.0
          %v2594 = vsel %vm218, %v2496, 0.0
          %v2595 = vsel %vm219, %v2499, 0.0
          %s2596 = sld [smem:[#allocation3 + $0x7]]
          %v2597 = vstv %s2596
          %v2598 = vmul.f32 %v2597, %v2592
          %v2599 = vmul.f32 %v2597, %v2593
          %v2600 = vmul.f32 %v2597, %v2594
          %v2601 = vmul.f32 %v2597, %v2595
          %v2602 = vadd.f32 %v2518, %v2598
          %v2603 = vadd.f32 %v2519, %v2599
          %v2604 = vadd.f32 %v2520, %v2600
          %v2605 = vadd.f32 %v2521, %v2601
          %s2606 = sld [smem:[#allocation3 + $0x10]]
          %v2607 = vstv %s2606
          %v2608 = vmul.f32 %v2607, %v2592
          %v2609 = vmul.f32 %v2607, %v2593
          %v2610 = vmul.f32 %v2607, %v2594
          %v2611 = vmul.f32 %v2607, %v2595
          %v2612 = vadd.f32 %v2528, %v2608
          %v2613 = vadd.f32 %v2529, %v2609
          %v2614 = vadd.f32 %v2530, %v2610
          %v2615 = vadd.f32 %v2531, %v2611
          %s2616 = sld [smem:[#allocation3 + $0x19]]
          %v2617 = vstv %s2616
          %v2618 = vmul.f32 %v2617, %v2592
          %v2619 = vmul.f32 %v2617, %v2593
          %v2620 = vmul.f32 %v2617, %v2594
          %v2621 = vmul.f32 %v2617, %v2595
          %v2622 = vadd.f32 %v2538, %v2618
          %v2623 = vadd.f32 %v2539, %v2619
          %v2624 = vadd.f32 %v2540, %v2620
          %v2625 = vadd.f32 %v2541, %v2621
          %s2626 = sld [smem:[#allocation3 + $0x22]]
          %v2627 = vstv %s2626
          %v2628 = vmul.f32 %v2627, %v2592
          %v2629 = vmul.f32 %v2627, %v2593
          %v2630 = vmul.f32 %v2627, %v2594
          %v2631 = vmul.f32 %v2627, %v2595
          %v2632 = vadd.f32 %v2548, %v2628
          %v2633 = vadd.f32 %v2549, %v2629
          %v2634 = vadd.f32 %v2550, %v2630
          %v2635 = vadd.f32 %v2551, %v2631
          %s2636 = sld [smem:[#allocation3 + $0x2b]]
          %v2637 = vstv %s2636
          %v2638 = vmul.f32 %v2637, %v2592
          %v2639 = vmul.f32 %v2637, %v2593
          %v2640 = vmul.f32 %v2637, %v2594
          %v2641 = vmul.f32 %v2637, %v2595
          %v2642 = vadd.f32 %v2558, %v2638
          %v2643 = vadd.f32 %v2559, %v2639
          %v2644 = vadd.f32 %v2560, %v2640
          %v2645 = vadd.f32 %v2561, %v2641
          %s2646 = sld [smem:[#allocation3 + $0x34]]
          %v2647 = vstv %s2646
          %v2648 = vmul.f32 %v2647, %v2592
          %v2649 = vmul.f32 %v2647, %v2593
          %v2650 = vmul.f32 %v2647, %v2594
          %v2651 = vmul.f32 %v2647, %v2595
          %v2652 = vadd.f32 %v2568, %v2648
          %v2653 = vadd.f32 %v2569, %v2649
          %v2654 = vadd.f32 %v2570, %v2650
          %v2655 = vadd.f32 %v2571, %v2651
          %s2656 = sld [smem:[#allocation3 + $0x3d]]
          %v2657 = vstv %s2656
          %v2658 = vmul.f32 %v2657, %v2592
          %v2659 = vmul.f32 %v2657, %v2593
          %v2660 = vmul.f32 %v2657, %v2594
          %v2661 = vmul.f32 %v2657, %v2595
          %v2662 = vadd.f32 %v2578, %v2658
          %v2663 = vadd.f32 %v2579, %v2659
          %v2664 = vadd.f32 %v2580, %v2660
          %v2665 = vadd.f32 %v2581, %v2661
          %s2666 = sld [smem:[#allocation3 + $0x46]]
          %v2667 = vstv %s2666
          %v2668 = vmul.f32 %v2667, %v2592
          %v2669 = vmul.f32 %v2667, %v2593
          %v2670 = vmul.f32 %v2667, %v2594
          %v2671 = vmul.f32 %v2667, %v2595
          %v2672 = vadd.f32 %v2588, %v2668
          %v2673 = vadd.f32 %v2589, %v2669
          %v2674 = vadd.f32 %v2590, %v2670
          %v2675 = vadd.f32 %v2591, %v2671
          %2676 = vrot.lane.b32.xlu0 %v2498, 127
          %v2677 = vpop.permute.xlu0 %2676
          %2678 = vrot.lane.b32.xlu0 %v2497, 127
          %v2679 = vpop.permute.xlu0 %2678
          %2680 = vrot.lane.b32.xlu0 %v2496, 127
          %v2681 = vpop.permute.xlu0 %2680
          %2682 = vrot.lane.b32.xlu0 %v2499, 127
          %v2683 = vpop.permute.xlu0 %2682
          %v2684 = vsel %vm234, %v2677, 0.0
          %v2685 = vsel %vm235, %v2679, 0.0
          %v2686 = vsel %vm236, %v2681, 0.0
          %v2687 = vsel %vm237, %v2683, 0.0
          %s2688 = sld [smem:[#allocation3 + $0x8]]
          %v2689 = vstv %s2688
          %v2690 = vmul.f32 %v2689, %v2684
          %v2691 = vmul.f32 %v2689, %v2685
          %v2692 = vmul.f32 %v2689, %v2686
          %v2693 = vmul.f32 %v2689, %v2687
          %v2694 = vadd.f32 %v2602, %v2690
          %v2695 = vadd.f32 %v2603, %v2691
          %v2696 = vadd.f32 %v2604, %v2692
          %v2697 = vadd.f32 %v2605, %v2693
          %s2698 = sld [smem:[#allocation3 + $0x11]]
          %v2699 = vstv %s2698
          %v2700 = vmul.f32 %v2699, %v2684
          %v2701 = vmul.f32 %v2699, %v2685
          %v2702 = vmul.f32 %v2699, %v2686
          %v2703 = vmul.f32 %v2699, %v2687
          %v2704 = vadd.f32 %v2612, %v2700
          %v2705 = vadd.f32 %v2613, %v2701
          %v2706 = vadd.f32 %v2614, %v2702
          %v2707 = vadd.f32 %v2615, %v2703
          %s2708 = sld [smem:[#allocation3 + $0x1a]]
          %v2709 = vstv %s2708
          %v2710 = vmul.f32 %v2709, %v2684
          %v2711 = vmul.f32 %v2709, %v2685
          %v2712 = vmul.f32 %v2709, %v2686
          %v2713 = vmul.f32 %v2709, %v2687
          %v2714 = vadd.f32 %v2622, %v2710
          %v2715 = vadd.f32 %v2623, %v2711
          %v2716 = vadd.f32 %v2624, %v2712
          %v2717 = vadd.f32 %v2625, %v2713
          %s2718 = sld [smem:[#allocation3 + $0x23]]
          %v2719 = vstv %s2718
          %v2720 = vmul.f32 %v2719, %v2684
          %v2721 = vmul.f32 %v2719, %v2685
          %v2722 = vmul.f32 %v2719, %v2686
          %v2723 = vmul.f32 %v2719, %v2687
          %v2724 = vadd.f32 %v2632, %v2720
          %v2725 = vadd.f32 %v2633, %v2721
          %v2726 = vadd.f32 %v2634, %v2722
          %v2727 = vadd.f32 %v2635, %v2723
          %s2728 = sld [smem:[#allocation3 + $0x2c]]
          %v2729 = vstv %s2728
          %v2730 = vmul.f32 %v2729, %v2684
          %v2731 = vmul.f32 %v2729, %v2685
          %v2732 = vmul.f32 %v2729, %v2686
          %v2733 = vmul.f32 %v2729, %v2687
          %v2734 = vadd.f32 %v2642, %v2730
          %v2735 = vadd.f32 %v2643, %v2731
          %v2736 = vadd.f32 %v2644, %v2732
          %v2737 = vadd.f32 %v2645, %v2733
          %s2738 = sld [smem:[#allocation3 + $0x35]]
          %v2739 = vstv %s2738
          %v2740 = vmul.f32 %v2739, %v2684
          %v2741 = vmul.f32 %v2739, %v2685
          %v2742 = vmul.f32 %v2739, %v2686
          %v2743 = vmul.f32 %v2739, %v2687
          %v2744 = vadd.f32 %v2652, %v2740
          %v2745 = vadd.f32 %v2653, %v2741
          %v2746 = vadd.f32 %v2654, %v2742
          %v2747 = vadd.f32 %v2655, %v2743
          %s2748 = sld [smem:[#allocation3 + $0x3e]]
          %v2749 = vstv %s2748
          %v2750 = vmul.f32 %v2749, %v2684
          %v2751 = vmul.f32 %v2749, %v2685
          %v2752 = vmul.f32 %v2749, %v2686
          %v2753 = vmul.f32 %v2749, %v2687
          %v2754 = vadd.f32 %v2662, %v2750
          %v2755 = vadd.f32 %v2663, %v2751
          %v2756 = vadd.f32 %v2664, %v2752
          %v2757 = vadd.f32 %v2665, %v2753
          %s2758 = sld [smem:[#allocation3 + $0x47]]
          %v2759 = vstv %s2758
          %v2760 = vmul.f32 %v2759, %v2684
          %v2761 = vmul.f32 %v2759, %v2685
          %v2762 = vmul.f32 %v2759, %v2686
          %v2763 = vmul.f32 %v2759, %v2687
          %v2764 = vadd.f32 %v2672, %v2760
          %v2765 = vadd.f32 %v2673, %v2761
          %v2766 = vadd.f32 %v2674, %v2762
          %v2767 = vadd.f32 %v2675, %v2763
          %s2768 = sld [smem:[#allocation4]]
          %v2769 = vstv %s2768
          %v2770 = vadd.f32 %v2694, %v2769
          %v2771 = vadd.f32 %v2695, %v2769
          %v2772 = vadd.f32 %v2696, %v2769
          %v2773 = vadd.f32 %v2697, %v2769
          %v2774 = vmax.f32 %v2770, 0.0
          %v2775 = vmax.f32 %v2771, 0.0
          %v2776 = vmax.f32 %v2772, 0.0
          %v2777 = vmax.f32 %v2773, 0.0
          %s2778 = sld [smem:[#allocation4 + $0x1]]
          %v2779 = vstv %s2778
          %v2780 = vadd.f32 %v2704, %v2779
          %v2781 = vadd.f32 %v2705, %v2779
          %v2782 = vadd.f32 %v2706, %v2779
          %v2783 = vadd.f32 %v2707, %v2779
          %v2784 = vmax.f32 %v2780, 0.0
          %v2785 = vmax.f32 %v2781, 0.0
          %v2786 = vmax.f32 %v2782, 0.0
          %v2787 = vmax.f32 %v2783, 0.0
          %s2788 = sld [smem:[#allocation4 + $0x2]]
          %v2789 = vstv %s2788
          %v2790 = vadd.f32 %v2714, %v2789
          %v2791 = vadd.f32 %v2715, %v2789
          %v2792 = vadd.f32 %v2716, %v2789
          %v2793 = vadd.f32 %v2717, %v2789
          %v2794 = vmax.f32 %v2790, 0.0
          %v2795 = vmax.f32 %v2791, 0.0
          %v2796 = vmax.f32 %v2792, 0.0
          %v2797 = vmax.f32 %v2793, 0.0
          %s2798 = sld [smem:[#allocation4 + $0x3]]
          %v2799 = vstv %s2798
          %v2800 = vadd.f32 %v2724, %v2799
          %v2801 = vadd.f32 %v2725, %v2799
          %v2802 = vadd.f32 %v2726, %v2799
          %v2803 = vadd.f32 %v2727, %v2799
          %v2804 = vmax.f32 %v2800, 0.0
          %v2805 = vmax.f32 %v2801, 0.0
          %v2806 = vmax.f32 %v2802, 0.0
          %v2807 = vmax.f32 %v2803, 0.0
          %s2808 = sld [smem:[#allocation4 + $0x4]]
          %v2809 = vstv %s2808
          %v2810 = vadd.f32 %v2734, %v2809
          %v2811 = vadd.f32 %v2735, %v2809
          %v2812 = vadd.f32 %v2736, %v2809
          %v2813 = vadd.f32 %v2737, %v2809
          %v2814 = vmax.f32 %v2810, 0.0
          %v2815 = vmax.f32 %v2811, 0.0
          %v2816 = vmax.f32 %v2812, 0.0
          %v2817 = vmax.f32 %v2813, 0.0
          %s2818 = sld [smem:[#allocation4 + $0x5]]
          %v2819 = vstv %s2818
          %v2820 = vadd.f32 %v2744, %v2819
          %v2821 = vadd.f32 %v2745, %v2819
          %v2822 = vadd.f32 %v2746, %v2819
          %v2823 = vadd.f32 %v2747, %v2819
          %v2824 = vmax.f32 %v2820, 0.0
          %v2825 = vmax.f32 %v2821, 0.0
          %v2826 = vmax.f32 %v2822, 0.0
          %v2827 = vmax.f32 %v2823, 0.0
          %s2828 = sld [smem:[#allocation4 + $0x6]]
          %v2829 = vstv %s2828
          %v2830 = vadd.f32 %v2754, %v2829
          %v2831 = vadd.f32 %v2755, %v2829
          %v2832 = vadd.f32 %v2756, %v2829
          %v2833 = vadd.f32 %v2757, %v2829
          %v2834 = vmax.f32 %v2830, 0.0
          %v2835 = vmax.f32 %v2831, 0.0
          %v2836 = vmax.f32 %v2832, 0.0
          %v2837 = vmax.f32 %v2833, 0.0
          %s2838 = sld [smem:[#allocation4 + $0x7]]
          %v2839 = vstv %s2838
          %v2840 = vadd.f32 %v2764, %v2839
          %v2841 = vadd.f32 %v2765, %v2839
          %v2842 = vadd.f32 %v2766, %v2839
          %v2843 = vadd.f32 %v2767, %v2839
          %v2844 = vmax.f32 %v2840, 0.0
          %v2845 = vmax.f32 %v2841, 0.0
          %v2846 = vmax.f32 %v2842, 0.0
          %v2847 = vmax.f32 %v2843, 0.0
          %s2848 = sld [smem:[#allocation5]]
          %v2849 = vstv %s2848
          %v2850 = vmul.f32 %v2774, %v2849
          %v2851 = vmul.f32 %v2775, %v2849
          %v2852 = vmul.f32 %v2776, %v2849
          %v2853 = vmul.f32 %v2777, %v2849
          %s2854 = sld [smem:[#allocation5 + $0x9]]
          %v2855 = vstv %s2854
          %v2856 = vmul.f32 %v2784, %v2855
          %v2857 = vmul.f32 %v2785, %v2855
          %v2858 = vmul.f32 %v2786, %v2855
          %v2859 = vmul.f32 %v2787, %v2855
          %v2860 = vadd.f32 %v2850, %v2856
          %v2861 = vadd.f32 %v2851, %v2857
          %v2862 = vadd.f32 %v2852, %v2858
          %v2863 = vadd.f32 %v2853, %v2859
          %s2864 = sld [smem:[#allocation5 + $0x12]]
          %v2865 = vstv %s2864
          %v2866 = vmul.f32 %v2794, %v2865
          %v2867 = vmul.f32 %v2795, %v2865
          %v2868 = vmul.f32 %v2796, %v2865
          %v2869 = vmul.f32 %v2797, %v2865
          %v2870 = vadd.f32 %v2860, %v2866
          %v2871 = vadd.f32 %v2861, %v2867
          %v2872 = vadd.f32 %v2862, %v2868
          %v2873 = vadd.f32 %v2863, %v2869
          %s2874 = sld [smem:[#allocation5 + $0x1b]]
          %v2875 = vstv %s2874
          %v2876 = vmul.f32 %v2804, %v2875
          %v2877 = vmul.f32 %v2805, %v2875
          %v2878 = vmul.f32 %v2806, %v2875
          %v2879 = vmul.f32 %v2807, %v2875
          %v2880 = vadd.f32 %v2870, %v2876
          %v2881 = vadd.f32 %v2871, %v2877
          %v2882 = vadd.f32 %v2872, %v2878
          %v2883 = vadd.f32 %v2873, %v2879
          %s2884 = sld [smem:[#allocation5 + $0x24]]
          %v2885 = vstv %s2884
          %v2886 = vmul.f32 %v2814, %v2885
          %v2887 = vmul.f32 %v2815, %v2885
          %v2888 = vmul.f32 %v2816, %v2885
          %v2889 = vmul.f32 %v2817, %v2885
          %v2890 = vadd.f32 %v2880, %v2886
          %v2891 = vadd.f32 %v2881, %v2887
          %v2892 = vadd.f32 %v2882, %v2888
          %v2893 = vadd.f32 %v2883, %v2889
          %s2894 = sld [smem:[#allocation5 + $0x2d]]
          %v2895 = vstv %s2894
          %v2896 = vmul.f32 %v2824, %v2895
          %v2897 = vmul.f32 %v2825, %v2895
          %v2898 = vmul.f32 %v2826, %v2895
          %v2899 = vmul.f32 %v2827, %v2895
          %v2900 = vadd.f32 %v2890, %v2896
          %v2901 = vadd.f32 %v2891, %v2897
          %v2902 = vadd.f32 %v2892, %v2898
          %v2903 = vadd.f32 %v2893, %v2899
          %s2904 = sld [smem:[#allocation5 + $0x36]]
          %v2905 = vstv %s2904
          %v2906 = vmul.f32 %v2834, %v2905
          %v2907 = vmul.f32 %v2835, %v2905
          %v2908 = vmul.f32 %v2836, %v2905
          %v2909 = vmul.f32 %v2837, %v2905
          %v2910 = vadd.f32 %v2900, %v2906
          %v2911 = vadd.f32 %v2901, %v2907
          %v2912 = vadd.f32 %v2902, %v2908
          %v2913 = vadd.f32 %v2903, %v2909
          %s2914 = sld [smem:[#allocation5 + $0x3f]]
          %v2915 = vstv %s2914
          %v2916 = vmul.f32 %v2844, %v2915
          %v2917 = vmul.f32 %v2845, %v2915
          %v2918 = vmul.f32 %v2846, %v2915
          %v2919 = vmul.f32 %v2847, %v2915
          %v2920 = vadd.f32 %v2910, %v2916
          %v2921 = vadd.f32 %v2911, %v2917
          %v2922 = vadd.f32 %v2912, %v2918
          %v2923 = vadd.f32 %v2913, %v2919
          %v2924 = vrot.slane %v2920, 7
          %v2925 = vrot.slane %v2921, 7
          %v2926 = vrot.slane %v2922, 7
          %v2927 = vrot.slane %v2923, 7
          %v2928 = vsel %vm1250, %v2926, %v2927
          %v2929 = vsel %vm1250, %v2925, %v2926
          %v2930 = vsel %vm1250, %v2924, %v2925
          %v2931 = vsel %vm1250, %v2927, %v2924
          %2932 = vrot.lane.b32.xlu0 %v2931, 1
          %v2933 = vpop.permute.xlu0 %2932
          %2934 = vrot.lane.b32.xlu0 %v2930, 1
          %v2935 = vpop.permute.xlu0 %2934
          %2936 = vrot.lane.b32.xlu0 %v2929, 1
          %v2937 = vpop.permute.xlu0 %2936
          %2938 = vrot.lane.b32.xlu0 %v2928, 1
          %v2939 = vpop.permute.xlu0 %2938
          %v2940 = vsel %vm222, %v2933, 0.0
          %v2941 = vsel %vm223, %v2935, 0.0
          %v2942 = vsel %vm224, %v2937, 0.0
          %v2943 = vsel %vm225, %v2939, 0.0
          %s2944 = sld [smem:[#allocation5 + $0x1]]
          %v2945 = vstv %s2944
          %v2946 = vmul.f32 %v2774, %v2945
          %v2947 = vmul.f32 %v2775, %v2945
          %v2948 = vmul.f32 %v2776, %v2945
          %v2949 = vmul.f32 %v2777, %v2945
          %s2950 = sld [smem:[#allocation5 + $0xa]]
          %v2951 = vstv %s2950
          %v2952 = vmul.f32 %v2784, %v2951
          %v2953 = vmul.f32 %v2785, %v2951
          %v2954 = vmul.f32 %v2786, %v2951
          %v2955 = vmul.f32 %v2787, %v2951
          %v2956 = vadd.f32 %v2946, %v2952
          %v2957 = vadd.f32 %v2947, %v2953
          %v2958 = vadd.f32 %v2948, %v2954
          %v2959 = vadd.f32 %v2949, %v2955
          %s2960 = sld [smem:[#allocation5 + $0x13]]
          %v2961 = vstv %s2960
          %v2962 = vmul.f32 %v2794, %v2961
          %v2963 = vmul.f32 %v2795, %v2961
          %v2964 = vmul.f32 %v2796, %v2961
          %v2965 = vmul.f32 %v2797, %v2961
          %v2966 = vadd.f32 %v2956, %v2962
          %v2967 = vadd.f32 %v2957, %v2963
          %v2968 = vadd.f32 %v2958, %v2964
          %v2969 = vadd.f32 %v2959, %v2965
          %s2970 = sld [smem:[#allocation5 + $0x1c]]
          %v2971 = vstv %s2970
          %v2972 = vmul.f32 %v2804, %v2971
          %v2973 = vmul.f32 %v2805, %v2971
          %v2974 = vmul.f32 %v2806, %v2971
          %v2975 = vmul.f32 %v2807, %v2971
          %v2976 = vadd.f32 %v2966, %v2972
          %v2977 = vadd.f32 %v2967, %v2973
          %v2978 = vadd.f32 %v2968, %v2974
          %v2979 = vadd.f32 %v2969, %v2975
          %s2980 = sld [smem:[#allocation5 + $0x25]]
          %v2981 = vstv %s2980
          %v2982 = vmul.f32 %v2814, %v2981
          %v2983 = vmul.f32 %v2815, %v2981
          %v2984 = vmul.f32 %v2816, %v2981
          %v2985 = vmul.f32 %v2817, %v2981
          %v2986 = vadd.f32 %v2976, %v2982
          %v2987 = vadd.f32 %v2977, %v2983
          %v2988 = vadd.f32 %v2978, %v2984
          %v2989 = vadd.f32 %v2979, %v2985
          %s2990 = sld [smem:[#allocation5 + $0x2e]]
          %v2991 = vstv %s2990
          %v2992 = vmul.f32 %v2824, %v2991
          %v2993 = vmul.f32 %v2825, %v2991
          %v2994 = vmul.f32 %v2826, %v2991
          %v2995 = vmul.f32 %v2827, %v2991
          %v2996 = vadd.f32 %v2986, %v2992
          %v2997 = vadd.f32 %v2987, %v2993
          %v2998 = vadd.f32 %v2988, %v2994
          %v2999 = vadd.f32 %v2989, %v2995
          %s3000 = sld [smem:[#allocation5 + $0x37]]
          %v3001 = vstv %s3000
          %v3002 = vmul.f32 %v2834, %v3001
          %v3003 = vmul.f32 %v2835, %v3001
          %v3004 = vmul.f32 %v2836, %v3001
          %v3005 = vmul.f32 %v2837, %v3001
          %v3006 = vadd.f32 %v2996, %v3002
          %v3007 = vadd.f32 %v2997, %v3003
          %v3008 = vadd.f32 %v2998, %v3004
          %v3009 = vadd.f32 %v2999, %v3005
          %s3010 = sld [smem:[#allocation5 + $0x40]]
          %v3011 = vstv %s3010
          %v3012 = vmul.f32 %v2844, %v3011
          %v3013 = vmul.f32 %v2845, %v3011
          %v3014 = vmul.f32 %v2846, %v3011
          %v3015 = vmul.f32 %v2847, %v3011
          %v3016 = vadd.f32 %v3006, %v3012
          %v3017 = vadd.f32 %v3007, %v3013
          %v3018 = vadd.f32 %v3008, %v3014
          %v3019 = vadd.f32 %v3009, %v3015
          %v3020 = vrot.slane %v3016, 7
          %v3021 = vrot.slane %v3017, 7
          %v3022 = vrot.slane %v3018, 7
          %v3023 = vrot.slane %v3019, 7
          %v3024 = vsel %vm1250, %v3022, %v3023
          %v3025 = vsel %vm1250, %v3021, %v3022
          %v3026 = vsel %vm1250, %v3020, %v3021
          %v3027 = vsel %vm1250, %v3023, %v3020
          %v3028 = vsel %vm212, %v3027, 0.0
          %v3029 = vsel %vm213, %v3026, 0.0
          %v3030 = vsel %vm214, %v3025, 0.0
          %v3031 = vsel %vm215, %v3024, 0.0
          %v3032 = vadd.f32 %v2940, %v3028
          %v3033 = vadd.f32 %v2941, %v3029
          %v3034 = vadd.f32 %v2942, %v3030
          %v3035 = vadd.f32 %v2943, %v3031
          %s3036 = sld [smem:[#allocation5 + $0x2]]
          %v3037 = vstv %s3036
          %v3038 = vmul.f32 %v2774, %v3037
          %v3039 = vmul.f32 %v2775, %v3037
          %v3040 = vmul.f32 %v2776, %v3037
          %v3041 = vmul.f32 %v2777, %v3037
          %s3042 = sld [smem:[#allocation5 + $0xb]]
          %v3043 = vstv %s3042
          %v3044 = vmul.f32 %v2784, %v3043
          %v3045 = vmul.f32 %v2785, %v3043
          %v3046 = vmul.f32 %v2786, %v3043
          %v3047 = vmul.f32 %v2787, %v3043
          %v3048 = vadd.f32 %v3038, %v3044
          %v3049 = vadd.f32 %v3039, %v3045
          %v3050 = vadd.f32 %v3040, %v3046
          %v3051 = vadd.f32 %v3041, %v3047
          %s3052 = sld [smem:[#allocation5 + $0x14]]
          %v3053 = vstv %s3052
          %v3054 = vmul.f32 %v2794, %v3053
          %v3055 = vmul.f32 %v2795, %v3053
          %v3056 = vmul.f32 %v2796, %v3053
          %v3057 = vmul.f32 %v2797, %v3053
          %v3058 = vadd.f32 %v3048, %v3054
          %v3059 = vadd.f32 %v3049, %v3055
          %v3060 = vadd.f32 %v3050, %v3056
          %v3061 = vadd.f32 %v3051, %v3057
          %s3062 = sld [smem:[#allocation5 + $0x1d]]
          %v3063 = vstv %s3062
          %v3064 = vmul.f32 %v2804, %v3063
          %v3065 = vmul.f32 %v2805, %v3063
          %v3066 = vmul.f32 %v2806, %v3063
          %v3067 = vmul.f32 %v2807, %v3063
          %v3068 = vadd.f32 %v3058, %v3064
          %v3069 = vadd.f32 %v3059, %v3065
          %v3070 = vadd.f32 %v3060, %v3066
          %v3071 = vadd.f32 %v3061, %v3067
          %s3072 = sld [smem:[#allocation5 + $0x26]]
          %v3073 = vstv %s3072
          %v3074 = vmul.f32 %v2814, %v3073
          %v3075 = vmul.f32 %v2815, %v3073
          %v3076 = vmul.f32 %v2816, %v3073
          %v3077 = vmul.f32 %v2817, %v3073
          %v3078 = vadd.f32 %v3068, %v3074
          %v3079 = vadd.f32 %v3069, %v3075
          %v3080 = vadd.f32 %v3070, %v3076
          %v3081 = vadd.f32 %v3071, %v3077
          %s3082 = sld [smem:[#allocation5 + $0x2f]]
          %v3083 = vstv %s3082
          %v3084 = vmul.f32 %v2824, %v3083
          %v3085 = vmul.f32 %v2825, %v3083
          %v3086 = vmul.f32 %v2826, %v3083
          %v3087 = vmul.f32 %v2827, %v3083
          %v3088 = vadd.f32 %v3078, %v3084
          %v3089 = vadd.f32 %v3079, %v3085
          %v3090 = vadd.f32 %v3080, %v3086
          %v3091 = vadd.f32 %v3081, %v3087
          %s3092 = sld [smem:[#allocation5 + $0x38]]
          %v3093 = vstv %s3092
          %v3094 = vmul.f32 %v2834, %v3093
          %v3095 = vmul.f32 %v2835, %v3093
          %v3096 = vmul.f32 %v2836, %v3093
          %v3097 = vmul.f32 %v2837, %v3093
          %v3098 = vadd.f32 %v3088, %v3094
          %v3099 = vadd.f32 %v3089, %v3095
          %v3100 = vadd.f32 %v3090, %v3096
          %v3101 = vadd.f32 %v3091, %v3097
          %s3102 = sld [smem:[#allocation5 + $0x41]]
          %v3103 = vstv %s3102
          %v3104 = vmul.f32 %v2844, %v3103
          %v3105 = vmul.f32 %v2845, %v3103
          %v3106 = vmul.f32 %v2846, %v3103
          %v3107 = vmul.f32 %v2847, %v3103
          %v3108 = vadd.f32 %v3098, %v3104
          %v3109 = vadd.f32 %v3099, %v3105
          %v3110 = vadd.f32 %v3100, %v3106
          %v3111 = vadd.f32 %v3101, %v3107
          %v3112 = vrot.slane %v3108, 7
          %v3113 = vrot.slane %v3109, 7
          %v3114 = vrot.slane %v3110, 7
          %v3115 = vrot.slane %v3111, 7
          %v3116 = vsel %vm1250, %v3114, %v3115
          %v3117 = vsel %vm1250, %v3113, %v3114
          %v3118 = vsel %vm1250, %v3112, %v3113
          %v3119 = vsel %vm1250, %v3115, %v3112
          %3120 = vrot.lane.b32.xlu0 %v3119, 127
          %v3121 = vpop.permute.xlu0 %3120
          %3122 = vrot.lane.b32.xlu0 %v3118, 127
          %v3123 = vpop.permute.xlu0 %3122
          %3124 = vrot.lane.b32.xlu0 %v3117, 127
          %v3125 = vpop.permute.xlu0 %3124
          %3126 = vrot.lane.b32.xlu0 %v3116, 127
          %v3127 = vpop.permute.xlu0 %3126
          %v3128 = vsel %vm226, %v3121, 0.0
          %v3129 = vsel %vm227, %v3123, 0.0
          %v3130 = vsel %vm228, %v3125, 0.0
          %v3131 = vsel %vm229, %v3127, 0.0
          %v3132 = vadd.f32 %v3032, %v3128
          %v3133 = vadd.f32 %v3033, %v3129
          %v3134 = vadd.f32 %v3034, %v3130
          %v3135 = vadd.f32 %v3035, %v3131
          %s3136 = sld [smem:[#allocation5 + $0x3]]
          %v3137 = vstv %s3136
          %v3138 = vmul.f32 %v2774, %v3137
          %v3139 = vmul.f32 %v2775, %v3137
          %v3140 = vmul.f32 %v2776, %v3137
          %v3141 = vmul.f32 %v2777, %v3137
          %s3142 = sld [smem:[#allocation5 + $0xc]]
          %v3143 = vstv %s3142
          %v3144 = vmul.f32 %v2784, %v3143
          %v3145 = vmul.f32 %v2785, %v3143
          %v3146 = vmul.f32 %v2786, %v3143
          %v3147 = vmul.f32 %v2787, %v3143
          %v3148 = vadd.f32 %v3138, %v3144
          %v3149 = vadd.f32 %v3139, %v3145
          %v3150 = vadd.f32 %v3140, %v3146
          %v3151 = vadd.f32 %v3141, %v3147
          %s3152 = sld [smem:[#allocation5 + $0x15]]
          %v3153 = vstv %s3152
          %v3154 = vmul.f32 %v2794, %v3153
          %v3155 = vmul.f32 %v2795, %v3153
          %v3156 = vmul.f32 %v2796, %v3153
          %v3157 = vmul.f32 %v2797, %v3153
          %v3158 = vadd.f32 %v3148, %v3154
          %v3159 = vadd.f32 %v3149, %v3155
          %v3160 = vadd.f32 %v3150, %v3156
          %v3161 = vadd.f32 %v3151, %v3157
          %s3162 = sld [smem:[#allocation5 + $0x1e]]
          %v3163 = vstv %s3162
          %v3164 = vmul.f32 %v2804, %v3163
          %v3165 = vmul.f32 %v2805, %v3163
          %v3166 = vmul.f32 %v2806, %v3163
          %v3167 = vmul.f32 %v2807, %v3163
          %v3168 = vadd.f32 %v3158, %v3164
          %v3169 = vadd.f32 %v3159, %v3165
          %v3170 = vadd.f32 %v3160, %v3166
          %v3171 = vadd.f32 %v3161, %v3167
          %s3172 = sld [smem:[#allocation5 + $0x27]]
          %v3173 = vstv %s3172
          %v3174 = vmul.f32 %v2814, %v3173
          %v3175 = vmul.f32 %v2815, %v3173
          %v3176 = vmul.f32 %v2816, %v3173
          %v3177 = vmul.f32 %v2817, %v3173
          %v3178 = vadd.f32 %v3168, %v3174
          %v3179 = vadd.f32 %v3169, %v3175
          %v3180 = vadd.f32 %v3170, %v3176
          %v3181 = vadd.f32 %v3171, %v3177
          %s3182 = sld [smem:[#allocation5 + $0x30]]
          %v3183 = vstv %s3182
          %v3184 = vmul.f32 %v2824, %v3183
          %v3185 = vmul.f32 %v2825, %v3183
          %v3186 = vmul.f32 %v2826, %v3183
          %v3187 = vmul.f32 %v2827, %v3183
          %v3188 = vadd.f32 %v3178, %v3184
          %v3189 = vadd.f32 %v3179, %v3185
          %v3190 = vadd.f32 %v3180, %v3186
          %v3191 = vadd.f32 %v3181, %v3187
          %s3192 = sld [smem:[#allocation5 + $0x39]]
          %v3193 = vstv %s3192
          %v3194 = vmul.f32 %v2834, %v3193
          %v3195 = vmul.f32 %v2835, %v3193
          %v3196 = vmul.f32 %v2836, %v3193
          %v3197 = vmul.f32 %v2837, %v3193
          %v3198 = vadd.f32 %v3188, %v3194
          %v3199 = vadd.f32 %v3189, %v3195
          %v3200 = vadd.f32 %v3190, %v3196
          %v3201 = vadd.f32 %v3191, %v3197
          %s3202 = sld [smem:[#allocation5 + $0x42]]
          %v3203 = vstv %s3202
          %v3204 = vmul.f32 %v2844, %v3203
          %v3205 = vmul.f32 %v2845, %v3203
          %v3206 = vmul.f32 %v2846, %v3203
          %v3207 = vmul.f32 %v2847, %v3203
          %v3208 = vadd.f32 %v3198, %v3204
          %v3209 = vadd.f32 %v3199, %v3205
          %v3210 = vadd.f32 %v3200, %v3206
          %v3211 = vadd.f32 %v3201, %v3207
          %3212 = vrot.lane.b32.xlu0 %v3208, 1
          %v3213 = vpop.permute.xlu0 %3212
          %3214 = vrot.lane.b32.xlu0 %v3209, 1
          %v3215 = vpop.permute.xlu0 %3214
          %3216 = vrot.lane.b32.xlu0 %v3210, 1
          %v3217 = vpop.permute.xlu0 %3216
          %3218 = vrot.lane.b32.xlu0 %v3211, 1
          %v3219 = vpop.permute.xlu0 %3218
          %v3220 = vsel %vm220, %v3213, 0.0
          %v3221 = vsel %vm220, %v3215, 0.0
          %v3222 = vsel %vm220, %v3217, 0.0
          %v3223 = vsel %vm220, %v3219, 0.0
          %v3224 = vadd.f32 %v3132, %v3220
          %v3225 = vadd.f32 %v3133, %v3221
          %v3226 = vadd.f32 %v3134, %v3222
          %v3227 = vadd.f32 %v3135, %v3223
          %s3228 = sld [smem:[#allocation5 + $0x4]]
          %v3229 = vstv %s3228
          %v3230 = vmul.f32 %v2774, %v3229
          %v3231 = vmul.f32 %v2775, %v3229
          %v3232 = vmul.f32 %v2776, %v3229
          %v3233 = vmul.f32 %v2777, %v3229
          %s3234 = sld [smem:[#allocation5 + $0xd]]
          %v3235 = vstv %s3234
          %v3236 = vmul.f32 %v2784, %v3235
          %v3237 = vmul.f32 %v2785, %v3235
          %v3238 = vmul.f32 %v2786, %v3235
          %v3239 = vmul.f32 %v2787, %v3235
          %v3240 = vadd.f32 %v3230, %v3236
          %v3241 = vadd.f32 %v3231, %v3237
          %v3242 = vadd.f32 %v3232, %v3238
          %v3243 = vadd.f32 %v3233, %v3239
          %s3244 = sld [smem:[#allocation5 + $0x16]]
          %v3245 = vstv %s3244
          %v3246 = vmul.f32 %v2794, %v3245
          %v3247 = vmul.f32 %v2795, %v3245
          %v3248 = vmul.f32 %v2796, %v3245
          %v3249 = vmul.f32 %v2797, %v3245
          %v3250 = vadd.f32 %v3240, %v3246
          %v3251 = vadd.f32 %v3241, %v3247
          %v3252 = vadd.f32 %v3242, %v3248
          %v3253 = vadd.f32 %v3243, %v3249
          %s3254 = sld [smem:[#allocation5 + $0x1f]]
          %v3255 = vstv %s3254
          %v3256 = vmul.f32 %v2804, %v3255
          %v3257 = vmul.f32 %v2805, %v3255
          %v3258 = vmul.f32 %v2806, %v3255
          %v3259 = vmul.f32 %v2807, %v3255
          %v3260 = vadd.f32 %v3250, %v3256
          %v3261 = vadd.f32 %v3251, %v3257
          %v3262 = vadd.f32 %v3252, %v3258
          %v3263 = vadd.f32 %v3253, %v3259
          %s3264 = sld [smem:[#allocation5 + $0x28]]
          %v3265 = vstv %s3264
          %v3266 = vmul.f32 %v2814, %v3265
          %v3267 = vmul.f32 %v2815, %v3265
          %v3268 = vmul.f32 %v2816, %v3265
          %v3269 = vmul.f32 %v2817, %v3265
          %v3270 = vadd.f32 %v3260, %v3266
          %v3271 = vadd.f32 %v3261, %v3267
          %v3272 = vadd.f32 %v3262, %v3268
          %v3273 = vadd.f32 %v3263, %v3269
          %s3274 = sld [smem:[#allocation5 + $0x31]]
          %v3275 = vstv %s3274
          %v3276 = vmul.f32 %v2824, %v3275
          %v3277 = vmul.f32 %v2825, %v3275
          %v3278 = vmul.f32 %v2826, %v3275
          %v3279 = vmul.f32 %v2827, %v3275
          %v3280 = vadd.f32 %v3270, %v3276
          %v3281 = vadd.f32 %v3271, %v3277
          %v3282 = vadd.f32 %v3272, %v3278
          %v3283 = vadd.f32 %v3273, %v3279
          %s3284 = sld [smem:[#allocation5 + $0x3a]]
          %v3285 = vstv %s3284
          %v3286 = vmul.f32 %v2834, %v3285
          %v3287 = vmul.f32 %v2835, %v3285
          %v3288 = vmul.f32 %v2836, %v3285
          %v3289 = vmul.f32 %v2837, %v3285
          %v3290 = vadd.f32 %v3280, %v3286
          %v3291 = vadd.f32 %v3281, %v3287
          %v3292 = vadd.f32 %v3282, %v3288
          %v3293 = vadd.f32 %v3283, %v3289
          %s3294 = sld [smem:[#allocation5 + $0x43]]
          %v3295 = vstv %s3294
          %v3296 = vmul.f32 %v2844, %v3295
          %v3297 = vmul.f32 %v2845, %v3295
          %v3298 = vmul.f32 %v2846, %v3295
          %v3299 = vmul.f32 %v2847, %v3295
          %v3300 = vadd.f32 %v3290, %v3296
          %v3301 = vadd.f32 %v3291, %v3297
          %v3302 = vadd.f32 %v3292, %v3298
          %v3303 = vadd.f32 %v3293, %v3299
          %v3304 = vadd.f32 %v3224, %v3300
          %v3305 = vadd.f32 %v3225, %v3301
          %v3306 = vadd.f32 %v3226, %v3302
          %v3307 = vadd.f32 %v3227, %v3303
          %s3308 = sld [smem:[#allocation5 + $0x5]]
          %v3309 = vstv %s3308
          %v3310 = vmul.f32 %v2774, %v3309
          %v3311 = vmul.f32 %v2775, %v3309
          %v3312 = vmul.f32 %v2776, %v3309
          %v3313 = vmul.f32 %v2777, %v3309
          %s3314 = sld [smem:[#allocation5 + $0xe]]
          %v3315 = vstv %s3314
          %v3316 = vmul.f32 %v2784, %v3315
          %v3317 = vmul.f32 %v2785, %v3315
          %v3318 = vmul.f32 %v2786, %v3315
          %v3319 = vmul.f32 %v2787, %v3315
          %v3320 = vadd.f32 %v3310, %v3316
          %v3321 = vadd.f32 %v3311, %v3317
          %v3322 = vadd.f32 %v3312, %v3318
          %v3323 = vadd.f32 %v3313, %v3319
          %s3324 = sld [smem:[#allocation5 + $0x17]]
          %v3325 = vstv %s3324
          %v3326 = vmul.f32 %v2794, %v3325
          %v3327 = vmul.f32 %v2795, %v3325
          %v3328 = vmul.f32 %v2796, %v3325
          %v3329 = vmul.f32 %v2797, %v3325
          %v3330 = vadd.f32 %v3320, %v3326
          %v3331 = vadd.f32 %v3321, %v3327
          %v3332 = vadd.f32 %v3322, %v3328
          %v3333 = vadd.f32 %v3323, %v3329
          %s3334 = sld [smem:[#allocation5 + $0x20]]
          %v3335 = vstv %s3334
          %v3336 = vmul.f32 %v2804, %v3335
          %v3337 = vmul.f32 %v2805, %v3335
          %v3338 = vmul.f32 %v2806, %v3335
          %v3339 = vmul.f32 %v2807, %v3335
          %v3340 = vadd.f32 %v3330, %v3336
          %v3341 = vadd.f32 %v3331, %v3337
          %v3342 = vadd.f32 %v3332, %v3338
          %v3343 = vadd.f32 %v3333, %v3339
          %s3344 = sld [smem:[#allocation5 + $0x29]]
          %v3345 = vstv %s3344
          %v3346 = vmul.f32 %v2814, %v3345
          %v3347 = vmul.f32 %v2815, %v3345
          %v3348 = vmul.f32 %v2816, %v3345
          %v3349 = vmul.f32 %v2817, %v3345
          %v3350 = vadd.f32 %v3340, %v3346
          %v3351 = vadd.f32 %v3341, %v3347
          %v3352 = vadd.f32 %v3342, %v3348
          %v3353 = vadd.f32 %v3343, %v3349
          %s3354 = sld [smem:[#allocation5 + $0x32]]
          %v3355 = vstv %s3354
          %v3356 = vmul.f32 %v2824, %v3355
          %v3357 = vmul.f32 %v2825, %v3355
          %v3358 = vmul.f32 %v2826, %v3355
          %v3359 = vmul.f32 %v2827, %v3355
          %v3360 = vadd.f32 %v3350, %v3356
          %v3361 = vadd.f32 %v3351, %v3357
          %v3362 = vadd.f32 %v3352, %v3358
          %v3363 = vadd.f32 %v3353, %v3359
          %s3364 = sld [smem:[#allocation5 + $0x3b]]
          %v3365 = vstv %s3364
          %v3366 = vmul.f32 %v2834, %v3365
          %v3367 = vmul.f32 %v2835, %v3365
          %v3368 = vmul.f32 %v2836, %v3365
          %v3369 = vmul.f32 %v2837, %v3365
          %v3370 = vadd.f32 %v3360, %v3366
          %v3371 = vadd.f32 %v3361, %v3367
          %v3372 = vadd.f32 %v3362, %v3368
          %v3373 = vadd.f32 %v3363, %v3369
          %s3374 = sld [smem:[#allocation5 + $0x44]]
          %v3375 = vstv %s3374
          %v3376 = vmul.f32 %v2844, %v3375
          %v3377 = vmul.f32 %v2845, %v3375
          %v3378 = vmul.f32 %v2846, %v3375
          %v3379 = vmul.f32 %v2847, %v3375
          %v3380 = vadd.f32 %v3370, %v3376
          %v3381 = vadd.f32 %v3371, %v3377
          %v3382 = vadd.f32 %v3372, %v3378
          %v3383 = vadd.f32 %v3373, %v3379
          %3384 = vrot.lane.b32.xlu0 %v3380, 127
          %v3385 = vpop.permute.xlu0 %3384
          %3386 = vrot.lane.b32.xlu0 %v3381, 127
          %v3387 = vpop.permute.xlu0 %3386
          %3388 = vrot.lane.b32.xlu0 %v3382, 127
          %v3389 = vpop.permute.xlu0 %3388
          %3390 = vrot.lane.b32.xlu0 %v3383, 127
          %v3391 = vpop.permute.xlu0 %3390
          %v3392 = vsel %vm221, %v3385, 0.0
          %v3393 = vsel %vm221, %v3387, 0.0
          %v3394 = vsel %vm221, %v3389, 0.0
          %v3395 = vsel %vm221, %v3391, 0.0
          %v3396 = vadd.f32 %v3304, %v3392
          %v3397 = vadd.f32 %v3305, %v3393
          %v3398 = vadd.f32 %v3306, %v3394
          %v3399 = vadd.f32 %v3307, %v3395
          %s3400 = sld [smem:[#allocation5 + $0x6]]
          %v3401 = vstv %s3400
          %v3402 = vmul.f32 %v2774, %v3401
          %v3403 = vmul.f32 %v2775, %v3401
          %v3404 = vmul.f32 %v2776, %v3401
          %v3405 = vmul.f32 %v2777, %v3401
          %s3406 = sld [smem:[#allocation5 + $0xf]]
          %v3407 = vstv %s3406
          %v3408 = vmul.f32 %v2784, %v3407
          %v3409 = vmul.f32 %v2785, %v3407
          %v3410 = vmul.f32 %v2786, %v3407
          %v3411 = vmul.f32 %v2787, %v3407
          %v3412 = vadd.f32 %v3402, %v3408
          %v3413 = vadd.f32 %v3403, %v3409
          %v3414 = vadd.f32 %v3404, %v3410
          %v3415 = vadd.f32 %v3405, %v3411
          %s3416 = sld [smem:[#allocation5 + $0x18]]
          %v3417 = vstv %s3416
          %v3418 = vmul.f32 %v2794, %v3417
          %v3419 = vmul.f32 %v2795, %v3417
          %v3420 = vmul.f32 %v2796, %v3417
          %v3421 = vmul.f32 %v2797, %v3417
          %v3422 = vadd.f32 %v3412, %v3418
          %v3423 = vadd.f32 %v3413, %v3419
          %v3424 = vadd.f32 %v3414, %v3420
          %v3425 = vadd.f32 %v3415, %v3421
          %s3426 = sld [smem:[#allocation5 + $0x21]]
          %v3427 = vstv %s3426
          %v3428 = vmul.f32 %v2804, %v3427
          %v3429 = vmul.f32 %v2805, %v3427
          %v3430 = vmul.f32 %v2806, %v3427
          %v3431 = vmul.f32 %v2807, %v3427
          %v3432 = vadd.f32 %v3422, %v3428
          %v3433 = vadd.f32 %v3423, %v3429
          %v3434 = vadd.f32 %v3424, %v3430
          %v3435 = vadd.f32 %v3425, %v3431
          %s3436 = sld [smem:[#allocation5 + $0x2a]]
          %v3437 = vstv %s3436
          %v3438 = vmul.f32 %v2814, %v3437
          %v3439 = vmul.f32 %v2815, %v3437
          %v3440 = vmul.f32 %v2816, %v3437
          %v3441 = vmul.f32 %v2817, %v3437
          %v3442 = vadd.f32 %v3432, %v3438
          %v3443 = vadd.f32 %v3433, %v3439
          %v3444 = vadd.f32 %v3434, %v3440
          %v3445 = vadd.f32 %v3435, %v3441
          %s3446 = sld [smem:[#allocation5 + $0x33]]
          %v3447 = vstv %s3446
          %v3448 = vmul.f32 %v2824, %v3447
          %v3449 = vmul.f32 %v2825, %v3447
          %v3450 = vmul.f32 %v2826, %v3447
          %v3451 = vmul.f32 %v2827, %v3447
          %v3452 = vadd.f32 %v3442, %v3448
          %v3453 = vadd.f32 %v3443, %v3449
          %v3454 = vadd.f32 %v3444, %v3450
          %v3455 = vadd.f32 %v3445, %v3451
          %s3456 = sld [smem:[#allocation5 + $0x3c]]
          %v3457 = vstv %s3456
          %v3458 = vmul.f32 %v2834, %v3457
          %v3459 = vmul.f32 %v2835, %v3457
          %v3460 = vmul.f32 %v2836, %v3457
          %v3461 = vmul.f32 %v2837, %v3457
          %v3462 = vadd.f32 %v3452, %v3458
          %v3463 = vadd.f32 %v3453, %v3459
          %v3464 = vadd.f32 %v3454, %v3460
          %v3465 = vadd.f32 %v3455, %v3461
          %s3466 = sld [smem:[#allocation5 + $0x45]]
          %v3467 = vstv %s3466
          %v3468 = vmul.f32 %v2844, %v3467
          %v3469 = vmul.f32 %v2845, %v3467
          %v3470 = vmul.f32 %v2846, %v3467
          %v3471 = vmul.f32 %v2847, %v3467
          %v3472 = vadd.f32 %v3462, %v3468
          %v3473 = vadd.f32 %v3463, %v3469
          %v3474 = vadd.f32 %v3464, %v3470
          %v3475 = vadd.f32 %v3465, %v3471
          %v3476 = vrot.slane %v3472, 1
          %v3477 = vrot.slane %v3473, 1
          %v3478 = vrot.slane %v3474, 1
          %v3479 = vrot.slane %v3475, 1
          %v3480 = vsel %vm2495, %v3478, %v3479
          %v3481 = vsel %vm2495, %v3477, %v3478
          %v3482 = vsel %vm2495, %v3476, %v3477
          %v3483 = vsel %vm2495, %v3479, %v3476
          %3484 = vrot.lane.b32.xlu0 %v3482, 1
          %v3485 = vpop.permute.xlu0 %3484
          %3486 = vrot.lane.b32.xlu0 %v3481, 1
          %v3487 = vpop.permute.xlu0 %3486
          %3488 = vrot.lane.b32.xlu0 %v3480, 1
          %v3489 = vpop.permute.xlu0 %3488
          %3490 = vrot.lane.b32.xlu0 %v3483, 1
          %v3491 = vpop.permute.xlu0 %3490
          %v3492 = vsel %vm230, %v3485, 0.0
          %v3493 = vsel %vm231, %v3487, 0.0
          %v3494 = vsel %vm232, %v3489, 0.0
          %v3495 = vsel %vm233, %v3491, 0.0
          %v3496 = vadd.f32 %v3396, %v3492
          %v3497 = vadd.f32 %v3397, %v3493
          %v3498 = vadd.f32 %v3398, %v3494
          %v3499 = vadd.f32 %v3399, %v3495
          %s3500 = sld [smem:[#allocation5 + $0x7]]
          %v3501 = vstv %s3500
          %v3502 = vmul.f32 %v2774, %v3501
          %v3503 = vmul.f32 %v2775, %v3501
          %v3504 = vmul.f32 %v2776, %v3501
          %v3505 = vmul.f32 %v2777, %v3501
          %s3506 = sld [smem:[#allocation5 + $0x10]]
          %v3507 = vstv %s3506
          %v3508 = vmul.f32 %v2784, %v3507
          %v3509 = vmul.f32 %v2785, %v3507
          %v3510 = vmul.f32 %v2786, %v3507
          %v3511 = vmul.f32 %v2787, %v3507
          %v3512 = vadd.f32 %v3502, %v3508
          %v3513 = vadd.f32 %v3503, %v3509
          %v3514 = vadd.f32 %v3504, %v3510
          %v3515 = vadd.f32 %v3505, %v3511
          %s3516 = sld [smem:[#allocation5 + $0x19]]
          %v3517 = vstv %s3516
          %v3518 = vmul.f32 %v2794, %v3517
          %v3519 = vmul.f32 %v2795, %v3517
          %v3520 = vmul.f32 %v2796, %v3517
          %v3521 = vmul.f32 %v2797, %v3517
          %v3522 = vadd.f32 %v3512, %v3518
          %v3523 = vadd.f32 %v3513, %v3519
          %v3524 = vadd.f32 %v3514, %v3520
          %v3525 = vadd.f32 %v3515, %v3521
          %s3526 = sld [smem:[#allocation5 + $0x22]]
          %v3527 = vstv %s3526
          %v3528 = vmul.f32 %v2804, %v3527
          %v3529 = vmul.f32 %v2805, %v3527
          %v3530 = vmul.f32 %v2806, %v3527
          %v3531 = vmul.f32 %v2807, %v3527
          %v3532 = vadd.f32 %v3522, %v3528
          %v3533 = vadd.f32 %v3523, %v3529
          %v3534 = vadd.f32 %v3524, %v3530
          %v3535 = vadd.f32 %v3525, %v3531
          %s3536 = sld [smem:[#allocation5 + $0x2b]]
          %v3537 = vstv %s3536
          %v3538 = vmul.f32 %v2814, %v3537
          %v3539 = vmul.f32 %v2815, %v3537
          %v3540 = vmul.f32 %v2816, %v3537
          %v3541 = vmul.f32 %v2817, %v3537
          %v3542 = vadd.f32 %v3532, %v3538
          %v3543 = vadd.f32 %v3533, %v3539
          %v3544 = vadd.f32 %v3534, %v3540
          %v3545 = vadd.f32 %v3535, %v3541
          %s3546 = sld [smem:[#allocation5 + $0x34]]
          %v3547 = vstv %s3546
          %v3548 = vmul.f32 %v2824, %v3547
          %v3549 = vmul.f32 %v2825, %v3547
          %v3550 = vmul.f32 %v2826, %v3547
          %v3551 = vmul.f32 %v2827, %v3547
          %v3552 = vadd.f32 %v3542, %v3548
          %v3553 = vadd.f32 %v3543, %v3549
          %v3554 = vadd.f32 %v3544, %v3550
          %v3555 = vadd.f32 %v3545, %v3551
          %s3556 = sld [smem:[#allocation5 + $0x3d]]
          %v3557 = vstv %s3556
          %v3558 = vmul.f32 %v2834, %v3557
          %v3559 = vmul.f32 %v2835, %v3557
          %v3560 = vmul.f32 %v2836, %v3557
          %v3561 = vmul.f32 %v2837, %v3557
          %v3562 = vadd.f32 %v3552, %v3558
          %v3563 = vadd.f32 %v3553, %v3559
          %v3564 = vadd.f32 %v3554, %v3560
          %v3565 = vadd.f32 %v3555, %v3561
          %s3566 = sld [smem:[#allocation5 + $0x46]]
          %v3567 = vstv %s3566
          %v3568 = vmul.f32 %v2844, %v3567
          %v3569 = vmul.f32 %v2845, %v3567
          %v3570 = vmul.f32 %v2846, %v3567
          %v3571 = vmul.f32 %v2847, %v3567
          %v3572 = vadd.f32 %v3562, %v3568
          %v3573 = vadd.f32 %v3563, %v3569
          %v3574 = vadd.f32 %v3564, %v3570
          %v3575 = vadd.f32 %v3565, %v3571
          %v3576 = vrot.slane %v3572, 1
          %v3577 = vrot.slane %v3573, 1
          %v3578 = vrot.slane %v3574, 1
          %v3579 = vrot.slane %v3575, 1
          %v3580 = vsel %vm2495, %v3578, %v3579
          %v3581 = vsel %vm2495, %v3577, %v3578
          %v3582 = vsel %vm2495, %v3576, %v3577
          %v3583 = vsel %vm2495, %v3579, %v3576
          %v3584 = vsel %vm216, %v3582, 0.0
          %v3585 = vsel %vm217, %v3581, 0.0
          %v3586 = vsel %vm218, %v3580, 0.0
          %v3587 = vsel %vm219, %v3583, 0.0
          %v3588 = vadd.f32 %v3496, %v3584
          %v3589 = vadd.f32 %v3497, %v3585
          %v3590 = vadd.f32 %v3498, %v3586
          %v3591 = vadd.f32 %v3499, %v3587
          %s3592 = sld [smem:[#allocation5 + $0x8]]
          %v3593 = vstv %s3592
          %v3594 = vmul.f32 %v2774, %v3593
          %v3595 = vmul.f32 %v2775, %v3593
          %v3596 = vmul.f32 %v2776, %v3593
          %v3597 = vmul.f32 %v2777, %v3593
          %s3598 = sld [smem:[#allocation5 + $0x11]]
          %v3599 = vstv %s3598
          %v3600 = vmul.f32 %v2784, %v3599
          %v3601 = vmul.f32 %v2785, %v3599
          %v3602 = vmul.f32 %v2786, %v3599
          %v3603 = vmul.f32 %v2787, %v3599
          %v3604 = vadd.f32 %v3594, %v3600
          %v3605 = vadd.f32 %v3595, %v3601
          %v3606 = vadd.f32 %v3596, %v3602
          %v3607 = vadd.f32 %v3597, %v3603
          %s3608 = sld [smem:[#allocation5 + $0x1a]]
          %v3609 = vstv %s3608
          %v3610 = vmul.f32 %v2794, %v3609
          %v3611 = vmul.f32 %v2795, %v3609
          %v3612 = vmul.f32 %v2796, %v3609
          %v3613 = vmul.f32 %v2797, %v3609
          %v3614 = vadd.f32 %v3604, %v3610
          %v3615 = vadd.f32 %v3605, %v3611
          %v3616 = vadd.f32 %v3606, %v3612
          %v3617 = vadd.f32 %v3607, %v3613
          %s3618 = sld [smem:[#allocation5 + $0x23]]
          %v3619 = vstv %s3618
          %v3620 = vmul.f32 %v2804, %v3619
          %v3621 = vmul.f32 %v2805, %v3619
          %v3622 = vmul.f32 %v2806, %v3619
          %v3623 = vmul.f32 %v2807, %v3619
          %v3624 = vadd.f32 %v3614, %v3620
          %v3625 = vadd.f32 %v3615, %v3621
          %v3626 = vadd.f32 %v3616, %v3622
          %v3627 = vadd.f32 %v3617, %v3623
          %s3628 = sld [smem:[#allocation5 + $0x2c]]
          %v3629 = vstv %s3628
          %v3630 = vmul.f32 %v2814, %v3629
          %v3631 = vmul.f32 %v2815, %v3629
          %v3632 = vmul.f32 %v2816, %v3629
          %v3633 = vmul.f32 %v2817, %v3629
          %v3634 = vadd.f32 %v3624, %v3630
          %v3635 = vadd.f32 %v3625, %v3631
          %v3636 = vadd.f32 %v3626, %v3632
          %v3637 = vadd.f32 %v3627, %v3633
          %s3638 = sld [smem:[#allocation5 + $0x35]]
          %v3639 = vstv %s3638
          %v3640 = vmul.f32 %v2824, %v3639
          %v3641 = vmul.f32 %v2825, %v3639
          %v3642 = vmul.f32 %v2826, %v3639
          %v3643 = vmul.f32 %v2827, %v3639
          %v3644 = vadd.f32 %v3634, %v3640
          %v3645 = vadd.f32 %v3635, %v3641
          %v3646 = vadd.f32 %v3636, %v3642
          %v3647 = vadd.f32 %v3637, %v3643
          %s3648 = sld [smem:[#allocation5 + $0x3e]]
          %v3649 = vstv %s3648
          %v3650 = vmul.f32 %v2834, %v3649
          %v3651 = vmul.f32 %v2835, %v3649
          %v3652 = vmul.f32 %v2836, %v3649
          %v3653 = vmul.f32 %v2837, %v3649
          %v3654 = vadd.f32 %v3644, %v3650
          %v3655 = vadd.f32 %v3645, %v3651
          %v3656 = vadd.f32 %v3646, %v3652
          %v3657 = vadd.f32 %v3647, %v3653
          %s3658 = sld [smem:[#allocation5 + $0x47]]
          %v3659 = vstv %s3658
          %v3660 = vmul.f32 %v2844, %v3659
          %v3661 = vmul.f32 %v2845, %v3659
          %v3662 = vmul.f32 %v2846, %v3659
          %v3663 = vmul.f32 %v2847, %v3659
          %v3664 = vadd.f32 %v3654, %v3660
          %v3665 = vadd.f32 %v3655, %v3661
          %v3666 = vadd.f32 %v3656, %v3662
          %v3667 = vadd.f32 %v3657, %v3663
          %v3668 = vrot.slane %v3664, 1
          %v3669 = vrot.slane %v3665, 1
          %v3670 = vrot.slane %v3666, 1
          %v3671 = vrot.slane %v3667, 1
          %v3672 = vsel %vm2495, %v3670, %v3671
          %v3673 = vsel %vm2495, %v3669, %v3670
          %v3674 = vsel %vm2495, %v3668, %v3669
          %v3675 = vsel %vm2495, %v3671, %v3668
          %3676 = vrot.lane.b32.xlu0 %v3674, 127
          %v3677 = vpop.permute.xlu0 %3676
          %3678 = vrot.lane.b32.xlu0 %v3673, 127
          %v3679 = vpop.permute.xlu0 %3678
          %3680 = vrot.lane.b32.xlu0 %v3672, 127
          %v3681 = vpop.permute.xlu0 %3680
          %3682 = vrot.lane.b32.xlu0 %v3675, 127
          %v3683 = vpop.permute.xlu0 %3682
          %v3684 = vsel %vm234, %v3677, 0.0
          %v3685 = vsel %vm235, %v3679, 0.0
          %v3686 = vsel %vm236, %v3681, 0.0
          %v3687 = vsel %vm237, %v3683, 0.0
          %v3688 = vadd.f32 %v3588, %v3684
          %v3689 = vadd.f32 %v3589, %v3685
          %v3690 = vadd.f32 %v3590, %v3686
          %v3691 = vadd.f32 %v3591, %v3687
          %s3692 = sld [smem:[#allocation6]]
          %v3693 = vstv %s3692
          %v3694 = vadd.f32 %v3688, %v3693
          %v3695 = vadd.f32 %v3689, %v3693
          %v3696 = vadd.f32 %v3690, %v3693
          %v3697 = vadd.f32 %v3691, %v3693
          %v3698 = vsub.f32 0.0, %v3694
          %v3699 = vsub.f32 0.0, %v3695
          %v3700 = vsub.f32 0.0, %v3696
          %v3701 = vsub.f32 0.0, %v3697
          %v3702 = vmul.f32 %v3698, 1.442695
          %v3703 = vpow.pop %v3702
          %v3704 = vmul.f32 %v3699, 1.442695
          %v3705 = vpow.pop %v3704
          %v3706 = vmul.f32 %v3700, 1.442695
          %v3707 = vpow.pop %v3706
          %v3708 = vmul.f32 %v3701, 1.442695
          %v3709 = vpow.pop %v3708
          %v3710 = vadd.f32 %v3703, 1.0
          %v3711 = vadd.f32 %v3705, 1.0
          %v3712 = vadd.f32 %v3707, 1.0
          %v3713 = vadd.f32 %v3709, 1.0
          %v3714 = vrcp.pop %v3710
          %v3715 = vmul.f32 1.0, %v3714
          %v3716 = vrcp.pop %v3711
          %v3717 = vmul.f32 1.0, %v3716
          %v3718 = vrcp.pop %v3712
          %v3719 = vmul.f32 1.0, %v3718
          %v3720 = vrcp.pop %v3713
          %v3721 = vmul.f32 1.0, %v3720
          %v3726 = vcombine.high %v3715, %v3715
          %v3728 = vunpack.c.l.s4 1966171168
          %v3729 = vunpack.c.0.s8 %v3728
          %v3730 = vlaneseq
          %v3731 = vshrl.u32 %v3730, 7
          %v3732 = vsub.s32 %v3729, %v3731
          %v3733 = vrot.slane %v3715, %v3732
          %v3735 = vunpack.c.l.s4 1966171168
          %v3736 = vunpack.c.0.s8 %v3735
          %v3737 = vlaneseq
          %v3738 = vshrl.u32 %v3737, 7
          %v3739 = vsub.s32 %v3736, %v3738
          %v3740 = vrot.slane %v3726, %v3739
          %v3741 = vcombine.high %v3733, %v3733
          %v3742 = vcombine.high %v3740, %v3740
          %v3744 = vunpack.c.l.s4 1966171168
          %v3745 = vunpack.c.0.s8 %v3744
          %v3746 = vlaneseq
          %v3747 = vshrl.u32 %v3746, 7
          %v3748 = vsub.s32 %v3745, %v3747
          %v3749 = vrot.slane %v3733, %v3748
          %v3751 = vunpack.c.l.s4 1966171168
          %v3752 = vunpack.c.0.s8 %v3751
          %v3753 = vlaneseq
          %v3754 = vshrl.u32 %v3753, 7
          %v3755 = vsub.s32 %v3752, %v3754
          %v3756 = vrot.slane %v3740, %v3755
          %v3758 = vunpack.c.l.s4 1966171168
          %v3759 = vunpack.c.0.s8 %v3758
          %v3760 = vlaneseq
          %v3761 = vshrl.u32 %v3760, 7
          %v3762 = vsub.s32 %v3759, %v3761
          %v3763 = vrot.slane %v3741, %v3762
          %v3765 = vunpack.c.l.s4 1966171168
          %v3766 = vunpack.c.0.s8 %v3765
          %v3767 = vlaneseq
          %v3768 = vshrl.u32 %v3767, 7
          %v3769 = vsub.s32 %v3766, %v3768
          %v3770 = vrot.slane %v3742, %v3769
          %v3771 = vcombine.high %v3749, %v3749
          %v3772 = vcombine.high %v3756, %v3756
          %v3773 = vcombine.high %v3763, %v3763
          %v3774 = vcombine.high %v3770, %v3770
          %v3775 = vcombine.high %v3717, %v3717
          %v3777 = vunpack.c.l.s4 1966171168
          %v3778 = vunpack.c.0.s8 %v3777
          %v3779 = vlaneseq
          %v3780 = vshrl.u32 %v3779, 7
          %v3781 = vsub.s32 %v3778, %v3780
          %v3782 = vrot.slane %v3717, %v3781
          %v3784 = vunpack.c.l.s4 1966171168
          %v3785 = vunpack.c.0.s8 %v3784
          %v3786 = vlaneseq
          %v3787 = vshrl.u32 %v3786, 7
          %v3788 = vsub.s32 %v3785, %v3787
          %v3789 = vrot.slane %v3775, %v3788
          %v3790 = vcombine.high %v3782, %v3782
          %v3791 = vcombine.high %v3789, %v3789
          %v3793 = vunpack.c.l.s4 1966171168
          %v3794 = vunpack.c.0.s8 %v3793
          %v3795 = vlaneseq
          %v3796 = vshrl.u32 %v3795, 7
          %v3797 = vsub.s32 %v3794, %v3796
          %v3798 = vrot.slane %v3782, %v3797
          %v3800 = vunpack.c.l.s4 1966171168
          %v3801 = vunpack.c.0.s8 %v3800
          %v3802 = vlaneseq
          %v3803 = vshrl.u32 %v3802, 7
          %v3804 = vsub.s32 %v3801, %v3803
          %v3805 = vrot.slane %v3789, %v3804
          %v3807 = vunpack.c.l.s4 1966171168
          %v3808 = vunpack.c.0.s8 %v3807
          %v3809 = vlaneseq
          %v3810 = vshrl.u32 %v3809, 7
          %v3811 = vsub.s32 %v3808, %v3810
          %v3812 = vrot.slane %v3790, %v3811
          %v3814 = vunpack.c.l.s4 1966171168
          %v3815 = vunpack.c.0.s8 %v3814
          %v3816 = vlaneseq
          %v3817 = vshrl.u32 %v3816, 7
          %v3818 = vsub.s32 %v3815, %v3817
          %v3819 = vrot.slane %v3791, %v3818
          %v3820 = vcombine.high %v3798, %v3798
          %v3821 = vcombine.high %v3805, %v3805
          %v3822 = vcombine.high %v3812, %v3812
          %v3823 = vcombine.high %v3819, %v3819
          %v3824 = vcombine.high %v3719, %v3719
          %v3826 = vunpack.c.l.s4 1966171168
          %v3827 = vunpack.c.0.s8 %v3826
          %v3828 = vlaneseq
          %v3829 = vshrl.u32 %v3828, 7
          %v3830 = vsub.s32 %v3827, %v3829
          %v3831 = vrot.slane %v3719, %v3830
          %v3833 = vunpack.c.l.s4 1966171168
          %v3834 = vunpack.c.0.s8 %v3833
          %v3835 = vlaneseq
          %v3836 = vshrl.u32 %v3835, 7
          %v3837 = vsub.s32 %v3834, %v3836
          %v3838 = vrot.slane %v3824, %v3837
          %v3839 = vcombine.high %v3831, %v3831
          %v3840 = vcombine.high %v3838, %v3838
          %v3842 = vunpack.c.l.s4 1966171168
          %v3843 = vunpack.c.0.s8 %v3842
          %v3844 = vlaneseq
          %v3845 = vshrl.u32 %v3844, 7
          %v3846 = vsub.s32 %v3843, %v3845
          %v3847 = vrot.slane %v3831, %v3846
          %v3849 = vunpack.c.l.s4 1966171168
          %v3850 = vunpack.c.0.s8 %v3849
          %v3851 = vlaneseq
          %v3852 = vshrl.u32 %v3851, 7
          %v3853 = vsub.s32 %v3850, %v3852
          %v3854 = vrot.slane %v3838, %v3853
          %v3856 = vunpack.c.l.s4 1966171168
          %v3857 = vunpack.c.0.s8 %v3856
          %v3858 = vlaneseq
          %v3859 = vshrl.u32 %v3858, 7
          %v3860 = vsub.s32 %v3857, %v3859
          %v3861 = vrot.slane %v3839, %v3860
          %v3863 = vunpack.c.l.s4 1966171168
          %v3864 = vunpack.c.0.s8 %v3863
          %v3865 = vlaneseq
          %v3866 = vshrl.u32 %v3865, 7
          %v3867 = vsub.s32 %v3864, %v3866
          %v3868 = vrot.slane %v3840, %v3867
          %v3869 = vcombine.high %v3847, %v3847
          %v3870 = vcombine.high %v3854, %v3854
          %v3871 = vcombine.high %v3861, %v3861
          %v3872 = vcombine.high %v3868, %v3868
          %v3873 = vcombine.high %v3721, %v3721
          %v3875 = vunpack.c.l.s4 1966171168
          %v3876 = vunpack.c.0.s8 %v3875
          %v3877 = vlaneseq
          %v3878 = vshrl.u32 %v3877, 7
          %v3879 = vsub.s32 %v3876, %v3878
          %v3880 = vrot.slane %v3721, %v3879
          %v3882 = vunpack.c.l.s4 1966171168
          %v3883 = vunpack.c.0.s8 %v3882
          %v3884 = vlaneseq
          %v3885 = vshrl.u32 %v3884, 7
          %v3886 = vsub.s32 %v3883, %v3885
          %v3887 = vrot.slane %v3873, %v3886
          %v3888 = vcombine.high %v3880, %v3880
          %v3889 = vcombine.high %v3887, %v3887
          %v3891 = vunpack.c.l.s4 1966171168
          %v3892 = vunpack.c.0.s8 %v3891
          %v3893 = vlaneseq
          %v3894 = vshrl.u32 %v3893, 7
          %v3895 = vsub.s32 %v3892, %v3894
          %v3896 = vrot.slane %v3880, %v3895
          %v3898 = vunpack.c.l.s4 1966171168
          %v3899 = vunpack.c.0.s8 %v3898
          %v3900 = vlaneseq
          %v3901 = vshrl.u32 %v3900, 7
          %v3902 = vsub.s32 %v3899, %v3901
          %v3903 = vrot.slane %v3887, %v3902
          %v3905 = vunpack.c.l.s4 1966171168
          %v3906 = vunpack.c.0.s8 %v3905
          %v3907 = vlaneseq
          %v3908 = vshrl.u32 %v3907, 7
          %v3909 = vsub.s32 %v3906, %v3908
          %v3910 = vrot.slane %v3888, %v3909
          %v3912 = vunpack.c.l.s4 1966171168
          %v3913 = vunpack.c.0.s8 %v3912
          %v3914 = vlaneseq
          %v3915 = vshrl.u32 %v3914, 7
          %v3916 = vsub.s32 %v3913, %v3915
          %v3917 = vrot.slane %v3889, %v3916
          %v3918 = vcombine.high %v3896, %v3896
          %v3919 = vcombine.high %v3903, %v3903
          %v3920 = vcombine.high %v3910, %v3910
          %v3921 = vcombine.high %v3917, %v3917
          %v3922 = vlaneseq
          %v3923 = vshrl.u32 %v3922, 7
          %v3924 = vsub.s32 0, %v3923
          %v3925 = vrot.slane %v3749, %v3924
          %v3926 = vlaneseq
          %v3927 = vshrl.u32 %v3926, 7
          %v3928 = vsub.s32 0, %v3927
          %v3929 = vrot.slane %v3763, %v3928
          %v3930 = vlaneseq
          %v3931 = vshrl.u32 %v3930, 7
          %v3932 = vsub.s32 0, %v3931
          %v3933 = vrot.slane %v3771, %v3932
          %v3934 = vlaneseq
          %v3935 = vshrl.u32 %v3934, 7
          %v3936 = vsub.s32 0, %v3935
          %v3937 = vrot.slane %v3773, %v3936
          %v3938 = vlaneseq
          %v3939 = vshrl.u32 %v3938, 7
          %v3940 = vsub.s32 0, %v3939
          %v3941 = vrot.slane %v3756, %v3940
          %v3942 = vlaneseq
          %v3943 = vshrl.u32 %v3942, 7
          %v3944 = vsub.s32 0, %v3943
          %v3945 = vrot.slane %v3770, %v3944
          %v3946 = vlaneseq
          %v3947 = vshrl.u32 %v3946, 7
          %v3948 = vsub.s32 0, %v3947
          %v3949 = vrot.slane %v3772, %v3948
          %v3950 = vlaneseq
          %v3951 = vshrl.u32 %v3950, 7
          %v3952 = vsub.s32 0, %v3951
          %v3953 = vrot.slane %v3774, %v3952
          %v3954 = vlaneseq
          %v3955 = vshrl.u32 %v3954, 7
          %v3956 = vsub.s32 0, %v3955
          %v3957 = vrot.slane %v3798, %v3956
          %v3958 = vlaneseq
          %v3959 = vshrl.u32 %v3958, 7
          %v3960 = vsub.s32 0, %v3959
          %v3961 = vrot.slane %v3812, %v3960
          %v3962 = vlaneseq
          %v3963 = vshrl.u32 %v3962, 7
          %v3964 = vsub.s32 0, %v3963
          %v3965 = vrot.slane %v3820, %v3964
          %v3966 = vlaneseq
          %v3967 = vshrl.u32 %v3966, 7
          %v3968 = vsub.s32 0, %v3967
          %v3969 = vrot.slane %v3822, %v3968
          %v3970 = vlaneseq
          %v3971 = vshrl.u32 %v3970, 7
          %v3972 = vsub.s32 0, %v3971
          %v3973 = vrot.slane %v3805, %v3972
          %v3974 = vlaneseq
          %v3975 = vshrl.u32 %v3974, 7
          %v3976 = vsub.s32 0, %v3975
          %v3977 = vrot.slane %v3819, %v3976
          %v3978 = vlaneseq
          %v3979 = vshrl.u32 %v3978, 7
          %v3980 = vsub.s32 0, %v3979
          %v3981 = vrot.slane %v3821, %v3980
          %v3982 = vlaneseq
          %v3983 = vshrl.u32 %v3982, 7
          %v3984 = vsub.s32 0, %v3983
          %v3985 = vrot.slane %v3823, %v3984
          %v3986 = vlaneseq
          %v3987 = vshrl.u32 %v3986, 7
          %v3988 = vsub.s32 0, %v3987
          %v3989 = vrot.slane %v3847, %v3988
          %v3990 = vlaneseq
          %v3991 = vshrl.u32 %v3990, 7
          %v3992 = vsub.s32 0, %v3991
          %v3993 = vrot.slane %v3861, %v3992
          %v3994 = vlaneseq
          %v3995 = vshrl.u32 %v3994, 7
          %v3996 = vsub.s32 0, %v3995
          %v3997 = vrot.slane %v3869, %v3996
          %v3998 = vlaneseq
          %v3999 = vshrl.u32 %v3998, 7
          %v4000 = vsub.s32 0, %v3999
          %v4001 = vrot.slane %v3871, %v4000
          %v4002 = vlaneseq
          %v4003 = vshrl.u32 %v4002, 7
          %v4004 = vsub.s32 0, %v4003
          %v4005 = vrot.slane %v3854, %v4004
          %v4006 = vlaneseq
          %v4007 = vshrl.u32 %v4006, 7
          %v4008 = vsub.s32 0, %v4007
          %v4009 = vrot.slane %v3868, %v4008
          %v4010 = vlaneseq
          %v4011 = vshrl.u32 %v4010, 7
          %v4012 = vsub.s32 0, %v4011
          %v4013 = vrot.slane %v3870, %v4012
          %v4014 = vlaneseq
          %v4015 = vshrl.u32 %v4014, 7
          %v4016 = vsub.s32 0, %v4015
          %v4017 = vrot.slane %v3872, %v4016
          %v4018 = vlaneseq
          %v4019 = vshrl.u32 %v4018, 7
          %v4020 = vsub.s32 0, %v4019
          %v4021 = vrot.slane %v3896, %v4020
          %v4022 = vlaneseq
          %v4023 = vshrl.u32 %v4022, 7
          %v4024 = vsub.s32 0, %v4023
          %v4025 = vrot.slane %v3910, %v4024
          %v4026 = vlaneseq
          %v4027 = vshrl.u32 %v4026, 7
          %v4028 = vsub.s32 0, %v4027
          %v4029 = vrot.slane %v3918, %v4028
          %v4030 = vlaneseq
          %v4031 = vshrl.u32 %v4030, 7
          %v4032 = vsub.s32 0, %v4031
          %v4033 = vrot.slane %v3920, %v4032
          %v4034 = vlaneseq
          %v4035 = vshrl.u32 %v4034, 7
          %v4036 = vsub.s32 0, %v4035
          %v4037 = vrot.slane %v3903, %v4036
          %v4038 = vlaneseq
          %v4039 = vshrl.u32 %v4038, 7
          %v4040 = vsub.s32 0, %v4039
          %v4041 = vrot.slane %v3917, %v4040
          %v4042 = vlaneseq
          %v4043 = vshrl.u32 %v4042, 7
          %v4044 = vsub.s32 0, %v4043
          %v4045 = vrot.slane %v3919, %v4044
          %v4046 = vlaneseq
          %v4047 = vshrl.u32 %v4046, 7
          %v4048 = vsub.s32 0, %v4047
          %v4049 = vrot.slane %v3921, %v4048
          %v4082 = vmul.f32 %v247, %v3925
          %v4083 = vmul.f32 %v248, %v3925
          %v4084 = vmul.f32 %v249, %v3929
          %v4085 = vmul.f32 %v250, %v3929
          %v4086 = vmul.f32 %v251, %v3933
          %v4087 = vmul.f32 %v252, %v3933
          %v4088 = vmul.f32 %v253, %v3937
          %v4089 = vmul.f32 %v254, %v3937
          %v4090 = vmul.f32 %v255, %v3941
          %v4091 = vmul.f32 %v256, %v3941
          %v4092 = vmul.f32 %v257, %v3945
          %v4093 = vmul.f32 %v258, %v3945
          %v4094 = vmul.f32 %v259, %v3949
          %v4095 = vmul.f32 %v260, %v3949
          %v4096 = vmul.f32 %v261, %v3953
          %v4097 = vmul.f32 %v262, %v3953
          %v4098 = vmul.f32 %v263, %v3957
          %v4099 = vmul.f32 %v264, %v3957
          %v4100 = vmul.f32 %v265, %v3961
          %v4101 = vmul.f32 %v266, %v3961
          %v4102 = vmul.f32 %v267, %v3965
          %v4103 = vmul.f32 %v268, %v3965
          %v4104 = vmul.f32 %v269, %v3969
          %v4105 = vmul.f32 %v270, %v3969
          %v4106 = vmul.f32 %v271, %v3973
          %v4107 = vmul.f32 %v272, %v3973
          %v4108 = vmul.f32 %v273, %v3977
          %v4109 = vmul.f32 %v274, %v3977
          %v4110 = vmul.f32 %v275, %v3981
          %v4111 = vmul.f32 %v276, %v3981
          %v4112 = vmul.f32 %v277, %v3985
          %v4113 = vmul.f32 %v278, %v3985
          %v4114 = vmul.f32 %v279, %v3989
          %v4115 = vmul.f32 %v280, %v3989
          %v4116 = vmul.f32 %v281, %v3993
          %v4117 = vmul.f32 %v282, %v3993
          %v4118 = vmul.f32 %v283, %v3997
          %v4119 = vmul.f32 %v284, %v3997
          %v4120 = vmul.f32 %v285, %v4001
          %v4121 = vmul.f32 %v286, %v4001
          %v4122 = vmul.f32 %v287, %v4005
          %v4123 = vmul.f32 %v288, %v4005
          %v4124 = vmul.f32 %v289, %v4009
          %v4125 = vmul.f32 %v290, %v4009
          %v4126 = vmul.f32 %v291, %v4013
          %v4127 = vmul.f32 %v292, %v4013
          %v4128 = vmul.f32 %v293, %v4017
          %v4129 = vmul.f32 %v294, %v4017
          %v4130 = vmul.f32 %v295, %v4021
          %v4131 = vmul.f32 %v296, %v4021
          %v4132 = vmul.f32 %v297, %v4025
          %v4133 = vmul.f32 %v298, %v4025
          %v4134 = vmul.f32 %v299, %v4029
          %v4135 = vmul.f32 %v300, %v4029
          %v4136 = vmul.f32 %v301, %v4033
          %v4137 = vmul.f32 %v302, %v4033
          %v4138 = vmul.f32 %v303, %v4037
          %v4139 = vmul.f32 %v304, %v4037
          %v4140 = vmul.f32 %v305, %v4041
          %v4141 = vmul.f32 %v306, %v4041
          %v4142 = vmul.f32 %v307, %v4045
          %v4143 = vmul.f32 %v308, %v4045
          %v4144 = vmul.f32 %v309, %v4049
          %v4145 = vmul.f32 %v310, %v4049
          %s4146 = scalar_lea.vmem %s154, %s245 [#allocation10]
          %4147 = vst [vmem:[%s4146] sm:$0xff] %v4082
          %4148 = vst [vmem:[%s4146 + $0x8] sm:$0xff] %v4083
          %4149 = vst [vmem:[%s4146 + $0x10] sm:$0xff] %v4084
          %4150 = vst [vmem:[%s4146 + $0x18] sm:$0xff] %v4085
          %4151 = vst [vmem:[%s4146 + $0x20] sm:$0xff] %v4086
          %4152 = vst [vmem:[%s4146 + $0x28] sm:$0xff] %v4087
          %4153 = vst [vmem:[%s4146 + $0x30] sm:$0xff] %v4088
          %4154 = vst [vmem:[%s4146 + $0x38] sm:$0xff] %v4089
          %4155 = vst [vmem:[%s4146 + $0x40] sm:$0xff] %v4090
          %4156 = vst [vmem:[%s4146 + $0x48] sm:$0xff] %v4091
          %4157 = vst [vmem:[%s4146 + $0x50] sm:$0xff] %v4092
          %4158 = vst [vmem:[%s4146 + $0x58] sm:$0xff] %v4093
          %4159 = vst [vmem:[%s4146 + $0x60] sm:$0xff] %v4094
          %4160 = vst [vmem:[%s4146 + $0x68] sm:$0xff] %v4095
          %4161 = vst [vmem:[%s4146 + $0x70] sm:$0xff] %v4096
          %4162 = vst [vmem:[%s4146 + $0x78] sm:$0xff] %v4097
          %4163 = vst [vmem:[%s4146 + $0x80] sm:$0xff] %v4098
          %4164 = vst [vmem:[%s4146 + $0x88] sm:$0xff] %v4099
          %4165 = vst [vmem:[%s4146 + $0x90] sm:$0xff] %v4100
          %4166 = vst [vmem:[%s4146 + $0x98] sm:$0xff] %v4101
          %4167 = vst [vmem:[%s4146 + $0xa0] sm:$0xff] %v4102
          %4168 = vst [vmem:[%s4146 + $0xa8] sm:$0xff] %v4103
          %4169 = vst [vmem:[%s4146 + $0xb0] sm:$0xff] %v4104
          %4170 = vst [vmem:[%s4146 + $0xb8] sm:$0xff] %v4105
          %4171 = vst [vmem:[%s4146 + $0xc0] sm:$0xff] %v4106
          %4172 = vst [vmem:[%s4146 + $0xc8] sm:$0xff] %v4107
          %4173 = vst [vmem:[%s4146 + $0xd0] sm:$0xff] %v4108
          %4174 = vst [vmem:[%s4146 + $0xd8] sm:$0xff] %v4109
          %4175 = vst [vmem:[%s4146 + $0xe0] sm:$0xff] %v4110
          %4176 = vst [vmem:[%s4146 + $0xe8] sm:$0xff] %v4111
          %4177 = vst [vmem:[%s4146 + $0xf0] sm:$0xff] %v4112
          %4178 = vst [vmem:[%s4146 + $0xf8] sm:$0xff] %v4113
          %4179 = vst [vmem:[%s4146 + $0x100] sm:$0xff] %v4114
          %4180 = vst [vmem:[%s4146 + $0x108] sm:$0xff] %v4115
          %4181 = vst [vmem:[%s4146 + $0x110] sm:$0xff] %v4116
          %4182 = vst [vmem:[%s4146 + $0x118] sm:$0xff] %v4117
          %4183 = vst [vmem:[%s4146 + $0x120] sm:$0xff] %v4118
          %4184 = vst [vmem:[%s4146 + $0x128] sm:$0xff] %v4119
          %4185 = vst [vmem:[%s4146 + $0x130] sm:$0xff] %v4120
          %4186 = vst [vmem:[%s4146 + $0x138] sm:$0xff] %v4121
          %4187 = vst [vmem:[%s4146 + $0x140] sm:$0xff] %v4122
          %4188 = vst [vmem:[%s4146 + $0x148] sm:$0xff] %v4123
          %4189 = vst [vmem:[%s4146 + $0x150] sm:$0xff] %v4124
          %4190 = vst [vmem:[%s4146 + $0x158] sm:$0xff] %v4125
          %4191 = vst [vmem:[%s4146 + $0x160] sm:$0xff] %v4126
          %4192 = vst [vmem:[%s4146 + $0x168] sm:$0xff] %v4127
          %4193 = vst [vmem:[%s4146 + $0x170] sm:$0xff] %v4128
          %4194 = vst [vmem:[%s4146 + $0x178] sm:$0xff] %v4129
          %4195 = vst [vmem:[%s4146 + $0x180] sm:$0xff] %v4130
          %4196 = vst [vmem:[%s4146 + $0x188] sm:$0xff] %v4131
          %4197 = vst [vmem:[%s4146 + $0x190] sm:$0xff] %v4132
          %4198 = vst [vmem:[%s4146 + $0x198] sm:$0xff] %v4133
          %4199 = vst [vmem:[%s4146 + $0x1a0] sm:$0xff] %v4134
          %4200 = vst [vmem:[%s4146 + $0x1a8] sm:$0xff] %v4135
          %4201 = vst [vmem:[%s4146 + $0x1b0] sm:$0xff] %v4136
          %4202 = vst [vmem:[%s4146 + $0x1b8] sm:$0xff] %v4137
          %4203 = vst [vmem:[%s4146 + $0x1c0] sm:$0xff] %v4138
          %4204 = vst [vmem:[%s4146 + $0x1c8] sm:$0xff] %v4139
          %4205 = vst [vmem:[%s4146 + $0x1d0] sm:$0xff] %v4140
          %4206 = vst [vmem:[%s4146 + $0x1d8] sm:$0xff] %v4141
          %4207 = vst [vmem:[%s4146 + $0x1e0] sm:$0xff] %v4142
          %4208 = vst [vmem:[%s4146 + $0x1e8] sm:$0xff] %v4143
          %4209 = vst [vmem:[%s4146 + $0x1f0] sm:$0xff] %v4144
          %4210 = vst [vmem:[%s4146 + $0x1f8] sm:$0xff] %v4145
        $region33: #{tpu_custom_call.1} parent=23 // loop_footer
          %s243 = sadd.s32 1, %s239
        $region34: #{tpu_custom_call.1} parent=23 // loop_footer_branch
          %238 = sbr.rel target = $region30
        $region35: #{tpu_custom_call.1} parent=23 // loop_exit
          _
        %s4211 = sand.u32 %s71, 1
        %s4212 = scalar_lea.sflag [#allocation9], %s4211
        %s4213 = sand.u32 %s71, 1
        %s4214 = smul.addr %s4213, 1024
        %s4215 = scalar_lea.vmem [#allocation10], %s4214
        // Predicated region
        $region36: #{tpu_custom_call.1} parent=23 // pred_check
          %p4216 = pneg %p81
        $region37: #{tpu_custom_call.1} parent=23 // pred_check_branch
          %4218 = sbr.rel (%p4216) target = $region39
        $region38: #{tpu_custom_call.1} parent=23 // pred_region
          %s4219 = smul.u32 8, %s37
          %s4221 = ssub.s32 16384, 16384
          %4222 = vsyncadd %s4212, %s4221
          %s4223 = smul.addr %s4219, 16
          %s4224 = smul.addr %s4223, 128
          %s4225 = scalar_lea.hbm %s5, %s4224
          %s4226 = sshll.u32 %s4215, 4
          %s4227 = int_to_ptr.vmem [resolvable:$true] %s4226
          %4232 = dma.vmem_to_hbm [thread:$0]  %s4227, 16384, %s4225, %s4212, 128, 128, 8
        $region39: #{tpu_custom_call.1} parent=23 // pred_fallthru
          _
      $region24: #{tpu_custom_call.1} parent=5 // pred_fallthru
        _
      %p4233 = scmp.le.s32.totalorder 2, %s32
      // Predicated region
      $region40: #{tpu_custom_call.1} parent=5 // pred_check
        %p4234 = pneg %p4233
      $region41: #{tpu_custom_call.1} parent=5 // pred_check_branch
        %4236 = sbr.rel (%p4234) target = $region43
      $region42: #{tpu_custom_call.1} parent=5 // pred_region
        %s4237 = ssub.s32 %s32, 2
        // Predicated region
        $region44: #{tpu_custom_call.1} parent=42 // pred_check
          %p4238 = pneg %p87
        $region45: #{tpu_custom_call.1} parent=42 // pred_check_branch
          %4240 = sbr.rel (%p4238) target = $region47
        $region46: #{tpu_custom_call.1} parent=42 // pred_region
          %s4241 = sand.u32 %s72, 1
          %s4242 = scalar_lea.sflag [#allocation9], %s4241
          %s4243 = sand.u32 %s72, 1
          %s4244 = smul.addr %s4243, 1024
          %s4245 = scalar_lea.vmem [#allocation10], %s4244
          %4246 = dma.done %s4242, 16384
        $region47: #{tpu_custom_call.1} parent=42 // pred_fallthru
          _
      $region43: #{tpu_custom_call.1} parent=5 // pred_fallthru
        _
    $region6: #{tpu_custom_call.1} parent=1 // loop_footer
      %s36 = sadd.s32 1, %s32
    $region7: #{tpu_custom_call.1} parent=1 // loop_footer_branch
      %31 = sbr.rel target = $region3
    $region8: #{tpu_custom_call.1} parent=1 // loop_exit
      _
    %4247 = vsyncpa [#allocation8], 1
    %s4248 = scalar_lea.sflag [#allocation8], 1
    %4249 = vsyncpa %s4248, 1
    %4250 = vsyncpa [#allocation9], 1
    %s4251 = scalar_lea.sflag [#allocation9], 1
    %4252 = vsyncpa %s4251, 1

</llo_original>
